<compile_context>
chip_gen: v5e
topology: v5e:2x2
jax: 0.10.0
libtpu: 0.0.40
codegen_flags: <defaults>
</compile_context>

<pallas_src>
import functools

import jax
import jax.numpy as jnp
from jax.experimental import pallas as pl
from jax.experimental.pallas import tpu as pltpu


def _crossnet_mix_kernel(x_ref, w1_ref, cbd_ref, ut_ref, b_ref, o_ref, *, er, r):
    # x_ref   : (bt, D)              activation tile (batch on sublanes, D on lanes)
    # w1_ref  : (L, D, 2*er_pad)     fused [V_all | r-expanded gating] weight
    # cbd_ref : (L, er_pad, er_pad)  block-diagonal C
    # ut_ref  : (L, er_pad, D)       stacked U^T (expert-major rows)
    # b_ref   : (L, D)               per-layer bias
    # er = true E*r (un-padded), r = low rank.
    L = w1_ref.shape[0]
    er_pad = cbd_ref.shape[1]
    cdt = w1_ref.dtype                         # MXU operand dtype (bf16 fast / f32 exact)

    x0 = x_ref[...].astype(jnp.float32)        # (bt, D)
    bias = b_ref[...].astype(jnp.float32)      # (L, D)  -- loaded once (hoisted)

    if er_pad != er:                           # mask for real (non-padded) gate lanes
        lane = jax.lax.broadcasted_iota(jnp.int32, (1, er_pad), 1)
        live = lane < er

    x1 = x0
    for i in range(L):                         # L is tiny & static -> unrolled
        # ONE fused matmul: per-expert V projections AND r-expanded gating logits.
        h = jnp.dot(x1.astype(cdt), w1_ref[i],
                    preferred_element_type=jnp.float32)           # (bt, 2*er_pad)
        vx = jnp.tanh(h[:, :er_pad])                              # (bt, er_pad)
        glog = h[:, er_pad:]                                      # logits; lane e*r+k == expert e
        if er_pad != er:
            glog = jnp.where(live, glog, -jnp.inf)

        # Softmax over experts, done directly in the r-expanded lane space (VPU/XLU
        # only; the old K=E gate-expansion matmul is gone):
        #   sum over lanes = r * sum over experts  =>  gate_e = exp_e * r / sum_lanes
        glog = glog - jnp.max(glog, axis=1, keepdims=True)
        ge = jnp.exp(glog)
        gexp = ge * (float(r) *
                     pl.reciprocal(jnp.sum(ge, axis=1, keepdims=True), approx=False))

        # Low-rank middle mix for all experts at once via block-diagonal C.
        vx = jnp.tanh(jnp.dot(vx.astype(cdt), cbd_ref[i],
                              preferred_element_type=jnp.float32))  # (bt, er_pad)

        # Gate-before-U: scale each expert's r columns by its gate, then ONE
        # (bt, E*r) @ (E*r, D) matmul realizes the gated sum over experts.
        vx = vx * gexp
        out = jnp.dot(vx.astype(cdt), ut_ref[i],
                      preferred_element_type=jnp.float32)           # (bt, D)

        # Gates sum to 1 -> bias add and x0-Hadamard hoist out of the expert sum;
        # residual add closes the layer.
        x1 = x0 * (out + bias[i:i + 1, :]) + x1

    o_ref[...] = x1.astype(o_ref.dtype)


def prepare_crossnet_mix_params(U, V, C, GW, bias, *, compute_dtype=jnp.bfloat16):
    """One-time weight re-layout (do this OUTSIDE the per-call path).

    U, V: (L, E, D, r); C: (L, E, r, r); GW: (E, D); bias: (L, D, 1).
    compute_dtype: dtype fed to the MXU (bf16 fast path / f32 exact path).
    """
    L, E, D, r = U.shape
    Er = E * r
    Er_pad = ((Er + 127) // 128) * 128        # keep intermediates (8,128) lane-dense

    # V packed expert-major along columns, plus r-expanded gating weights so the
    # fused matmul directly yields per-lane gating logits (no Exp matmul needed).
    V_all = jnp.transpose(V, (0, 2, 1, 3)).reshape(L, D, Er)            # (L, D, E*r)
    V_all = jnp.pad(V_all, ((0, 0), (0, 0), (0, Er_pad - Er)))
    GWexp = jnp.repeat(jnp.transpose(GW), r, axis=1)                    # (D, E*r)
    GWexp = jnp.pad(GWexp, ((0, 0), (0, Er_pad - Er)))
    GWexp = jnp.broadcast_to(GWexp[None], (L, D, Er_pad))
    W1 = jnp.concatenate([V_all, GWexp], axis=2)                        # (L, D, 2*Er_pad)

    # Block-diagonal C: (L, Er_pad, Er_pad); zero outside the blocks / padding.
    Cbd = jnp.zeros((L, Er_pad, Er_pad), dtype=C.dtype)
    for l in range(L):
        for e in range(E):
            Cbd = Cbd.at[l, e * r:(e + 1) * r, e * r:(e + 1) * r].set(C[l, e])

    # Stacked U^T: row e*r+k holds U[l, e][:, k]; padded rows are zero.
    Ut = jnp.transpose(U, (0, 1, 3, 2)).reshape(L, Er, D)               # (L, E*r, D)
    Ut = jnp.pad(Ut, ((0, 0), (0, Er_pad - Er), (0, 0)))

    B2d = bias[..., 0].astype(jnp.float32)                              # (L, D)
    return (W1.astype(compute_dtype), Cbd.astype(compute_dtype),
            Ut.astype(compute_dtype), B2d, (E, r))


def _num_tensorcores():
    try:
        return max(1, int(getattr(jax.devices()[0], "num_cores", 1) or 1))
    except Exception:
        return 1


def crossnet_mix(x, params, *, batch_tile=256):
    """x: (B, D); params: output of prepare_crossnet_mix_params.

    batch_tile is a tunable: sweep 256/512/1024 for large B on v6e/v7x; keep <=256
    on v5e (single vector-store slot) unless profiling says otherwise.
    """
    W1, Cbd, Ut, B2d, (E, r) = params
    B, D = x.shape
    L, _, W1n = W1.shape
    Er_pad = Cbd.shape[1]
    Er = E * r

    bt = min(batch_tile, B)
    # v7x has 2 TensorCores: keep >= 1 grid step per core so the "parallel" axis
    # shards the batch; v5e/v6e (1 core) are unaffected.
    ncores = _num_tensorcores()
    if ncores > 1 and B // bt < ncores:
        cand = B // ncores
        if cand >= 8 and cand % 8 == 0 and B % cand == 0:
            bt = cand

    assert B % bt == 0 and bt % 8 == 0, "batch must tile into multiples of 8 rows"
    # TODO(synk): masked-store tail handling for B not a multiple of the batch tile.

    kernel = functools.partial(_crossnet_mix_kernel, er=Er, r=r)
    return pl.pallas_call(
        kernel,
        out_shape=jax.ShapeDtypeStruct((B, D), x.dtype),
        grid_spec=pltpu.PrefetchScalarGridSpec(
            num_scalar_prefetch=0,
            grid=(B // bt,),
            in_specs=[
                pl.BlockSpec((bt, D), lambda i: (i, 0)),
                pl.BlockSpec((L, D, W1n), lambda i: (0, 0, 0)),
                pl.BlockSpec((L, Er_pad, Er_pad), lambda i: (0, 0, 0)),
                pl.BlockSpec((L, Er_pad, D), lambda i: (0, 0, 0)),
                pl.BlockSpec((L, D), lambda i: (0, 0)),
            ],
            out_specs=pl.BlockSpec((bt, D), lambda i: (i, 0)),
        ),
        compiler_params=pltpu.CompilerParams(
            dimension_semantics=("parallel",)),
    )(x, W1, Cbd, Ut, B2d)


def crossnet_mix_ref(x, U, V, C, GW, bias):
    """Pure-JAX reference, mirroring the PyTorch forward exactly (f32)."""
    L, E = U.shape[0], U.shape[1]
    x0 = x[..., None]          # (B, D, 1)
    x1 = x0
    for i in range(L):
        outs, gates = [], []
        for e in range(E):
            gates.append(jnp.matmul(x1[..., 0], GW[e:e + 1, :].T))   # (B, 1)
            vx = jnp.matmul(V[i, e].T, x1)                           # (B, r, 1)
            vx = jnp.tanh(vx)
            vx = jnp.matmul(C[i, e].T, vx)
            vx = jnp.tanh(vx)
            vx = jnp.matmul(U[i, e], vx)                             # (B, D, 1)
            vx = vx + bias[i]
            vx = x0 * vx
            outs.append(vx[..., 0])
        outs = jnp.stack(outs, 2)                                    # (B, D, E)
        gates = jnp.stack(gates, 1)                                  # (B, E, 1)
        moe = jnp.matmul(outs, jax.nn.softmax(gates, axis=1))        # (B, D, 1)
        x1 = moe + x1
    return x1[..., 0]


if __name__ == "__main__":
    def run_case(batch, in_features, low_rank, num_experts, layer_num, batch_tile):
        key = jax.random.PRNGKey(0)
        kx, ku, kv, kc, kg = jax.random.split(key, 5)
        x = jax.random.normal(kx, (batch, in_features), dtype=jnp.float32)
        U = jax.random.normal(ku, (layer_num, num_experts, in_features, low_rank),
                              dtype=jnp.float32)
        V = jax.random.normal(kv, (layer_num, num_experts, in_features, low_rank),
                              dtype=jnp.float32)
        C = jax.random.normal(kc, (layer_num, num_experts, low_rank, low_rank),
                              dtype=jnp.float32)
        GW = jax.random.uniform(kg, (num_experts, in_features), dtype=jnp.float32,
                                minval=-1.0 / jnp.sqrt(in_features),
                                maxval=1.0 / jnp.sqrt(in_features))
        bias = jnp.zeros((layer_num, in_features, 1), dtype=jnp.float32)

        with jax.default_matmul_precision("highest"):
            ref = jax.block_until_ready(crossnet_mix_ref(x, U, V, C, GW, bias))

        # Exact-semantics path (f32 MXU operands): must match the module tightly.
        p32 = prepare_crossnet_mix_params(U, V, C, GW, bias,
                                          compute_dtype=jnp.float32)
        out32 = jax.block_until_ready(crossnet_mix(x, p32, batch_tile=batch_tile))
        assert out32.shape == (batch, in_features)
        assert jnp.allclose(out32, ref, rtol=1e-3, atol=1e-3), "f32 kernel mismatch"

        # Fast path (bf16 MXU operands, f32 accumulate): sanity bound only — the toy
        # N(0,1) weight init amplifies bf16 rounding through the 2-layer tanh chain,
        # so a 1e-3 check is not meaningful here; any packing/algebra bug would give
        # O(1) relative error and still trips this assert.
        pbf = prepare_crossnet_mix_params(U, V, C, GW, bias,
                                          compute_dtype=jnp.bfloat16)
        outbf = jax.block_until_ready(crossnet_mix(x, pbf, batch_tile=batch_tile))
        rel = jnp.linalg.norm(outbf.astype(jnp.float32) - ref) / jnp.linalg.norm(ref)
        assert float(rel) < 0.25, f"bf16 kernel diverged: rel L2 {float(rel):.3f}"

    # Default CrossNetMix config (D=32, r=32, E=4, L=2): E*r lands exactly on 128 lanes.
    run_case(batch=512, in_features=32, low_rank=32, num_experts=4, layer_num=2,
             batch_tile=256)
    # Smaller-rank config exercises the E*r -> 128 zero-padding + masked-gate path.
    run_case(batch=64, in_features=32, low_rank=16, num_experts=4, layer_num=2,
             batch_tile=64)

    print("KERNEL_OK")
</pallas_src>

<mosaic_0001>
module attributes {stable_mosaic.version = 11 : i64} {
  func.func @_crossnet_mix_kernel(%arg0: i32, %arg1: memref<256x32xf32, #tpu.memory_space<vmem>>, %arg2: memref<2x32x256xf32, #tpu.memory_space<vmem>>, %arg3: memref<2x128x128xf32, #tpu.memory_space<vmem>>, %arg4: memref<2x128x32xf32, #tpu.memory_space<vmem>>, %arg5: memref<2x32xf32, #tpu.memory_space<vmem>>, %arg6: memref<256x32xf32, #tpu.memory_space<vmem>>) attributes {dimension_semantics = [#tpu.dimension_semantics<parallel>], iteration_bounds = array<i64: 2>, scalar_prefetch = 0 : i64, scratch_operands = 0 : i64, tpu.core_type = #tpu.core_type<tc>, window_params = [{transform_indices = @transform_0, window_bounds = array<i64: 256, 32>}, {pipeline_mode = #tpu.pipeline_mode<synchronous>, transform_indices = @transform_1, window_bounds = array<i64: 2, 32, 256>}, {pipeline_mode = #tpu.pipeline_mode<synchronous>, transform_indices = @transform_2, window_bounds = array<i64: 2, 128, 128>}, {pipeline_mode = #tpu.pipeline_mode<synchronous>, transform_indices = @transform_3, window_bounds = array<i64: 2, 128, 32>}, {pipeline_mode = #tpu.pipeline_mode<synchronous>, transform_indices = @transform_4, window_bounds = array<i64: 2, 32>}, {transform_indices = @transform_5, window_bounds = array<i64: 256, 32>}]} {
    %c0 = arith.constant 0 : index
    %c0_0 = arith.constant 0 : index
    %0 = vector.load %arg1[%c0, %c0_0] : memref<256x32xf32, #tpu.memory_space<vmem>>, vector<256x32xf32>
    %c0_1 = arith.constant 0 : index
    %c0_2 = arith.constant 0 : index
    %1 = vector.load %arg5[%c0_1, %c0_2] : memref<2x32xf32, #tpu.memory_space<vmem>>, vector<2x32xf32>
    %c0_3 = arith.constant 0 : index
    %c0_4 = arith.constant 0 : index
    %c0_5 = arith.constant 0 : index
    %2 = vector.load %arg2[%c0_3, %c0_4, %c0_5] : memref<2x32x256xf32, #tpu.memory_space<vmem>>, vector<1x32x256xf32>
    %3 = vector.shape_cast %2 : vector<1x32x256xf32> to vector<32x256xf32>
    %cst = arith.constant dense<0.000000e+00> : vector<256x256xf32>
    %4 = tpu.matmul %0, %3, %cst {dimension_numbers = #tpu.dot_dimension_numbers<[1], [0], [0], [1], [0, 0, 1, 1], [], []>} : vector<256x32xf32>, vector<32x256xf32>, vector<256x256xf32> -> vector<256x256xf32>
    %5 = vector.extract_strided_slice %4 {offsets = [0, 0], sizes = [256, 128], strides = [1, 1]} : vector<256x256xf32> to vector<256x128xf32>
    %6 = math.tanh %5 : vector<256x128xf32>
    %7 = vector.extract_strided_slice %4 {offsets = [0, 128], sizes = [256, 128], strides = [1, 1]} : vector<256x256xf32> to vector<256x128xf32>
    %cst_6 = arith.constant dense<0xFF800000> : vector<256xf32>
    %8 = vector.multi_reduction <maximumf>, %7, %cst_6 [1] : vector<256x128xf32> to vector<256xf32>
    %9 = vector.shape_cast %8 : vector<256xf32> to vector<256x1xf32>
    %10 = vector.broadcast %9 : vector<256x1xf32> to vector<256x128xf32>
    %11 = arith.subf %7, %10 : vector<256x128xf32>
    %12 = math.exp %11 : vector<256x128xf32>
    %cst_7 = arith.constant dense<0.000000e+00> : vector<256xf32>
    %13 = vector.multi_reduction <add>, %12, %cst_7 [1] : vector<256x128xf32> to vector<256xf32>
    %14 = vector.shape_cast %13 : vector<256xf32> to vector<256x1xf32>
    %15 = tpu.reciprocal %14 : vector<256x1xf32> -> vector<256x1xf32>
    %cst_8 = arith.constant 3.200000e+01 : f32
    %16 = vector.broadcast %cst_8 : f32 to vector<256x1xf32>
    %17 = arith.mulf %16, %15 : vector<256x1xf32>
    %18 = vector.broadcast %17 : vector<256x1xf32> to vector<256x128xf32>
    %19 = arith.mulf %12, %18 : vector<256x128xf32>
    %c0_9 = arith.constant 0 : index
    %c0_10 = arith.constant 0 : index
    %c0_11 = arith.constant 0 : index
    %20 = vector.load %arg3[%c0_9, %c0_10, %c0_11] : memref<2x128x128xf32, #tpu.memory_space<vmem>>, vector<1x128x128xf32>
    %21 = vector.shape_cast %20 : vector<1x128x128xf32> to vector<128x128xf32>
    %cst_12 = arith.constant dense<0.000000e+00> : vector<256x128xf32>
    %22 = tpu.matmul %6, %21, %cst_12 {dimension_numbers = #tpu.dot_dimension_numbers<[1], [0], [0], [1], [0, 0, 1, 1], [], []>} : vector<256x128xf32>, vector<128x128xf32>, vector<256x128xf32> -> vector<256x128xf32>
    %23 = math.tanh %22 : vector<256x128xf32>
    %24 = arith.mulf %23, %19 : vector<256x128xf32>
    %c0_13 = arith.constant 0 : index
    %c0_14 = arith.constant 0 : index
    %c0_15 = arith.constant 0 : index
    %25 = vector.load %arg4[%c0_13, %c0_14, %c0_15] : memref<2x128x32xf32, #tpu.memory_space<vmem>>, vector<1x128x32xf32>
    %26 = vector.shape_cast %25 : vector<1x128x32xf32> to vector<128x32xf32>
    %cst_16 = arith.constant dense<0.000000e+00> : vector<256x32xf32>
    %27 = tpu.matmul %24, %26, %cst_16 {dimension_numbers = #tpu.dot_dimension_numbers<[1], [0], [0], [1], [0, 0, 1, 1], [], []>} : vector<256x128xf32>, vector<128x32xf32>, vector<256x32xf32> -> vector<256x32xf32>
    %28 = vector.extract_strided_slice %1 {offsets = [0, 0], sizes = [1, 32], strides = [1, 1]} : vector<2x32xf32> to vector<1x32xf32>
    %29 = vector.broadcast %28 : vector<1x32xf32> to vector<256x32xf32>
    %30 = arith.addf %27, %29 : vector<256x32xf32>
    %31 = arith.mulf %0, %30 : vector<256x32xf32>
    %32 = arith.addf %31, %0 : vector<256x32xf32>
    %c1 = arith.constant 1 : index
    %c0_17 = arith.constant 0 : index
    %c0_18 = arith.constant 0 : index
    %33 = vector.load %arg2[%c1, %c0_17, %c0_18] : memref<2x32x256xf32, #tpu.memory_space<vmem>>, vector<1x32x256xf32>
    %34 = vector.shape_cast %33 : vector<1x32x256xf32> to vector<32x256xf32>
    %cst_19 = arith.constant dense<0.000000e+00> : vector<256x256xf32>
    %35 = tpu.matmul %32, %34, %cst_19 {dimension_numbers = #tpu.dot_dimension_numbers<[1], [0], [0], [1], [0, 0, 1, 1], [], []>} : vector<256x32xf32>, vector<32x256xf32>, vector<256x256xf32> -> vector<256x256xf32>
    %36 = vector.extract_strided_slice %35 {offsets = [0, 0], sizes = [256, 128], strides = [1, 1]} : vector<256x256xf32> to vector<256x128xf32>
    %37 = math.tanh %36 : vector<256x128xf32>
    %38 = vector.extract_strided_slice %35 {offsets = [0, 128], sizes = [256, 128], strides = [1, 1]} : vector<256x256xf32> to vector<256x128xf32>
    %cst_20 = arith.constant dense<0xFF800000> : vector<256xf32>
    %39 = vector.multi_reduction <maximumf>, %38, %cst_20 [1] : vector<256x128xf32> to vector<256xf32>
    %40 = vector.shape_cast %39 : vector<256xf32> to vector<256x1xf32>
    %41 = vector.broadcast %40 : vector<256x1xf32> to vector<256x128xf32>
    %42 = arith.subf %38, %41 : vector<256x128xf32>
    %43 = math.exp %42 : vector<256x128xf32>
    %cst_21 = arith.constant dense<0.000000e+00> : vector<256xf32>
    %44 = vector.multi_reduction <add>, %43, %cst_21 [1] : vector<256x128xf32> to vector<256xf32>
    %45 = vector.shape_cast %44 : vector<256xf32> to vector<256x1xf32>
    %46 = tpu.reciprocal %45 : vector<256x1xf32> -> vector<256x1xf32>
    %cst_22 = arith.constant 3.200000e+01 : f32
    %47 = vector.broadcast %cst_22 : f32 to vector<256x1xf32>
    %48 = arith.mulf %47, %46 : vector<256x1xf32>
    %49 = vector.broadcast %48 : vector<256x1xf32> to vector<256x128xf32>
    %50 = arith.mulf %43, %49 : vector<256x128xf32>
    %c1_23 = arith.constant 1 : index
    %c0_24 = arith.constant 0 : index
    %c0_25 = arith.constant 0 : index
    %51 = vector.load %arg3[%c1_23, %c0_24, %c0_25] : memref<2x128x128xf32, #tpu.memory_space<vmem>>, vector<1x128x128xf32>
    %52 = vector.shape_cast %51 : vector<1x128x128xf32> to vector<128x128xf32>
    %cst_26 = arith.constant dense<0.000000e+00> : vector<256x128xf32>
    %53 = tpu.matmul %37, %52, %cst_26 {dimension_numbers = #tpu.dot_dimension_numbers<[1], [0], [0], [1], [0, 0, 1, 1], [], []>} : vector<256x128xf32>, vector<128x128xf32>, vector<256x128xf32> -> vector<256x128xf32>
    %54 = math.tanh %53 : vector<256x128xf32>
    %55 = arith.mulf %54, %50 : vector<256x128xf32>
    %c1_27 = arith.constant 1 : index
    %c0_28 = arith.constant 0 : index
    %c0_29 = arith.constant 0 : index
    %56 = vector.load %arg4[%c1_27, %c0_28, %c0_29] : memref<2x128x32xf32, #tpu.memory_space<vmem>>, vector<1x128x32xf32>
    %57 = vector.shape_cast %56 : vector<1x128x32xf32> to vector<128x32xf32>
    %cst_30 = arith.constant dense<0.000000e+00> : vector<256x32xf32>
    %58 = tpu.matmul %55, %57, %cst_30 {dimension_numbers = #tpu.dot_dimension_numbers<[1], [0], [0], [1], [0, 0, 1, 1], [], []>} : vector<256x128xf32>, vector<128x32xf32>, vector<256x32xf32> -> vector<256x32xf32>
    %59 = vector.extract_strided_slice %1 {offsets = [1, 0], sizes = [1, 32], strides = [1, 1]} : vector<2x32xf32> to vector<1x32xf32>
    %60 = vector.broadcast %59 : vector<1x32xf32> to vector<256x32xf32>
    %61 = arith.addf %58, %60 : vector<256x32xf32>
    %62 = arith.mulf %0, %61 : vector<256x32xf32>
    %63 = arith.addf %62, %32 : vector<256x32xf32>
    %c0_31 = arith.constant 0 : index
    %c0_32 = arith.constant 0 : index
    %64 = vector.load %arg6[%c0_31, %c0_32] : memref<256x32xf32, #tpu.memory_space<vmem>>, vector<256x32xf32>
    tpu.vector_store %arg6[%c0_31, %c0_32], %63 {strides = array<i32>} : memref<256x32xf32, #tpu.memory_space<vmem>>, vector<256x32xf32>,
    return
  }
  func.func @transform_0(%arg0: i32) -> (i32, i32) {
    %c0_i32 = arith.constant 0 : i32
    %c0_i32_0 = arith.constant 0 : i32
    return %arg0, %c0_i32 : i32, i32
  }
  func.func @transform_1(%arg0: i32) -> (i32, i32, i32) {
    %c0_i32 = arith.constant 0 : i32
    %c0_i32_0 = arith.constant 0 : i32
    %c0_i32_1 = arith.constant 0 : i32
    %c0_i32_2 = arith.constant 0 : i32
    return %c0_i32, %c0_i32_0, %c0_i32_1 : i32, i32, i32
  }
  func.func @transform_2(%arg0: i32) -> (i32, i32, i32) {
    %c0_i32 = arith.constant 0 : i32
    %c0_i32_0 = arith.constant 0 : i32
    %c0_i32_1 = arith.constant 0 : i32
    %c0_i32_2 = arith.constant 0 : i32
    return %c0_i32, %c0_i32_0, %c0_i32_1 : i32, i32, i32
  }
  func.func @transform_3(%arg0: i32) -> (i32, i32, i32) {
    %c0_i32 = arith.constant 0 : i32
    %c0_i32_0 = arith.constant 0 : i32
    %c0_i32_1 = arith.constant 0 : i32
    %c0_i32_2 = arith.constant 0 : i32
    return %c0_i32, %c0_i32_0, %c0_i32_1 : i32, i32, i32
  }
  func.func @transform_4(%arg0: i32) -> (i32, i32) {
    %c0_i32 = arith.constant 0 : i32
    %c0_i32_0 = arith.constant 0 : i32
    %c0_i32_1 = arith.constant 0 : i32
    return %c0_i32, %c0_i32_0 : i32, i32
  }
  func.func @transform_5(%arg0: i32) -> (i32, i32) {
    %c0_i32 = arith.constant 0 : i32
    %c0_i32_0 = arith.constant 0 : i32
    return %arg0, %c0_i32 : i32, i32
  }
}

</mosaic_0001>

<llo_original>
// kernel: tpu_custom_call.1
$region0: #{tpu_custom_call.1}
  #allocation0 [shape = 'u32[]', space=smem, size = 0x4, offset = 0x4, fixed_abs, tag = 'smem constant byte address 0x4 - core index']
  #allocation1 [shape = 'u32[72,128]{1,0:T(1,128)}', space=vmem, size = 0x9000, scoped, tag = 'internal scratch']
  %s0 = inlined_call_operand.vmem [shape: f32[512,32], index: 0, kind: input, shape index: {}]
  %s1 = inlined_call_operand.vmem [shape: f32[2,32,256], index: 1, kind: input, shape index: {}]
  %s2 = inlined_call_operand.vmem [shape: f32[2,128,128], index: 2, kind: input, shape index: {}]
  %s3 = inlined_call_operand.vmem [shape: f32[2,128,32], index: 3, kind: input, shape index: {}]
  %s4 = inlined_call_operand.vmem [shape: f32[2,32], index: 4, kind: input, shape index: {}]
  %s5 = inlined_call_operand.vmem [shape: f32[512,32], index: 5, kind: output, shape index: {}]
  %s6 = sld [smem:[#allocation0]]
  $region53: #{tpu_custom_call.1} parent=0
    _
  %s8 = ssub.s32 1, %s6
  %s9 = scalar_select 0, %s8, %s6
  loop: start=0, step=1, limit=4
  $region2: #{tpu_custom_call.1} parent=0 // loop_pre_header
    _
  $region3: #{tpu_custom_call.1} parent=0 // loop_header
    %s11 = sphi 0, %s15
    %p12 = scmp.ge.s32.totalorder %s11, 4
    %s21 = sphi 0, %s23
    %s24 = sphi 0, %s21
    %s25 = sphi 0, %s24
    %s41 = sphi 0, %s25
    %s45 = sphi 0, %s45
    %s47 = sphi 0, %s45
    %s48 = sphi 0, %s47
    %s62 = sphi 0, %s48
    %s66 = sphi 0, %s66
    %s68 = sphi 0, %s66
    %s69 = sphi 0, %s68
    %s83 = sphi 0, %s69
    %s87 = sphi 0, %s87
    %s89 = sphi 0, %s87
    %s90 = sphi 0, %s89
    %s104 = sphi 0, %s90
    %s108 = sphi 0, %s108
    %s110 = sphi 0, %s108
    %s111 = sphi 0, %s110
    %s125 = sphi 0, %s111
    %s131 = sphi 0, %s133
    %s134 = sphi 0, %s131
    %s135 = sphi 0, %s134
    %s151 = sphi 0, %s135
  $region4: #{tpu_custom_call.1} parent=0 // loop_header_branch
    %14 = sbr.rel (%p12) target = $region8
  $region5: #{tpu_custom_call.1} parent=0 // loop_body
    %s16 = ssub.s32 %s11, 1
    %s17 = ssub.s32 %s11, 2
    %s18 = sadd.s32 %s11, 1
    %s19 = ssub.s32 %s11, %s18
    %p20 = scmp.eq.s32.totalorder %s19, 0
    %s22 = sadd.s32 %s21, 1
    %s23 = scalar_select %p20, %s21, %s22
    %p26 = pneg %p20
    %p27 = scmp.eq.s32.totalorder %s11, 1
    %p28 = por %p26, %p27
    %p29 = scmp.ne.s32.totalorder %s21, %s24
    %p30 = scmp.eq.s32.totalorder %s11, 0
    %p31 = por %p29, %p30
    %p32 = scmp.ne.s32.totalorder %s21, %s24
    %p33 = scmp.eq.s32.totalorder %s16, 1
    %p34 = por %p32, %p33
    %p35 = scmp.ne.s32.totalorder %s24, %s25
    %p36 = scmp.eq.s32.totalorder %s16, 0
    %p37 = por %p35, %p36
    %p38 = scmp.ne.s32.totalorder %s24, %s25
    %p39 = scmp.eq.s32.totalorder %s17, 1
    %p40 = por %p38, %p39
    %p42 = scmp.ne.s32.totalorder %s25, %s41
    %p43 = scmp.eq.s32.totalorder %s17, 0
    %p44 = por %p42, %p43
    %s46 = sadd.s32 %s45, 1
    %p49 = scmp.eq.s32.totalorder %s11, 1
    %p50 = scmp.ne.s32.totalorder %s45, %s47
    %p51 = scmp.eq.s32.totalorder %s11, 0
    %p52 = por %p50, %p51
    %p53 = scmp.ne.s32.totalorder %s45, %s47
    %p54 = scmp.eq.s32.totalorder %s16, 1
    %p55 = por %p53, %p54
    %p56 = scmp.ne.s32.totalorder %s47, %s48
    %p57 = scmp.eq.s32.totalorder %s16, 0
    %p58 = por %p56, %p57
    %p59 = scmp.ne.s32.totalorder %s47, %s48
    %p60 = scmp.eq.s32.totalorder %s17, 1
    %p61 = por %p59, %p60
    %p63 = scmp.ne.s32.totalorder %s48, %s62
    %p64 = scmp.eq.s32.totalorder %s17, 0
    %p65 = por %p63, %p64
    %s67 = sadd.s32 %s66, 1
    %p70 = scmp.eq.s32.totalorder %s11, 1
    %p71 = scmp.ne.s32.totalorder %s66, %s68
    %p72 = scmp.eq.s32.totalorder %s11, 0
    %p73 = por %p71, %p72
    %p74 = scmp.ne.s32.totalorder %s66, %s68
    %p75 = scmp.eq.s32.totalorder %s16, 1
    %p76 = por %p74, %p75
    %p77 = scmp.ne.s32.totalorder %s68, %s69
    %p78 = scmp.eq.s32.totalorder %s16, 0
    %p79 = por %p77, %p78
    %p80 = scmp.ne.s32.totalorder %s68, %s69
    %p81 = scmp.eq.s32.totalorder %s17, 1
    %p82 = por %p80, %p81
    %p84 = scmp.ne.s32.totalorder %s69, %s83
    %p85 = scmp.eq.s32.totalorder %s17, 0
    %p86 = por %p84, %p85
    %s88 = sadd.s32 %s87, 1
    %p91 = scmp.eq.s32.totalorder %s11, 1
    %p92 = scmp.ne.s32.totalorder %s87, %s89
    %p93 = scmp.eq.s32.totalorder %s11, 0
    %p94 = por %p92, %p93
    %p95 = scmp.ne.s32.totalorder %s87, %s89
    %p96 = scmp.eq.s32.totalorder %s16, 1
    %p97 = por %p95, %p96
    %p98 = scmp.ne.s32.totalorder %s89, %s90
    %p99 = scmp.eq.s32.totalorder %s16, 0
    %p100 = por %p98, %p99
    %p101 = scmp.ne.s32.totalorder %s89, %s90
    %p102 = scmp.eq.s32.totalorder %s17, 1
    %p103 = por %p101, %p102
    %p105 = scmp.ne.s32.totalorder %s90, %s104
    %p106 = scmp.eq.s32.totalorder %s17, 0
    %p107 = por %p105, %p106
    %s109 = sadd.s32 %s108, 1
    %p112 = scmp.eq.s32.totalorder %s11, 1
    %p113 = scmp.ne.s32.totalorder %s108, %s110
    %p114 = scmp.eq.s32.totalorder %s11, 0
    %p115 = por %p113, %p114
    %p116 = scmp.ne.s32.totalorder %s108, %s110
    %p117 = scmp.eq.s32.totalorder %s16, 1
    %p118 = por %p116, %p117
    %p119 = scmp.ne.s32.totalorder %s110, %s111
    %p120 = scmp.eq.s32.totalorder %s16, 0
    %p121 = por %p119, %p120
    %p122 = scmp.ne.s32.totalorder %s110, %s111
    %p123 = scmp.eq.s32.totalorder %s17, 1
    %p124 = por %p122, %p123
    %p126 = scmp.ne.s32.totalorder %s111, %s125
    %p127 = scmp.eq.s32.totalorder %s17, 0
    %p128 = por %p126, %p127
    %s129 = ssub.s32 %s11, %s18
    %p130 = scmp.eq.s32.totalorder %s129, 0
    %s132 = sadd.s32 %s131, 1
    %s133 = scalar_select %p130, %s131, %s132
    %p136 = pneg %p130
    %p137 = scmp.eq.s32.totalorder %s11, 1
    %p138 = por %p136, %p137
    %p139 = scmp.ne.s32.totalorder %s131, %s134
    %p140 = scmp.eq.s32.totalorder %s11, 0
    %p141 = por %p139, %p140
    %p142 = scmp.ne.s32.totalorder %s131, %s134
    %p143 = scmp.eq.s32.totalorder %s16, 1
    %p144 = por %p142, %p143
    %p145 = scmp.ne.s32.totalorder %s134, %s135
    %p146 = scmp.eq.s32.totalorder %s16, 0
    %p147 = por %p145, %p146
    %p148 = scmp.ne.s32.totalorder %s134, %s135
    %p149 = scmp.eq.s32.totalorder %s17, 1
    %p150 = por %p148, %p149
    %p152 = scmp.ne.s32.totalorder %s135, %s151
    %p153 = scmp.eq.s32.totalorder %s17, 0
    %p154 = por %p152, %p153
    %p155 = scmp.le.s32.totalorder 1, %s11
    %p156 = scmp.lt.s32.totalorder %s11, 3
    %p157 = pnand %p155, %p156
    %p158 = pneg %p157
    // Predicated region
    $region9: #{tpu_custom_call.1} parent=5 // pred_check
      _
    $region10: #{tpu_custom_call.1} parent=5 // pred_check_branch
      %160 = sbr.rel (%p157) target = $region12
    $region11: #{tpu_custom_call.1} parent=5 // pred_region
      %s161 = ssub.s32 %s11, 1
      // Predicated region
      $region13: #{tpu_custom_call.1} parent=11 // pred_check
        %p162 = pneg %p58
      $region14: #{tpu_custom_call.1} parent=11 // pred_check_branch
        %164 = sbr.rel (%p162) target = $region16
      $region15: #{tpu_custom_call.1} parent=11 // pred_region
        _
      $region16: #{tpu_custom_call.1} parent=11 // pred_fallthru
        _
      // Predicated region
      $region17: #{tpu_custom_call.1} parent=11 // pred_check
        %p165 = pneg %p79
      $region18: #{tpu_custom_call.1} parent=11 // pred_check_branch
        %167 = sbr.rel (%p165) target = $region20
      $region19: #{tpu_custom_call.1} parent=11 // pred_region
        _
      $region20: #{tpu_custom_call.1} parent=11 // pred_fallthru
        _
      // Predicated region
      $region21: #{tpu_custom_call.1} parent=11 // pred_check
        %p168 = pneg %p100
      $region22: #{tpu_custom_call.1} parent=11 // pred_check_branch
        %170 = sbr.rel (%p168) target = $region24
      $region23: #{tpu_custom_call.1} parent=11 // pred_region
        _
      $region24: #{tpu_custom_call.1} parent=11 // pred_fallthru
        _
      // Predicated region
      $region25: #{tpu_custom_call.1} parent=11 // pred_check
        %p171 = pneg %p121
      $region26: #{tpu_custom_call.1} parent=11 // pred_check_branch
        %173 = sbr.rel (%p171) target = $region28
      $region27: #{tpu_custom_call.1} parent=11 // pred_region
        _
      $region28: #{tpu_custom_call.1} parent=11 // pred_fallthru
        _
    $region12: #{tpu_custom_call.1} parent=5 // pred_fallthru
      _
    %p174 = scmp.lt.s32.totalorder %s11, 2
    // Predicated region
    $region29: #{tpu_custom_call.1} parent=5 // pred_check
      %p175 = pneg %p174
    $region30: #{tpu_custom_call.1} parent=5 // pred_check_branch
      %177 = sbr.rel (%p175) target = $region32
    $region31: #{tpu_custom_call.1} parent=5 // pred_region
      // Predicated region
      $region33: #{tpu_custom_call.1} parent=31 // pred_check
        %p178 = pneg %p31
      $region34: #{tpu_custom_call.1} parent=31 // pred_check_branch
        %180 = sbr.rel (%p178) target = $region36
      $region35: #{tpu_custom_call.1} parent=31 // pred_region
        %s181 = smul.u32 32, %s11
        %p182 = scmp.lt.s32.totalorder %s181, 63
        %s183 = scalar_select %p182, %s181, 63
        %s184 = smul.addr %s183, 8
        %s185 = scalar_lea.vmem %s0, %s184
        %s186 = smul.u32 32, %s11
      $region36: #{tpu_custom_call.1} parent=31 // pred_fallthru
        _
    $region32: #{tpu_custom_call.1} parent=5 // pred_fallthru
      _
    %p187 = scmp.le.s32.totalorder 1, %s11
    %p188 = scmp.lt.s32.totalorder %s11, 3
    %p189 = pnand %p187, %p188
    %p190 = pneg %p189
    // Predicated region
    $region37: #{tpu_custom_call.1} parent=5 // pred_check
      _
    $region38: #{tpu_custom_call.1} parent=5 // pred_check_branch
      %192 = sbr.rel (%p189) target = $region40
    $region39: #{tpu_custom_call.1} parent=5 // pred_region
      %s193 = ssub.s32 %s11, 1
      %s194 = smul.u32 32, %s16
      %p195 = scmp.lt.s32.totalorder %s194, 63
      %s196 = scalar_select %p195, %s194, 63
      %s197 = smul.addr %s196, 8
      %s198 = scalar_lea.vmem %s0, %s197
      %p199 = pneg %p37
      %p200 = pneg %p34
      %p201 = pneg %p58
      %p202 = pneg %p55
      %p203 = pneg %p79
      %p204 = pneg %p76
      %p205 = pneg %p100
      %p206 = pneg %p97
      %p207 = pneg %p121
      %p208 = pneg %p118
      %p209 = pneg %p147
      %p210 = pneg %p144
      %s211 = smul.u32 32, %s16
      %p212 = scmp.lt.s32.totalorder %s211, 63
      %s213 = scalar_select %p212, %s211, 63
      %s214 = smul.addr %s213, 8
      %s215 = scalar_lea.vmem %s5, %s214
      %s216 = smul.u32 32, %s16
      %p217 = scmp.lt.s32.totalorder %s216, 63
      %s218 = scalar_select %p217, %s216, 63
      %s219 = smul.addr %s218, 8
      %s220 = scalar_lea.vmem %s0, %s219
      %s221 = smul.u32 32, %s16
      %s222 = smul.u32 32, %s16
      %p223 = scmp.lt.s32.totalorder %s222, 63
      %s224 = scalar_select %p223, %s222, 63
      %s225 = smul.addr %s224, 8
      %s226 = scalar_lea.vmem %s5, %s225
      %s227 = smul.u32 32, %s16
      %v228 = vld [vmem:[%s220] sm:$0xff]
      %v229 = vld [vmem:[%s220 + $0x8] sm:$0xff]
      %v230 = vld [vmem:[%s220 + $0x10] sm:$0xff]
      %v231 = vld [vmem:[%s220 + $0x18] sm:$0xff]
      %v232 = vld [vmem:[%s220 + $0x20] sm:$0xff]
      %v233 = vld [vmem:[%s220 + $0x28] sm:$0xff]
      %v234 = vld [vmem:[%s220 + $0x30] sm:$0xff]
      %v235 = vld [vmem:[%s220 + $0x38] sm:$0xff]
      %v236 = vld [vmem:[%s220 + $0x40] sm:$0xff]
      %v237 = vld [vmem:[%s220 + $0x48] sm:$0xff]
      %v238 = vld [vmem:[%s220 + $0x50] sm:$0xff]
      %v239 = vld [vmem:[%s220 + $0x58] sm:$0xff]
      %v240 = vld [vmem:[%s220 + $0x60] sm:$0xff]
      %v241 = vld [vmem:[%s220 + $0x68] sm:$0xff]
      %v242 = vld [vmem:[%s220 + $0x70] sm:$0xff]
      %v243 = vld [vmem:[%s220 + $0x78] sm:$0xff]
      %v244 = vld [vmem:[%s220 + $0x80] sm:$0xff]
      %v245 = vld [vmem:[%s220 + $0x88] sm:$0xff]
      %v246 = vld [vmem:[%s220 + $0x90] sm:$0xff]
      %v247 = vld [vmem:[%s220 + $0x98] sm:$0xff]
      %v248 = vld [vmem:[%s220 + $0xa0] sm:$0xff]
      %v249 = vld [vmem:[%s220 + $0xa8] sm:$0xff]
      %v250 = vld [vmem:[%s220 + $0xb0] sm:$0xff]
      %v251 = vld [vmem:[%s220 + $0xb8] sm:$0xff]
      %v252 = vld [vmem:[%s220 + $0xc0] sm:$0xff]
      %v253 = vld [vmem:[%s220 + $0xc8] sm:$0xff]
      %v254 = vld [vmem:[%s220 + $0xd0] sm:$0xff]
      %v255 = vld [vmem:[%s220 + $0xd8] sm:$0xff]
      %v256 = vld [vmem:[%s220 + $0xe0] sm:$0xff]
      %v257 = vld [vmem:[%s220 + $0xe8] sm:$0xff]
      %v258 = vld [vmem:[%s220 + $0xf0] sm:$0xff]
      %v259 = vld [vmem:[%s220 + $0xf8] sm:$0xff]
      %v260 = vld [vmem:[%s4] sm:$0x3]
      %v261 = vld [vmem:[%s1] sm:$0xff]
      %v262 = vld [vmem:[%s1 + $0x8] sm:$0xff]
      %v263 = vld [vmem:[%s1 + $0x10] sm:$0xff]
      %v264 = vld [vmem:[%s1 + $0x18] sm:$0xff]
      %v265 = vld [vmem:[%s1 + $0x20] sm:$0xff]
      %v266 = vld [vmem:[%s1 + $0x28] sm:$0xff]
      %v267 = vld [vmem:[%s1 + $0x30] sm:$0xff]
      %v268 = vld [vmem:[%s1 + $0x38] sm:$0xff]
      %vm269 = vcmask 261120
      %v271 = vsel %vm269, %v228, 0
      %v274 = vsel %vm269, %v229, 0
      %v277 = vsel %vm269, %v230, 0
      %v280 = vsel %vm269, %v231, 0
      %v283 = vsel %vm269, %v232, 0
      %v286 = vsel %vm269, %v233, 0
      %v289 = vsel %vm269, %v234, 0
      %v292 = vsel %vm269, %v235, 0
      %v295 = vsel %vm269, %v236, 0
      %v298 = vsel %vm269, %v237, 0
      %v301 = vsel %vm269, %v238, 0
      %v304 = vsel %vm269, %v239, 0
      %v307 = vsel %vm269, %v240, 0
      %v310 = vsel %vm269, %v241, 0
      %v313 = vsel %vm269, %v242, 0
      %v316 = vsel %vm269, %v243, 0
      %v319 = vsel %vm269, %v244, 0
      %v322 = vsel %vm269, %v245, 0
      %v325 = vsel %vm269, %v246, 0
      %v328 = vsel %vm269, %v247, 0
      %v331 = vsel %vm269, %v248, 0
      %v334 = vsel %vm269, %v249, 0
      %v337 = vsel %vm269, %v250, 0
      %v340 = vsel %vm269, %v251, 0
      %v343 = vsel %vm269, %v252, 0
      %v346 = vsel %vm269, %v253, 0
      %v349 = vsel %vm269, %v254, 0
      %v352 = vsel %vm269, %v255, 0
      %v355 = vsel %vm269, %v256, 0
      %v358 = vsel %vm269, %v257, 0
      %v361 = vsel %vm269, %v258, 0
      %v364 = vsel %vm269, %v259, 0
      %366 = vmatpush.msra.mxu0 0.0
      %367 = vmatpush.msra.mxu0 0.0
      %368 = vmatpush.msra.mxu0 0.0
      %369 = vmatpush.msra.mxu0 0.0
      %370 = vmatpush.msra.mxu0 0.0
      %371 = vmatpush.msra.mxu0 0.0
      %372 = vmatpush.msra.mxu0 0.0
      %373 = vmatpush.msra.mxu0 0.0
      %374 = vmatpush.msra.mxu0 0.0
      %375 = vmatpush.msra.mxu0 0.0
      %376 = vmatpush.msra.mxu0 0.0
      %377 = vmatpush.msra.mxu0 0.0
      %378 = vmatpush.msra.mxu0 %v267
      %379 = vmatpush.msra.mxu0 %v265
      %380 = vmatpush.msra.mxu0 %v263
      %381 = vmatpush.msra.mxu0 %v261
      %382 = vmatmul.f32.gmra.mxu0 %v271
      %v383 = vpop.f32.mrf.mxu0
      %v384 = vadd.f32 0.0, %v383
      %385 = vmatmul.f32.gmra.mxu0 %v274
      %v386 = vpop.f32.mrf.mxu0
      %v387 = vadd.f32 0.0, %v386
      %388 = vmatmul.f32.gmra.mxu0 %v277
      %v389 = vpop.f32.mrf.mxu0
      %v390 = vadd.f32 0.0, %v389
      %391 = vmatmul.f32.gmra.mxu0 %v280
      %v392 = vpop.f32.mrf.mxu0
      %v393 = vadd.f32 0.0, %v392
      %394 = vmatmul.f32.gmra.mxu0 %v283
      %v395 = vpop.f32.mrf.mxu0
      %v396 = vadd.f32 0.0, %v395
      %397 = vmatmul.f32.gmra.mxu0 %v286
      %v398 = vpop.f32.mrf.mxu0
      %v399 = vadd.f32 0.0, %v398
      %400 = vmatmul.f32.gmra.mxu0 %v289
      %v401 = vpop.f32.mrf.mxu0
      %v402 = vadd.f32 0.0, %v401
      %403 = vmatmul.f32.gmra.mxu0 %v292
      %v404 = vpop.f32.mrf.mxu0
      %v405 = vadd.f32 0.0, %v404
      %406 = vmatmul.f32.gmra.mxu0 %v295
      %v407 = vpop.f32.mrf.mxu0
      %v408 = vadd.f32 0.0, %v407
      %409 = vmatmul.f32.gmra.mxu0 %v298
      %v410 = vpop.f32.mrf.mxu0
      %v411 = vadd.f32 0.0, %v410
      %412 = vmatmul.f32.gmra.mxu0 %v301
      %v413 = vpop.f32.mrf.mxu0
      %v414 = vadd.f32 0.0, %v413
      %415 = vmatmul.f32.gmra.mxu0 %v304
      %v416 = vpop.f32.mrf.mxu0
      %v417 = vadd.f32 0.0, %v416
      %418 = vmatmul.f32.gmra.mxu0 %v307
      %v419 = vpop.f32.mrf.mxu0
      %v420 = vadd.f32 0.0, %v419
      %421 = vmatmul.f32.gmra.mxu0 %v310
      %v422 = vpop.f32.mrf.mxu0
      %v423 = vadd.f32 0.0, %v422
      %424 = vmatmul.f32.gmra.mxu0 %v313
      %v425 = vpop.f32.mrf.mxu0
      %v426 = vadd.f32 0.0, %v425
      %427 = vmatmul.f32.gmra.mxu0 %v316
      %v428 = vpop.f32.mrf.mxu0
      %v429 = vadd.f32 0.0, %v428
      %430 = vmatmul.f32.gmra.mxu0 %v319
      %v431 = vpop.f32.mrf.mxu0
      %v432 = vadd.f32 0.0, %v431
      %433 = vmatmul.f32.gmra.mxu0 %v322
      %v434 = vpop.f32.mrf.mxu0
      %v435 = vadd.f32 0.0, %v434
      %436 = vmatmul.f32.gmra.mxu0 %v325
      %v437 = vpop.f32.mrf.mxu0
      %v438 = vadd.f32 0.0, %v437
      %439 = vmatmul.f32.gmra.mxu0 %v328
      %v440 = vpop.f32.mrf.mxu0
      %v441 = vadd.f32 0.0, %v440
      %442 = vmatmul.f32.gmra.mxu0 %v331
      %v443 = vpop.f32.mrf.mxu0
      %v444 = vadd.f32 0.0, %v443
      %445 = vmatmul.f32.gmra.mxu0 %v334
      %v446 = vpop.f32.mrf.mxu0
      %v447 = vadd.f32 0.0, %v446
      %448 = vmatmul.f32.gmra.mxu0 %v337
      %v449 = vpop.f32.mrf.mxu0
      %v450 = vadd.f32 0.0, %v449
      %451 = vmatmul.f32.gmra.mxu0 %v340
      %v452 = vpop.f32.mrf.mxu0
      %v453 = vadd.f32 0.0, %v452
      %454 = vmatmul.f32.gmra.mxu0 %v343
      %v455 = vpop.f32.mrf.mxu0
      %v456 = vadd.f32 0.0, %v455
      %457 = vmatmul.f32.gmra.mxu0 %v346
      %v458 = vpop.f32.mrf.mxu0
      %v459 = vadd.f32 0.0, %v458
      %460 = vmatmul.f32.gmra.mxu0 %v349
      %v461 = vpop.f32.mrf.mxu0
      %v462 = vadd.f32 0.0, %v461
      %463 = vmatmul.f32.gmra.mxu0 %v352
      %v464 = vpop.f32.mrf.mxu0
      %v465 = vadd.f32 0.0, %v464
      %466 = vmatmul.f32.gmra.mxu0 %v355
      %v467 = vpop.f32.mrf.mxu0
      %v468 = vadd.f32 0.0, %v467
      %469 = vmatmul.f32.gmra.mxu0 %v358
      %v470 = vpop.f32.mrf.mxu0
      %v471 = vadd.f32 0.0, %v470
      %472 = vmatmul.f32.gmra.mxu0 %v361
      %v473 = vpop.f32.mrf.mxu0
      %v474 = vadd.f32 0.0, %v473
      %475 = vmatmul.f32.gmra.mxu0 %v364
      %v476 = vpop.f32.mrf.mxu0
      %v477 = vadd.f32 0.0, %v476
      %478 = vdwg.mxu0
      %479 = vmatpush.msra.mxu0 0.0
      %480 = vmatpush.msra.mxu0 0.0
      %481 = vmatpush.msra.mxu0 0.0
      %482 = vmatpush.msra.mxu0 0.0
      %483 = vmatpush.msra.mxu0 0.0
      %484 = vmatpush.msra.mxu0 0.0
      %485 = vmatpush.msra.mxu0 0.0
      %486 = vmatpush.msra.mxu0 0.0
      %487 = vmatpush.msra.mxu0 0.0
      %488 = vmatpush.msra.mxu0 0.0
      %489 = vmatpush.msra.mxu0 0.0
      %490 = vmatpush.msra.mxu0 0.0
      %491 = vmatpush.msra.mxu0 %v268
      %492 = vmatpush.msra.mxu0 %v266
      %493 = vmatpush.msra.mxu0 %v264
      %494 = vmatpush.msra.mxu0 %v262
      %495 = vmatmul.f32.gmra.mxu0 %v271
      %v496 = vpop.f32.mrf.mxu0
      %v497 = vadd.f32 0.0, %v496
      %498 = vmatmul.f32.gmra.mxu0 %v274
      %v499 = vpop.f32.mrf.mxu0
      %v500 = vadd.f32 0.0, %v499
      %501 = vmatmul.f32.gmra.mxu0 %v277
      %v502 = vpop.f32.mrf.mxu0
      %v503 = vadd.f32 0.0, %v502
      %504 = vmatmul.f32.gmra.mxu0 %v280
      %v505 = vpop.f32.mrf.mxu0
      %v506 = vadd.f32 0.0, %v505
      %507 = vmatmul.f32.gmra.mxu0 %v283
      %v508 = vpop.f32.mrf.mxu0
      %v509 = vadd.f32 0.0, %v508
      %510 = vmatmul.f32.gmra.mxu0 %v286
      %v511 = vpop.f32.mrf.mxu0
      %v512 = vadd.f32 0.0, %v511
      %513 = vmatmul.f32.gmra.mxu0 %v289
      %v514 = vpop.f32.mrf.mxu0
      %v515 = vadd.f32 0.0, %v514
      %516 = vmatmul.f32.gmra.mxu0 %v292
      %v517 = vpop.f32.mrf.mxu0
      %v518 = vadd.f32 0.0, %v517
      %519 = vmatmul.f32.gmra.mxu0 %v295
      %v520 = vpop.f32.mrf.mxu0
      %v521 = vadd.f32 0.0, %v520
      %522 = vmatmul.f32.gmra.mxu0 %v298
      %v523 = vpop.f32.mrf.mxu0
      %v524 = vadd.f32 0.0, %v523
      %525 = vmatmul.f32.gmra.mxu0 %v301
      %v526 = vpop.f32.mrf.mxu0
      %v527 = vadd.f32 0.0, %v526
      %528 = vmatmul.f32.gmra.mxu0 %v304
      %v529 = vpop.f32.mrf.mxu0
      %v530 = vadd.f32 0.0, %v529
      %531 = vmatmul.f32.gmra.mxu0 %v307
      %v532 = vpop.f32.mrf.mxu0
      %v533 = vadd.f32 0.0, %v532
      %534 = vmatmul.f32.gmra.mxu0 %v310
      %v535 = vpop.f32.mrf.mxu0
      %v536 = vadd.f32 0.0, %v535
      %537 = vmatmul.f32.gmra.mxu0 %v313
      %v538 = vpop.f32.mrf.mxu0
      %v539 = vadd.f32 0.0, %v538
      %540 = vmatmul.f32.gmra.mxu0 %v316
      %v541 = vpop.f32.mrf.mxu0
      %v542 = vadd.f32 0.0, %v541
      %543 = vmatmul.f32.gmra.mxu0 %v319
      %v544 = vpop.f32.mrf.mxu0
      %v545 = vadd.f32 0.0, %v544
      %546 = vmatmul.f32.gmra.mxu0 %v322
      %v547 = vpop.f32.mrf.mxu0
      %v548 = vadd.f32 0.0, %v547
      %549 = vmatmul.f32.gmra.mxu0 %v325
      %v550 = vpop.f32.mrf.mxu0
      %v551 = vadd.f32 0.0, %v550
      %552 = vmatmul.f32.gmra.mxu0 %v328
      %v553 = vpop.f32.mrf.mxu0
      %v554 = vadd.f32 0.0, %v553
      %555 = vmatmul.f32.gmra.mxu0 %v331
      %v556 = vpop.f32.mrf.mxu0
      %v557 = vadd.f32 0.0, %v556
      %558 = vmatmul.f32.gmra.mxu0 %v334
      %v559 = vpop.f32.mrf.mxu0
      %v560 = vadd.f32 0.0, %v559
      %561 = vmatmul.f32.gmra.mxu0 %v337
      %v562 = vpop.f32.mrf.mxu0
      %v563 = vadd.f32 0.0, %v562
      %564 = vmatmul.f32.gmra.mxu0 %v340
      %v565 = vpop.f32.mrf.mxu0
      %v566 = vadd.f32 0.0, %v565
      %567 = vmatmul.f32.gmra.mxu0 %v343
      %v568 = vpop.f32.mrf.mxu0
      %v569 = vadd.f32 0.0, %v568
      %570 = vmatmul.f32.gmra.mxu0 %v346
      %v571 = vpop.f32.mrf.mxu0
      %v572 = vadd.f32 0.0, %v571
      %573 = vmatmul.f32.gmra.mxu0 %v349
      %v574 = vpop.f32.mrf.mxu0
      %v575 = vadd.f32 0.0, %v574
      %576 = vmatmul.f32.gmra.mxu0 %v352
      %v577 = vpop.f32.mrf.mxu0
      %v578 = vadd.f32 0.0, %v577
      %579 = vmatmul.f32.gmra.mxu0 %v355
      %v580 = vpop.f32.mrf.mxu0
      %v581 = vadd.f32 0.0, %v580
      %582 = vmatmul.f32.gmra.mxu0 %v358
      %v583 = vpop.f32.mrf.mxu0
      %v584 = vadd.f32 0.0, %v583
      %585 = vmatmul.f32.gmra.mxu0 %v361
      %v586 = vpop.f32.mrf.mxu0
      %v587 = vadd.f32 0.0, %v586
      %588 = vmatmul.f32.gmra.mxu0 %v364
      %v589 = vpop.f32.mrf.mxu0
      %v590 = vadd.f32 0.0, %v589
      %591 = vdwg.mxu0
      %v592 = vtanh.pop %v384
      %v593 = vtanh.pop %v387
      %v594 = vtanh.pop %v390
      %v595 = vtanh.pop %v393
      %v596 = vtanh.pop %v396
      %v597 = vtanh.pop %v399
      %v598 = vtanh.pop %v402
      %v599 = vtanh.pop %v405
      %v600 = vtanh.pop %v408
      %v601 = vtanh.pop %v411
      %v602 = vtanh.pop %v414
      %v603 = vtanh.pop %v417
      %v604 = vtanh.pop %v420
      %v605 = vtanh.pop %v423
      %v606 = vtanh.pop %v426
      %v607 = vtanh.pop %v429
      %v608 = vtanh.pop %v432
      %v609 = vtanh.pop %v435
      %v610 = vtanh.pop %v438
      %v611 = vtanh.pop %v441
      %v612 = vtanh.pop %v444
      %v613 = vtanh.pop %v447
      %v614 = vtanh.pop %v450
      %v615 = vtanh.pop %v453
      %v616 = vtanh.pop %v456
      %v617 = vtanh.pop %v459
      %v618 = vtanh.pop %v462
      %v619 = vtanh.pop %v465
      %v620 = vtanh.pop %v468
      %v621 = vtanh.pop %v471
      %v622 = vtanh.pop %v474
      %v623 = vtanh.pop %v477
      %624 = vmax.xlane.f32.xlu0 %v497
      %v625 = vpop.xlane.xlu0 %624
      %626 = vmax.xlane.f32.xlu0 %v500
      %v627 = vpop.xlane.xlu0 %626
      %628 = vmax.xlane.f32.xlu0 %v503
      %v629 = vpop.xlane.xlu0 %628
      %630 = vmax.xlane.f32.xlu0 %v506
      %v631 = vpop.xlane.xlu0 %630
      %632 = vmax.xlane.f32.xlu0 %v509
      %v633 = vpop.xlane.xlu0 %632
      %634 = vmax.xlane.f32.xlu0 %v512
      %v635 = vpop.xlane.xlu0 %634
      %636 = vmax.xlane.f32.xlu0 %v515
      %v637 = vpop.xlane.xlu0 %636
      %638 = vmax.xlane.f32.xlu0 %v518
      %v639 = vpop.xlane.xlu0 %638
      %640 = vmax.xlane.f32.xlu0 %v521
      %v641 = vpop.xlane.xlu0 %640
      %642 = vmax.xlane.f32.xlu0 %v524
      %v643 = vpop.xlane.xlu0 %642
      %644 = vmax.xlane.f32.xlu0 %v527
      %v645 = vpop.xlane.xlu0 %644
      %646 = vmax.xlane.f32.xlu0 %v530
      %v647 = vpop.xlane.xlu0 %646
      %648 = vmax.xlane.f32.xlu0 %v533
      %v649 = vpop.xlane.xlu0 %648
      %650 = vmax.xlane.f32.xlu0 %v536
      %v651 = vpop.xlane.xlu0 %650
      %652 = vmax.xlane.f32.xlu0 %v539
      %v653 = vpop.xlane.xlu0 %652
      %654 = vmax.xlane.f32.xlu0 %v542
      %v655 = vpop.xlane.xlu0 %654
      %656 = vmax.xlane.f32.xlu0 %v545
      %v657 = vpop.xlane.xlu0 %656
      %658 = vmax.xlane.f32.xlu0 %v548
      %v659 = vpop.xlane.xlu0 %658
      %660 = vmax.xlane.f32.xlu0 %v551
      %v661 = vpop.xlane.xlu0 %660
      %662 = vmax.xlane.f32.xlu0 %v554
      %v663 = vpop.xlane.xlu0 %662
      %664 = vmax.xlane.f32.xlu0 %v557
      %v665 = vpop.xlane.xlu0 %664
      %666 = vmax.xlane.f32.xlu0 %v560
      %v667 = vpop.xlane.xlu0 %666
      %668 = vmax.xlane.f32.xlu0 %v563
      %v669 = vpop.xlane.xlu0 %668
      %670 = vmax.xlane.f32.xlu0 %v566
      %v671 = vpop.xlane.xlu0 %670
      %672 = vmax.xlane.f32.xlu0 %v569
      %v673 = vpop.xlane.xlu0 %672
      %674 = vmax.xlane.f32.xlu0 %v572
      %v675 = vpop.xlane.xlu0 %674
      %676 = vmax.xlane.f32.xlu0 %v575
      %v677 = vpop.xlane.xlu0 %676
      %678 = vmax.xlane.f32.xlu0 %v578
      %v679 = vpop.xlane.xlu0 %678
      %680 = vmax.xlane.f32.xlu0 %v581
      %v681 = vpop.xlane.xlu0 %680
      %682 = vmax.xlane.f32.xlu0 %v584
      %v683 = vpop.xlane.xlu0 %682
      %684 = vmax.xlane.f32.xlu0 %v587
      %v685 = vpop.xlane.xlu0 %684
      %686 = vmax.xlane.f32.xlu0 %v590
      %v687 = vpop.xlane.xlu0 %686
      %v688 = vsub.f32 %v497, %v625
      %v689 = vsub.f32 %v500, %v627
      %v690 = vsub.f32 %v503, %v629
      %v691 = vsub.f32 %v506, %v631
      %v692 = vsub.f32 %v509, %v633
      %v693 = vsub.f32 %v512, %v635
      %v694 = vsub.f32 %v515, %v637
      %v695 = vsub.f32 %v518, %v639
      %v696 = vsub.f32 %v521, %v641
      %v697 = vsub.f32 %v524, %v643
      %v698 = vsub.f32 %v527, %v645
      %v699 = vsub.f32 %v530, %v647
      %v700 = vsub.f32 %v533, %v649
      %v701 = vsub.f32 %v536, %v651
      %v702 = vsub.f32 %v539, %v653
      %v703 = vsub.f32 %v542, %v655
      %v704 = vsub.f32 %v545, %v657
      %v705 = vsub.f32 %v548, %v659
      %v706 = vsub.f32 %v551, %v661
      %v707 = vsub.f32 %v554, %v663
      %v708 = vsub.f32 %v557, %v665
      %v709 = vsub.f32 %v560, %v667
      %v710 = vsub.f32 %v563, %v669
      %v711 = vsub.f32 %v566, %v671
      %v712 = vsub.f32 %v569, %v673
      %v713 = vsub.f32 %v572, %v675
      %v714 = vsub.f32 %v575, %v677
      %v715 = vsub.f32 %v578, %v679
      %v716 = vsub.f32 %v581, %v681
      %v717 = vsub.f32 %v584, %v683
      %v718 = vsub.f32 %v587, %v685
      %v719 = vsub.f32 %v590, %v687
      %v720 = vmul.f32 %v688, 1.442695
      %v721 = vpow.pop %v720
      %v722 = vmul.f32 %v689, 1.442695
      %v723 = vpow.pop %v722
      %v724 = vmul.f32 %v690, 1.442695
      %v725 = vpow.pop %v724
      %v726 = vmul.f32 %v691, 1.442695
      %v727 = vpow.pop %v726
      %v728 = vmul.f32 %v692, 1.442695
      %v729 = vpow.pop %v728
      %v730 = vmul.f32 %v693, 1.442695
      %v731 = vpow.pop %v730
      %v732 = vmul.f32 %v694, 1.442695
      %v733 = vpow.pop %v732
      %v734 = vmul.f32 %v695, 1.442695
      %v735 = vpow.pop %v734
      %v736 = vmul.f32 %v696, 1.442695
      %v737 = vpow.pop %v736
      %v738 = vmul.f32 %v697, 1.442695
      %v739 = vpow.pop %v738
      %v740 = vmul.f32 %v698, 1.442695
      %v741 = vpow.pop %v740
      %v742 = vmul.f32 %v699, 1.442695
      %v743 = vpow.pop %v742
      %v744 = vmul.f32 %v700, 1.442695
      %v745 = vpow.pop %v744
      %v746 = vmul.f32 %v701, 1.442695
      %v747 = vpow.pop %v746
      %v748 = vmul.f32 %v702, 1.442695
      %v749 = vpow.pop %v748
      %v750 = vmul.f32 %v703, 1.442695
      %v751 = vpow.pop %v750
      %v752 = vmul.f32 %v704, 1.442695
      %v753 = vpow.pop %v752
      %v754 = vmul.f32 %v705, 1.442695
      %v755 = vpow.pop %v754
      %v756 = vmul.f32 %v706, 1.442695
      %v757 = vpow.pop %v756
      %v758 = vmul.f32 %v707, 1.442695
      %v759 = vpow.pop %v758
      %v760 = vmul.f32 %v708, 1.442695
      %v761 = vpow.pop %v760
      %v762 = vmul.f32 %v709, 1.442695
      %v763 = vpow.pop %v762
      %v764 = vmul.f32 %v710, 1.442695
      %v765 = vpow.pop %v764
      %v766 = vmul.f32 %v711, 1.442695
      %v767 = vpow.pop %v766
      %v768 = vmul.f32 %v712, 1.442695
      %v769 = vpow.pop %v768
      %v770 = vmul.f32 %v713, 1.442695
      %v771 = vpow.pop %v770
      %v772 = vmul.f32 %v714, 1.442695
      %v773 = vpow.pop %v772
      %v774 = vmul.f32 %v715, 1.442695
      %v775 = vpow.pop %v774
      %v776 = vmul.f32 %v716, 1.442695
      %v777 = vpow.pop %v776
      %v778 = vmul.f32 %v717, 1.442695
      %v779 = vpow.pop %v778
      %v780 = vmul.f32 %v718, 1.442695
      %v781 = vpow.pop %v780
      %v782 = vmul.f32 %v719, 1.442695
      %v783 = vpow.pop %v782
      %784 = vadd.xlane.f32.xlu0 %v721
      %v785 = vpop.xlane.xlu0 %784
      %786 = vadd.xlane.f32.xlu0 %v723
      %v787 = vpop.xlane.xlu0 %786
      %788 = vadd.xlane.f32.xlu0 %v725
      %v789 = vpop.xlane.xlu0 %788
      %790 = vadd.xlane.f32.xlu0 %v727
      %v791 = vpop.xlane.xlu0 %790
      %792 = vadd.xlane.f32.xlu0 %v729
      %v793 = vpop.xlane.xlu0 %792
      %794 = vadd.xlane.f32.xlu0 %v731
      %v795 = vpop.xlane.xlu0 %794
      %796 = vadd.xlane.f32.xlu0 %v733
      %v797 = vpop.xlane.xlu0 %796
      %798 = vadd.xlane.f32.xlu0 %v735
      %v799 = vpop.xlane.xlu0 %798
      %800 = vadd.xlane.f32.xlu0 %v737
      %v801 = vpop.xlane.xlu0 %800
      %802 = vadd.xlane.f32.xlu0 %v739
      %v803 = vpop.xlane.xlu0 %802
      %804 = vadd.xlane.f32.xlu0 %v741
      %v805 = vpop.xlane.xlu0 %804
      %806 = vadd.xlane.f32.xlu0 %v743
      %v807 = vpop.xlane.xlu0 %806
      %808 = vadd.xlane.f32.xlu0 %v745
      %v809 = vpop.xlane.xlu0 %808
      %810 = vadd.xlane.f32.xlu0 %v747
      %v811 = vpop.xlane.xlu0 %810
      %812 = vadd.xlane.f32.xlu0 %v749
      %v813 = vpop.xlane.xlu0 %812
      %814 = vadd.xlane.f32.xlu0 %v751
      %v815 = vpop.xlane.xlu0 %814
      %816 = vadd.xlane.f32.xlu0 %v753
      %v817 = vpop.xlane.xlu0 %816
      %818 = vadd.xlane.f32.xlu0 %v755
      %v819 = vpop.xlane.xlu0 %818
      %820 = vadd.xlane.f32.xlu0 %v757
      %v821 = vpop.xlane.xlu0 %820
      %822 = vadd.xlane.f32.xlu0 %v759
      %v823 = vpop.xlane.xlu0 %822
      %824 = vadd.xlane.f32.xlu0 %v761
      %v825 = vpop.xlane.xlu0 %824
      %826 = vadd.xlane.f32.xlu0 %v763
      %v827 = vpop.xlane.xlu0 %826
      %828 = vadd.xlane.f32.xlu0 %v765
      %v829 = vpop.xlane.xlu0 %828
      %830 = vadd.xlane.f32.xlu0 %v767
      %v831 = vpop.xlane.xlu0 %830
      %832 = vadd.xlane.f32.xlu0 %v769
      %v833 = vpop.xlane.xlu0 %832
      %834 = vadd.xlane.f32.xlu0 %v771
      %v835 = vpop.xlane.xlu0 %834
      %836 = vadd.xlane.f32.xlu0 %v773
      %v837 = vpop.xlane.xlu0 %836
      %838 = vadd.xlane.f32.xlu0 %v775
      %v839 = vpop.xlane.xlu0 %838
      %840 = vadd.xlane.f32.xlu0 %v777
      %v841 = vpop.xlane.xlu0 %840
      %842 = vadd.xlane.f32.xlu0 %v779
      %v843 = vpop.xlane.xlu0 %842
      %844 = vadd.xlane.f32.xlu0 %v781
      %v845 = vpop.xlane.xlu0 %844
      %846 = vadd.xlane.f32.xlu0 %v783
      %v847 = vpop.xlane.xlu0 %846
      %v848 = vrcp.pop %v785
      %v849 = vmul.f32 %v785, %v848
      %v850 = vsub.f32 1.0, %v849
      %v851 = vmul.f32 %v848, %v850
      %v852 = vadd.f32 %v848, %v851
      %vm853 = vweird.f32 %v785
      %vm854 = vweird.f32 %v848
      %vm855 = vmor %vm853, %vm854
      %v856 = vsel %vm855, %v848, %v852
      %v857 = vand.u32 2147483647, %v785
      %vm858 = vcmp.eq.f32.partialorder %v857, 8.507059e+37
      %v859 = vand.u32 %v785, 2147483648
      %v860 = vor.u32 1.1754944e-38, %v859
      %v861 = vsel %vm858, %v860, %v856
      %v862 = vrcp.pop %v787
      %v863 = vmul.f32 %v787, %v862
      %v864 = vsub.f32 1.0, %v863
      %v865 = vmul.f32 %v862, %v864
      %v866 = vadd.f32 %v862, %v865
      %vm867 = vweird.f32 %v787
      %vm868 = vweird.f32 %v862
      %vm869 = vmor %vm867, %vm868
      %v870 = vsel %vm869, %v862, %v866
      %v871 = vand.u32 2147483647, %v787
      %vm872 = vcmp.eq.f32.partialorder %v871, 8.507059e+37
      %v873 = vand.u32 %v787, 2147483648
      %v874 = vor.u32 1.1754944e-38, %v873
      %v875 = vsel %vm872, %v874, %v870
      %v876 = vrcp.pop %v789
      %v877 = vmul.f32 %v789, %v876
      %v878 = vsub.f32 1.0, %v877
      %v879 = vmul.f32 %v876, %v878
      %v880 = vadd.f32 %v876, %v879
      %vm881 = vweird.f32 %v789
      %vm882 = vweird.f32 %v876
      %vm883 = vmor %vm881, %vm882
      %v884 = vsel %vm883, %v876, %v880
      %v885 = vand.u32 2147483647, %v789
      %vm886 = vcmp.eq.f32.partialorder %v885, 8.507059e+37
      %v887 = vand.u32 %v789, 2147483648
      %v888 = vor.u32 1.1754944e-38, %v887
      %v889 = vsel %vm886, %v888, %v884
      %v890 = vrcp.pop %v791
      %v891 = vmul.f32 %v791, %v890
      %v892 = vsub.f32 1.0, %v891
      %v893 = vmul.f32 %v890, %v892
      %v894 = vadd.f32 %v890, %v893
      %vm895 = vweird.f32 %v791
      %vm896 = vweird.f32 %v890
      %vm897 = vmor %vm895, %vm896
      %v898 = vsel %vm897, %v890, %v894
      %v899 = vand.u32 2147483647, %v791
      %vm900 = vcmp.eq.f32.partialorder %v899, 8.507059e+37
      %v901 = vand.u32 %v791, 2147483648
      %v902 = vor.u32 1.1754944e-38, %v901
      %v903 = vsel %vm900, %v902, %v898
      %v904 = vrcp.pop %v793
      %v905 = vmul.f32 %v793, %v904
      %v906 = vsub.f32 1.0, %v905
      %v907 = vmul.f32 %v904, %v906
      %v908 = vadd.f32 %v904, %v907
      %vm909 = vweird.f32 %v793
      %vm910 = vweird.f32 %v904
      %vm911 = vmor %vm909, %vm910
      %v912 = vsel %vm911, %v904, %v908
      %v913 = vand.u32 2147483647, %v793
      %vm914 = vcmp.eq.f32.partialorder %v913, 8.507059e+37
      %v915 = vand.u32 %v793, 2147483648
      %v916 = vor.u32 1.1754944e-38, %v915
      %v917 = vsel %vm914, %v916, %v912
      %v918 = vrcp.pop %v795
      %v919 = vmul.f32 %v795, %v918
      %v920 = vsub.f32 1.0, %v919
      %v921 = vmul.f32 %v918, %v920
      %v922 = vadd.f32 %v918, %v921
      %vm923 = vweird.f32 %v795
      %vm924 = vweird.f32 %v918
      %vm925 = vmor %vm923, %vm924
      %v926 = vsel %vm925, %v918, %v922
      %v927 = vand.u32 2147483647, %v795
      %vm928 = vcmp.eq.f32.partialorder %v927, 8.507059e+37
      %v929 = vand.u32 %v795, 2147483648
      %v930 = vor.u32 1.1754944e-38, %v929
      %v931 = vsel %vm928, %v930, %v926
      %v932 = vrcp.pop %v797
      %v933 = vmul.f32 %v797, %v932
      %v934 = vsub.f32 1.0, %v933
      %v935 = vmul.f32 %v932, %v934
      %v936 = vadd.f32 %v932, %v935
      %vm937 = vweird.f32 %v797
      %vm938 = vweird.f32 %v932
      %vm939 = vmor %vm937, %vm938
      %v940 = vsel %vm939, %v932, %v936
      %v941 = vand.u32 2147483647, %v797
      %vm942 = vcmp.eq.f32.partialorder %v941, 8.507059e+37
      %v943 = vand.u32 %v797, 2147483648
      %v944 = vor.u32 1.1754944e-38, %v943
      %v945 = vsel %vm942, %v944, %v940
      %v946 = vrcp.pop %v799
      %v947 = vmul.f32 %v799, %v946
      %v948 = vsub.f32 1.0, %v947
      %v949 = vmul.f32 %v946, %v948
      %v950 = vadd.f32 %v946, %v949
      %vm951 = vweird.f32 %v799
      %vm952 = vweird.f32 %v946
      %vm953 = vmor %vm951, %vm952
      %v954 = vsel %vm953, %v946, %v950
      %v955 = vand.u32 2147483647, %v799
      %vm956 = vcmp.eq.f32.partialorder %v955, 8.507059e+37
      %v957 = vand.u32 %v799, 2147483648
      %v958 = vor.u32 1.1754944e-38, %v957
      %v959 = vsel %vm956, %v958, %v954
      %v960 = vrcp.pop %v801
      %v961 = vmul.f32 %v801, %v960
      %v962 = vsub.f32 1.0, %v961
      %v963 = vmul.f32 %v960, %v962
      %v964 = vadd.f32 %v960, %v963
      %vm965 = vweird.f32 %v801
      %vm966 = vweird.f32 %v960
      %vm967 = vmor %vm965, %vm966
      %v968 = vsel %vm967, %v960, %v964
      %v969 = vand.u32 2147483647, %v801
      %vm970 = vcmp.eq.f32.partialorder %v969, 8.507059e+37
      %v971 = vand.u32 %v801, 2147483648
      %v972 = vor.u32 1.1754944e-38, %v971
      %v973 = vsel %vm970, %v972, %v968
      %v974 = vrcp.pop %v803
      %v975 = vmul.f32 %v803, %v974
      %v976 = vsub.f32 1.0, %v975
      %v977 = vmul.f32 %v974, %v976
      %v978 = vadd.f32 %v974, %v977
      %vm979 = vweird.f32 %v803
      %vm980 = vweird.f32 %v974
      %vm981 = vmor %vm979, %vm980
      %v982 = vsel %vm981, %v974, %v978
      %v983 = vand.u32 2147483647, %v803
      %vm984 = vcmp.eq.f32.partialorder %v983, 8.507059e+37
      %v985 = vand.u32 %v803, 2147483648
      %v986 = vor.u32 1.1754944e-38, %v985
      %v987 = vsel %vm984, %v986, %v982
      %v988 = vrcp.pop %v805
      %v989 = vmul.f32 %v805, %v988
      %v990 = vsub.f32 1.0, %v989
      %v991 = vmul.f32 %v988, %v990
      %v992 = vadd.f32 %v988, %v991
      %vm993 = vweird.f32 %v805
      %vm994 = vweird.f32 %v988
      %vm995 = vmor %vm993, %vm994
      %v996 = vsel %vm995, %v988, %v992
      %v997 = vand.u32 2147483647, %v805
      %vm998 = vcmp.eq.f32.partialorder %v997, 8.507059e+37
      %v999 = vand.u32 %v805, 2147483648
      %v1000 = vor.u32 1.1754944e-38, %v999
      %v1001 = vsel %vm998, %v1000, %v996
      %v1002 = vrcp.pop %v807
      %v1003 = vmul.f32 %v807, %v1002
      %v1004 = vsub.f32 1.0, %v1003
      %v1005 = vmul.f32 %v1002, %v1004
      %v1006 = vadd.f32 %v1002, %v1005
      %vm1007 = vweird.f32 %v807
      %vm1008 = vweird.f32 %v1002
      %vm1009 = vmor %vm1007, %vm1008
      %v1010 = vsel %vm1009, %v1002, %v1006
      %v1011 = vand.u32 2147483647, %v807
      %vm1012 = vcmp.eq.f32.partialorder %v1011, 8.507059e+37
      %v1013 = vand.u32 %v807, 2147483648
      %v1014 = vor.u32 1.1754944e-38, %v1013
      %v1015 = vsel %vm1012, %v1014, %v1010
      %v1016 = vrcp.pop %v809
      %v1017 = vmul.f32 %v809, %v1016
      %v1018 = vsub.f32 1.0, %v1017
      %v1019 = vmul.f32 %v1016, %v1018
      %v1020 = vadd.f32 %v1016, %v1019
      %vm1021 = vweird.f32 %v809
      %vm1022 = vweird.f32 %v1016
      %vm1023 = vmor %vm1021, %vm1022
      %v1024 = vsel %vm1023, %v1016, %v1020
      %v1025 = vand.u32 2147483647, %v809
      %vm1026 = vcmp.eq.f32.partialorder %v1025, 8.507059e+37
      %v1027 = vand.u32 %v809, 2147483648
      %v1028 = vor.u32 1.1754944e-38, %v1027
      %v1029 = vsel %vm1026, %v1028, %v1024
      %v1030 = vrcp.pop %v811
      %v1031 = vmul.f32 %v811, %v1030
      %v1032 = vsub.f32 1.0, %v1031
      %v1033 = vmul.f32 %v1030, %v1032
      %v1034 = vadd.f32 %v1030, %v1033
      %vm1035 = vweird.f32 %v811
      %vm1036 = vweird.f32 %v1030
      %vm1037 = vmor %vm1035, %vm1036
      %v1038 = vsel %vm1037, %v1030, %v1034
      %v1039 = vand.u32 2147483647, %v811
      %vm1040 = vcmp.eq.f32.partialorder %v1039, 8.507059e+37
      %v1041 = vand.u32 %v811, 2147483648
      %v1042 = vor.u32 1.1754944e-38, %v1041
      %v1043 = vsel %vm1040, %v1042, %v1038
      %v1044 = vrcp.pop %v813
      %v1045 = vmul.f32 %v813, %v1044
      %v1046 = vsub.f32 1.0, %v1045
      %v1047 = vmul.f32 %v1044, %v1046
      %v1048 = vadd.f32 %v1044, %v1047
      %vm1049 = vweird.f32 %v813
      %vm1050 = vweird.f32 %v1044
      %vm1051 = vmor %vm1049, %vm1050
      %v1052 = vsel %vm1051, %v1044, %v1048
      %v1053 = vand.u32 2147483647, %v813
      %vm1054 = vcmp.eq.f32.partialorder %v1053, 8.507059e+37
      %v1055 = vand.u32 %v813, 2147483648
      %v1056 = vor.u32 1.1754944e-38, %v1055
      %v1057 = vsel %vm1054, %v1056, %v1052
      %v1058 = vrcp.pop %v815
      %v1059 = vmul.f32 %v815, %v1058
      %v1060 = vsub.f32 1.0, %v1059
      %v1061 = vmul.f32 %v1058, %v1060
      %v1062 = vadd.f32 %v1058, %v1061
      %vm1063 = vweird.f32 %v815
      %vm1064 = vweird.f32 %v1058
      %vm1065 = vmor %vm1063, %vm1064
      %v1066 = vsel %vm1065, %v1058, %v1062
      %v1067 = vand.u32 2147483647, %v815
      %vm1068 = vcmp.eq.f32.partialorder %v1067, 8.507059e+37
      %v1069 = vand.u32 %v815, 2147483648
      %v1070 = vor.u32 1.1754944e-38, %v1069
      %v1071 = vsel %vm1068, %v1070, %v1066
      %v1072 = vrcp.pop %v817
      %v1073 = vmul.f32 %v817, %v1072
      %v1074 = vsub.f32 1.0, %v1073
      %v1075 = vmul.f32 %v1072, %v1074
      %v1076 = vadd.f32 %v1072, %v1075
      %vm1077 = vweird.f32 %v817
      %vm1078 = vweird.f32 %v1072
      %vm1079 = vmor %vm1077, %vm1078
      %v1080 = vsel %vm1079, %v1072, %v1076
      %v1081 = vand.u32 2147483647, %v817
      %vm1082 = vcmp.eq.f32.partialorder %v1081, 8.507059e+37
      %v1083 = vand.u32 %v817, 2147483648
      %v1084 = vor.u32 1.1754944e-38, %v1083
      %v1085 = vsel %vm1082, %v1084, %v1080
      %v1086 = vrcp.pop %v819
      %v1087 = vmul.f32 %v819, %v1086
      %v1088 = vsub.f32 1.0, %v1087
      %v1089 = vmul.f32 %v1086, %v1088
      %v1090 = vadd.f32 %v1086, %v1089
      %vm1091 = vweird.f32 %v819
      %vm1092 = vweird.f32 %v1086
      %vm1093 = vmor %vm1091, %vm1092
      %v1094 = vsel %vm1093, %v1086, %v1090
      %v1095 = vand.u32 2147483647, %v819
      %vm1096 = vcmp.eq.f32.partialorder %v1095, 8.507059e+37
      %v1097 = vand.u32 %v819, 2147483648
      %v1098 = vor.u32 1.1754944e-38, %v1097
      %v1099 = vsel %vm1096, %v1098, %v1094
      %v1100 = vrcp.pop %v821
      %v1101 = vmul.f32 %v821, %v1100
      %v1102 = vsub.f32 1.0, %v1101
      %v1103 = vmul.f32 %v1100, %v1102
      %v1104 = vadd.f32 %v1100, %v1103
      %vm1105 = vweird.f32 %v821
      %vm1106 = vweird.f32 %v1100
      %vm1107 = vmor %vm1105, %vm1106
      %v1108 = vsel %vm1107, %v1100, %v1104
      %v1109 = vand.u32 2147483647, %v821
      %vm1110 = vcmp.eq.f32.partialorder %v1109, 8.507059e+37
      %v1111 = vand.u32 %v821, 2147483648
      %v1112 = vor.u32 1.1754944e-38, %v1111
      %v1113 = vsel %vm1110, %v1112, %v1108
      %v1114 = vrcp.pop %v823
      %v1115 = vmul.f32 %v823, %v1114
      %v1116 = vsub.f32 1.0, %v1115
      %v1117 = vmul.f32 %v1114, %v1116
      %v1118 = vadd.f32 %v1114, %v1117
      %vm1119 = vweird.f32 %v823
      %vm1120 = vweird.f32 %v1114
      %vm1121 = vmor %vm1119, %vm1120
      %v1122 = vsel %vm1121, %v1114, %v1118
      %v1123 = vand.u32 2147483647, %v823
      %vm1124 = vcmp.eq.f32.partialorder %v1123, 8.507059e+37
      %v1125 = vand.u32 %v823, 2147483648
      %v1126 = vor.u32 1.1754944e-38, %v1125
      %v1127 = vsel %vm1124, %v1126, %v1122
      %v1128 = vrcp.pop %v825
      %v1129 = vmul.f32 %v825, %v1128
      %v1130 = vsub.f32 1.0, %v1129
      %v1131 = vmul.f32 %v1128, %v1130
      %v1132 = vadd.f32 %v1128, %v1131
      %vm1133 = vweird.f32 %v825
      %vm1134 = vweird.f32 %v1128
      %vm1135 = vmor %vm1133, %vm1134
      %v1136 = vsel %vm1135, %v1128, %v1132
      %v1137 = vand.u32 2147483647, %v825
      %vm1138 = vcmp.eq.f32.partialorder %v1137, 8.507059e+37
      %v1139 = vand.u32 %v825, 2147483648
      %v1140 = vor.u32 1.1754944e-38, %v1139
      %v1141 = vsel %vm1138, %v1140, %v1136
      %v1142 = vrcp.pop %v827
      %v1143 = vmul.f32 %v827, %v1142
      %v1144 = vsub.f32 1.0, %v1143
      %v1145 = vmul.f32 %v1142, %v1144
      %v1146 = vadd.f32 %v1142, %v1145
      %vm1147 = vweird.f32 %v827
      %vm1148 = vweird.f32 %v1142
      %vm1149 = vmor %vm1147, %vm1148
      %v1150 = vsel %vm1149, %v1142, %v1146
      %v1151 = vand.u32 2147483647, %v827
      %vm1152 = vcmp.eq.f32.partialorder %v1151, 8.507059e+37
      %v1153 = vand.u32 %v827, 2147483648
      %v1154 = vor.u32 1.1754944e-38, %v1153
      %v1155 = vsel %vm1152, %v1154, %v1150
      %v1156 = vrcp.pop %v829
      %v1157 = vmul.f32 %v829, %v1156
      %v1158 = vsub.f32 1.0, %v1157
      %v1159 = vmul.f32 %v1156, %v1158
      %v1160 = vadd.f32 %v1156, %v1159
      %vm1161 = vweird.f32 %v829
      %vm1162 = vweird.f32 %v1156
      %vm1163 = vmor %vm1161, %vm1162
      %v1164 = vsel %vm1163, %v1156, %v1160
      %v1165 = vand.u32 2147483647, %v829
      %vm1166 = vcmp.eq.f32.partialorder %v1165, 8.507059e+37
      %v1167 = vand.u32 %v829, 2147483648
      %v1168 = vor.u32 1.1754944e-38, %v1167
      %v1169 = vsel %vm1166, %v1168, %v1164
      %v1170 = vrcp.pop %v831
      %v1171 = vmul.f32 %v831, %v1170
      %v1172 = vsub.f32 1.0, %v1171
      %v1173 = vmul.f32 %v1170, %v1172
      %v1174 = vadd.f32 %v1170, %v1173
      %vm1175 = vweird.f32 %v831
      %vm1176 = vweird.f32 %v1170
      %vm1177 = vmor %vm1175, %vm1176
      %v1178 = vsel %vm1177, %v1170, %v1174
      %v1179 = vand.u32 2147483647, %v831
      %vm1180 = vcmp.eq.f32.partialorder %v1179, 8.507059e+37
      %v1181 = vand.u32 %v831, 2147483648
      %v1182 = vor.u32 1.1754944e-38, %v1181
      %v1183 = vsel %vm1180, %v1182, %v1178
      %v1184 = vrcp.pop %v833
      %v1185 = vmul.f32 %v833, %v1184
      %v1186 = vsub.f32 1.0, %v1185
      %v1187 = vmul.f32 %v1184, %v1186
      %v1188 = vadd.f32 %v1184, %v1187
      %vm1189 = vweird.f32 %v833
      %vm1190 = vweird.f32 %v1184
      %vm1191 = vmor %vm1189, %vm1190
      %v1192 = vsel %vm1191, %v1184, %v1188
      %v1193 = vand.u32 2147483647, %v833
      %vm1194 = vcmp.eq.f32.partialorder %v1193, 8.507059e+37
      %v1195 = vand.u32 %v833, 2147483648
      %v1196 = vor.u32 1.1754944e-38, %v1195
      %v1197 = vsel %vm1194, %v1196, %v1192
      %v1198 = vrcp.pop %v835
      %v1199 = vmul.f32 %v835, %v1198
      %v1200 = vsub.f32 1.0, %v1199
      %v1201 = vmul.f32 %v1198, %v1200
      %v1202 = vadd.f32 %v1198, %v1201
      %vm1203 = vweird.f32 %v835
      %vm1204 = vweird.f32 %v1198
      %vm1205 = vmor %vm1203, %vm1204
      %v1206 = vsel %vm1205, %v1198, %v1202
      %v1207 = vand.u32 2147483647, %v835
      %vm1208 = vcmp.eq.f32.partialorder %v1207, 8.507059e+37
      %v1209 = vand.u32 %v835, 2147483648
      %v1210 = vor.u32 1.1754944e-38, %v1209
      %v1211 = vsel %vm1208, %v1210, %v1206
      %v1212 = vrcp.pop %v837
      %v1213 = vmul.f32 %v837, %v1212
      %v1214 = vsub.f32 1.0, %v1213
      %v1215 = vmul.f32 %v1212, %v1214
      %v1216 = vadd.f32 %v1212, %v1215
      %vm1217 = vweird.f32 %v837
      %vm1218 = vweird.f32 %v1212
      %vm1219 = vmor %vm1217, %vm1218
      %v1220 = vsel %vm1219, %v1212, %v1216
      %v1221 = vand.u32 2147483647, %v837
      %vm1222 = vcmp.eq.f32.partialorder %v1221, 8.507059e+37
      %v1223 = vand.u32 %v837, 2147483648
      %v1224 = vor.u32 1.1754944e-38, %v1223
      %v1225 = vsel %vm1222, %v1224, %v1220
      %v1226 = vrcp.pop %v839
      %v1227 = vmul.f32 %v839, %v1226
      %v1228 = vsub.f32 1.0, %v1227
      %v1229 = vmul.f32 %v1226, %v1228
      %v1230 = vadd.f32 %v1226, %v1229
      %vm1231 = vweird.f32 %v839
      %vm1232 = vweird.f32 %v1226
      %vm1233 = vmor %vm1231, %vm1232
      %v1234 = vsel %vm1233, %v1226, %v1230
      %v1235 = vand.u32 2147483647, %v839
      %vm1236 = vcmp.eq.f32.partialorder %v1235, 8.507059e+37
      %v1237 = vand.u32 %v839, 2147483648
      %v1238 = vor.u32 1.1754944e-38, %v1237
      %v1239 = vsel %vm1236, %v1238, %v1234
      %v1240 = vrcp.pop %v841
      %v1241 = vmul.f32 %v841, %v1240
      %v1242 = vsub.f32 1.0, %v1241
      %v1243 = vmul.f32 %v1240, %v1242
      %v1244 = vadd.f32 %v1240, %v1243
      %vm1245 = vweird.f32 %v841
      %vm1246 = vweird.f32 %v1240
      %vm1247 = vmor %vm1245, %vm1246
      %v1248 = vsel %vm1247, %v1240, %v1244
      %v1249 = vand.u32 2147483647, %v841
      %vm1250 = vcmp.eq.f32.partialorder %v1249, 8.507059e+37
      %v1251 = vand.u32 %v841, 2147483648
      %v1252 = vor.u32 1.1754944e-38, %v1251
      %v1253 = vsel %vm1250, %v1252, %v1248
      %v1254 = vrcp.pop %v843
      %v1255 = vmul.f32 %v843, %v1254
      %v1256 = vsub.f32 1.0, %v1255
      %v1257 = vmul.f32 %v1254, %v1256
      %v1258 = vadd.f32 %v1254, %v1257
      %vm1259 = vweird.f32 %v843
      %vm1260 = vweird.f32 %v1254
      %vm1261 = vmor %vm1259, %vm1260
      %v1262 = vsel %vm1261, %v1254, %v1258
      %v1263 = vand.u32 2147483647, %v843
      %vm1264 = vcmp.eq.f32.partialorder %v1263, 8.507059e+37
      %v1265 = vand.u32 %v843, 2147483648
      %v1266 = vor.u32 1.1754944e-38, %v1265
      %v1267 = vsel %vm1264, %v1266, %v1262
      %v1268 = vrcp.pop %v845
      %v1269 = vmul.f32 %v845, %v1268
      %v1270 = vsub.f32 1.0, %v1269
      %v1271 = vmul.f32 %v1268, %v1270
      %v1272 = vadd.f32 %v1268, %v1271
      %vm1273 = vweird.f32 %v845
      %vm1274 = vweird.f32 %v1268
      %vm1275 = vmor %vm1273, %vm1274
      %v1276 = vsel %vm1275, %v1268, %v1272
      %v1277 = vand.u32 2147483647, %v845
      %vm1278 = vcmp.eq.f32.partialorder %v1277, 8.507059e+37
      %v1279 = vand.u32 %v845, 2147483648
      %v1280 = vor.u32 1.1754944e-38, %v1279
      %v1281 = vsel %vm1278, %v1280, %v1276
      %v1282 = vrcp.pop %v847
      %v1283 = vmul.f32 %v847, %v1282
      %v1284 = vsub.f32 1.0, %v1283
      %v1285 = vmul.f32 %v1282, %v1284
      %v1286 = vadd.f32 %v1282, %v1285
      %vm1287 = vweird.f32 %v847
      %vm1288 = vweird.f32 %v1282
      %vm1289 = vmor %vm1287, %vm1288
      %v1290 = vsel %vm1289, %v1282, %v1286
      %v1291 = vand.u32 2147483647, %v847
      %vm1292 = vcmp.eq.f32.partialorder %v1291, 8.507059e+37
      %v1293 = vand.u32 %v847, 2147483648
      %v1294 = vor.u32 1.1754944e-38, %v1293
      %v1295 = vsel %vm1292, %v1294, %v1290
      %v1296 = vmul.f32 %v861, 32.0
      %v1297 = vmul.f32 %v875, 32.0
      %v1298 = vmul.f32 %v889, 32.0
      %v1299 = vmul.f32 %v903, 32.0
      %v1300 = vmul.f32 %v917, 32.0
      %v1301 = vmul.f32 %v931, 32.0
      %v1302 = vmul.f32 %v945, 32.0
      %v1303 = vmul.f32 %v959, 32.0
      %v1304 = vmul.f32 %v973, 32.0
      %v1305 = vmul.f32 %v987, 32.0
      %v1306 = vmul.f32 %v1001, 32.0
      %v1307 = vmul.f32 %v1015, 32.0
      %v1308 = vmul.f32 %v1029, 32.0
      %v1309 = vmul.f32 %v1043, 32.0
      %v1310 = vmul.f32 %v1057, 32.0
      %v1311 = vmul.f32 %v1071, 32.0
      %v1312 = vmul.f32 %v1085, 32.0
      %v1313 = vmul.f32 %v1099, 32.0
      %v1314 = vmul.f32 %v1113, 32.0
      %v1315 = vmul.f32 %v1127, 32.0
      %v1316 = vmul.f32 %v1141, 32.0
      %v1317 = vmul.f32 %v1155, 32.0
      %v1318 = vmul.f32 %v1169, 32.0
      %v1319 = vmul.f32 %v1183, 32.0
      %v1320 = vmul.f32 %v1197, 32.0
      %v1321 = vmul.f32 %v1211, 32.0
      %v1322 = vmul.f32 %v1225, 32.0
      %v1323 = vmul.f32 %v1239, 32.0
      %v1324 = vmul.f32 %v1253, 32.0
      %v1325 = vmul.f32 %v1267, 32.0
      %v1326 = vmul.f32 %v1281, 32.0
      %v1327 = vmul.f32 %v1295, 32.0
      %v1328 = vmul.f32 %v721, %v1296
      %v1329 = vmul.f32 %v723, %v1297
      %v1330 = vmul.f32 %v725, %v1298
      %v1331 = vmul.f32 %v727, %v1299
      %v1332 = vmul.f32 %v729, %v1300
      %v1333 = vmul.f32 %v731, %v1301
      %v1334 = vmul.f32 %v733, %v1302
      %v1335 = vmul.f32 %v735, %v1303
      %v1336 = vmul.f32 %v737, %v1304
      %v1337 = vmul.f32 %v739, %v1305
      %v1338 = vmul.f32 %v741, %v1306
      %v1339 = vmul.f32 %v743, %v1307
      %v1340 = vmul.f32 %v745, %v1308
      %v1341 = vmul.f32 %v747, %v1309
      %v1342 = vmul.f32 %v749, %v1310
      %v1343 = vmul.f32 %v751, %v1311
      %v1344 = vmul.f32 %v753, %v1312
      %v1345 = vmul.f32 %v755, %v1313
      %v1346 = vmul.f32 %v757, %v1314
      %v1347 = vmul.f32 %v759, %v1315
      %v1348 = vmul.f32 %v761, %v1316
      %v1349 = vmul.f32 %v763, %v1317
      %v1350 = vmul.f32 %v765, %v1318
      %v1351 = vmul.f32 %v767, %v1319
      %v1352 = vmul.f32 %v769, %v1320
      %v1353 = vmul.f32 %v771, %v1321
      %v1354 = vmul.f32 %v773, %v1322
      %v1355 = vmul.f32 %v775, %v1323
      %v1356 = vmul.f32 %v777, %v1324
      %v1357 = vmul.f32 %v779, %v1325
      %v1358 = vmul.f32 %v781, %v1326
      %v1359 = vmul.f32 %v783, %v1327
      %v1360 = vld [vmem:[%s2] sm:$0xff]
      %v1361 = vld [vmem:[%s2 + $0x8] sm:$0xff]
      %v1362 = vld [vmem:[%s2 + $0x10] sm:$0xff]
      %v1363 = vld [vmem:[%s2 + $0x18] sm:$0xff]
      %v1364 = vld [vmem:[%s2 + $0x20] sm:$0xff]
      %v1365 = vld [vmem:[%s2 + $0x28] sm:$0xff]
      %v1366 = vld [vmem:[%s2 + $0x30] sm:$0xff]
      %v1367 = vld [vmem:[%s2 + $0x38] sm:$0xff]
      %v1368 = vld [vmem:[%s2 + $0x40] sm:$0xff]
      %v1369 = vld [vmem:[%s2 + $0x48] sm:$0xff]
      %v1370 = vld [vmem:[%s2 + $0x50] sm:$0xff]
      %v1371 = vld [vmem:[%s2 + $0x58] sm:$0xff]
      %v1372 = vld [vmem:[%s2 + $0x60] sm:$0xff]
      %v1373 = vld [vmem:[%s2 + $0x68] sm:$0xff]
      %v1374 = vld [vmem:[%s2 + $0x70] sm:$0xff]
      %v1375 = vld [vmem:[%s2 + $0x78] sm:$0xff]
      %1376 = vmatpush.msra.mxu0 %v1375
      %1377 = vmatpush.msra.mxu0 %v1374
      %1378 = vmatpush.msra.mxu0 %v1373
      %1379 = vmatpush.msra.mxu0 %v1372
      %1380 = vmatpush.msra.mxu0 %v1371
      %1381 = vmatpush.msra.mxu0 %v1370
      %1382 = vmatpush.msra.mxu0 %v1369
      %1383 = vmatpush.msra.mxu0 %v1368
      %1384 = vmatpush.msra.mxu0 %v1367
      %1385 = vmatpush.msra.mxu0 %v1366
      %1386 = vmatpush.msra.mxu0 %v1365
      %1387 = vmatpush.msra.mxu0 %v1364
      %1388 = vmatpush.msra.mxu0 %v1363
      %1389 = vmatpush.msra.mxu0 %v1362
      %1390 = vmatpush.msra.mxu0 %v1361
      %1391 = vmatpush.msra.mxu0 %v1360
      %1392 = vmatmul.f32.gmra.mxu0 %v592
      %v1393 = vpop.f32.mrf.mxu0
      %v1394 = vadd.f32 0.0, %v1393
      %1395 = vmatmul.f32.gmra.mxu0 %v593
      %v1396 = vpop.f32.mrf.mxu0
      %v1397 = vadd.f32 0.0, %v1396
      %1398 = vmatmul.f32.gmra.mxu0 %v594
      %v1399 = vpop.f32.mrf.mxu0
      %v1400 = vadd.f32 0.0, %v1399
      %1401 = vmatmul.f32.gmra.mxu0 %v595
      %v1402 = vpop.f32.mrf.mxu0
      %v1403 = vadd.f32 0.0, %v1402
      %1404 = vmatmul.f32.gmra.mxu0 %v596
      %v1405 = vpop.f32.mrf.mxu0
      %v1406 = vadd.f32 0.0, %v1405
      %1407 = vmatmul.f32.gmra.mxu0 %v597
      %v1408 = vpop.f32.mrf.mxu0
      %v1409 = vadd.f32 0.0, %v1408
      %1410 = vmatmul.f32.gmra.mxu0 %v598
      %v1411 = vpop.f32.mrf.mxu0
      %v1412 = vadd.f32 0.0, %v1411
      %1413 = vmatmul.f32.gmra.mxu0 %v599
      %v1414 = vpop.f32.mrf.mxu0
      %v1415 = vadd.f32 0.0, %v1414
      %1416 = vmatmul.f32.gmra.mxu0 %v600
      %v1417 = vpop.f32.mrf.mxu0
      %v1418 = vadd.f32 0.0, %v1417
      %1419 = vmatmul.f32.gmra.mxu0 %v601
      %v1420 = vpop.f32.mrf.mxu0
      %v1421 = vadd.f32 0.0, %v1420
      %1422 = vmatmul.f32.gmra.mxu0 %v602
      %v1423 = vpop.f32.mrf.mxu0
      %v1424 = vadd.f32 0.0, %v1423
      %1425 = vmatmul.f32.gmra.mxu0 %v603
      %v1426 = vpop.f32.mrf.mxu0
      %v1427 = vadd.f32 0.0, %v1426
      %1428 = vmatmul.f32.gmra.mxu0 %v604
      %v1429 = vpop.f32.mrf.mxu0
      %v1430 = vadd.f32 0.0, %v1429
      %1431 = vmatmul.f32.gmra.mxu0 %v605
      %v1432 = vpop.f32.mrf.mxu0
      %v1433 = vadd.f32 0.0, %v1432
      %1434 = vmatmul.f32.gmra.mxu0 %v606
      %v1435 = vpop.f32.mrf.mxu0
      %v1436 = vadd.f32 0.0, %v1435
      %1437 = vmatmul.f32.gmra.mxu0 %v607
      %v1438 = vpop.f32.mrf.mxu0
      %v1439 = vadd.f32 0.0, %v1438
      %1440 = vmatmul.f32.gmra.mxu0 %v608
      %v1441 = vpop.f32.mrf.mxu0
      %v1442 = vadd.f32 0.0, %v1441
      %1443 = vmatmul.f32.gmra.mxu0 %v609
      %v1444 = vpop.f32.mrf.mxu0
      %v1445 = vadd.f32 0.0, %v1444
      %1446 = vmatmul.f32.gmra.mxu0 %v610
      %v1447 = vpop.f32.mrf.mxu0
      %v1448 = vadd.f32 0.0, %v1447
      %1449 = vmatmul.f32.gmra.mxu0 %v611
      %v1450 = vpop.f32.mrf.mxu0
      %v1451 = vadd.f32 0.0, %v1450
      %1452 = vmatmul.f32.gmra.mxu0 %v612
      %v1453 = vpop.f32.mrf.mxu0
      %v1454 = vadd.f32 0.0, %v1453
      %1455 = vmatmul.f32.gmra.mxu0 %v613
      %v1456 = vpop.f32.mrf.mxu0
      %v1457 = vadd.f32 0.0, %v1456
      %1458 = vmatmul.f32.gmra.mxu0 %v614
      %v1459 = vpop.f32.mrf.mxu0
      %v1460 = vadd.f32 0.0, %v1459
      %1461 = vmatmul.f32.gmra.mxu0 %v615
      %v1462 = vpop.f32.mrf.mxu0
      %v1463 = vadd.f32 0.0, %v1462
      %1464 = vmatmul.f32.gmra.mxu0 %v616
      %v1465 = vpop.f32.mrf.mxu0
      %v1466 = vadd.f32 0.0, %v1465
      %1467 = vmatmul.f32.gmra.mxu0 %v617
      %v1468 = vpop.f32.mrf.mxu0
      %v1469 = vadd.f32 0.0, %v1468
      %1470 = vmatmul.f32.gmra.mxu0 %v618
      %v1471 = vpop.f32.mrf.mxu0
      %v1472 = vadd.f32 0.0, %v1471
      %1473 = vmatmul.f32.gmra.mxu0 %v619
      %v1474 = vpop.f32.mrf.mxu0
      %v1475 = vadd.f32 0.0, %v1474
      %1476 = vmatmul.f32.gmra.mxu0 %v620
      %v1477 = vpop.f32.mrf.mxu0
      %v1478 = vadd.f32 0.0, %v1477
      %1479 = vmatmul.f32.gmra.mxu0 %v621
      %v1480 = vpop.f32.mrf.mxu0
      %v1481 = vadd.f32 0.0, %v1480
      %1482 = vmatmul.f32.gmra.mxu0 %v622
      %v1483 = vpop.f32.mrf.mxu0
      %v1484 = vadd.f32 0.0, %v1483
      %1485 = vmatmul.f32.gmra.mxu0 %v623
      %v1486 = vpop.f32.mrf.mxu0
      %v1487 = vadd.f32 0.0, %v1486
      %1488 = vdwg.mxu0
      %v1489 = vtanh.pop %v1394
      %v1490 = vtanh.pop %v1397
      %v1491 = vtanh.pop %v1400
      %v1492 = vtanh.pop %v1403
      %v1493 = vtanh.pop %v1406
      %v1494 = vtanh.pop %v1409
      %v1495 = vtanh.pop %v1412
      %v1496 = vtanh.pop %v1415
      %v1497 = vtanh.pop %v1418
      %v1498 = vtanh.pop %v1421
      %v1499 = vtanh.pop %v1424
      %v1500 = vtanh.pop %v1427
      %v1501 = vtanh.pop %v1430
      %v1502 = vtanh.pop %v1433
      %v1503 = vtanh.pop %v1436
      %v1504 = vtanh.pop %v1439
      %v1505 = vtanh.pop %v1442
      %v1506 = vtanh.pop %v1445
      %v1507 = vtanh.pop %v1448
      %v1508 = vtanh.pop %v1451
      %v1509 = vtanh.pop %v1454
      %v1510 = vtanh.pop %v1457
      %v1511 = vtanh.pop %v1460
      %v1512 = vtanh.pop %v1463
      %v1513 = vtanh.pop %v1466
      %v1514 = vtanh.pop %v1469
      %v1515 = vtanh.pop %v1472
      %v1516 = vtanh.pop %v1475
      %v1517 = vtanh.pop %v1478
      %v1518 = vtanh.pop %v1481
      %v1519 = vtanh.pop %v1484
      %v1520 = vtanh.pop %v1487
      %v1521 = vmul.f32 %v1489, %v1328
      %v1522 = vmul.f32 %v1490, %v1329
      %v1523 = vmul.f32 %v1491, %v1330
      %v1524 = vmul.f32 %v1492, %v1331
      %v1525 = vmul.f32 %v1493, %v1332
      %v1526 = vmul.f32 %v1494, %v1333
      %v1527 = vmul.f32 %v1495, %v1334
      %v1528 = vmul.f32 %v1496, %v1335
      %v1529 = vmul.f32 %v1497, %v1336
      %v1530 = vmul.f32 %v1498, %v1337
      %v1531 = vmul.f32 %v1499, %v1338
      %v1532 = vmul.f32 %v1500, %v1339
      %v1533 = vmul.f32 %v1501, %v1340
      %v1534 = vmul.f32 %v1502, %v1341
      %v1535 = vmul.f32 %v1503, %v1342
      %v1536 = vmul.f32 %v1504, %v1343
      %v1537 = vmul.f32 %v1505, %v1344
      %v1538 = vmul.f32 %v1506, %v1345
      %v1539 = vmul.f32 %v1507, %v1346
      %v1540 = vmul.f32 %v1508, %v1347
      %v1541 = vmul.f32 %v1509, %v1348
      %v1542 = vmul.f32 %v1510, %v1349
      %v1543 = vmul.f32 %v1511, %v1350
      %v1544 = vmul.f32 %v1512, %v1351
      %v1545 = vmul.f32 %v1513, %v1352
      %v1546 = vmul.f32 %v1514, %v1353
      %v1547 = vmul.f32 %v1515, %v1354
      %v1548 = vmul.f32 %v1516, %v1355
      %v1549 = vmul.f32 %v1517, %v1356
      %v1550 = vmul.f32 %v1518, %v1357
      %v1551 = vmul.f32 %v1519, %v1358
      %v1552 = vmul.f32 %v1520, %v1359
      %v1553 = vld [vmem:[%s3] sm:$0xff]
      %v1554 = vld [vmem:[%s3 + $0x8] sm:$0xff]
      %v1555 = vld [vmem:[%s3 + $0x10] sm:$0xff]
      %v1556 = vld [vmem:[%s3 + $0x18] sm:$0xff]
      %v1557 = vld [vmem:[%s3 + $0x20] sm:$0xff]
      %v1558 = vld [vmem:[%s3 + $0x28] sm:$0xff]
      %v1559 = vld [vmem:[%s3 + $0x30] sm:$0xff]
      %v1560 = vld [vmem:[%s3 + $0x38] sm:$0xff]
      %v1561 = vld [vmem:[%s3 + $0x40] sm:$0xff]
      %v1562 = vld [vmem:[%s3 + $0x48] sm:$0xff]
      %v1563 = vld [vmem:[%s3 + $0x50] sm:$0xff]
      %v1564 = vld [vmem:[%s3 + $0x58] sm:$0xff]
      %v1565 = vld [vmem:[%s3 + $0x60] sm:$0xff]
      %v1566 = vld [vmem:[%s3 + $0x68] sm:$0xff]
      %v1567 = vld [vmem:[%s3 + $0x70] sm:$0xff]
      %v1568 = vld [vmem:[%s3 + $0x78] sm:$0xff]
      %v1569 = vperm.slane %v260, 0
      %1570 = vmatpush.msra.mxu0 %v1568
      %1571 = vmatpush.msra.mxu0 %v1567
      %1572 = vmatpush.msra.mxu0 %v1566
      %1573 = vmatpush.msra.mxu0 %v1565
      %1574 = vmatpush.msra.mxu0 %v1564
      %1575 = vmatpush.msra.mxu0 %v1563
      %1576 = vmatpush.msra.mxu0 %v1562
      %1577 = vmatpush.msra.mxu0 %v1561
      %1578 = vmatpush.msra.mxu0 %v1560
      %1579 = vmatpush.msra.mxu0 %v1559
      %1580 = vmatpush.msra.mxu0 %v1558
      %1581 = vmatpush.msra.mxu0 %v1557
      %1582 = vmatpush.msra.mxu0 %v1556
      %1583 = vmatpush.msra.mxu0 %v1555
      %1584 = vmatpush.msra.mxu0 %v1554
      %1585 = vmatpush.msra.mxu0 %v1553
      %1586 = vmatmul.f32.gmra.mxu0 %v1521
      %v1587 = vpop.f32.mrf.mxu0
      %v1588 = vadd.f32 %v1569, %v1587
      %1589 = vmatmul.f32.gmra.mxu0 %v1522
      %v1590 = vpop.f32.mrf.mxu0
      %v1591 = vadd.f32 %v1569, %v1590
      %1592 = vmatmul.f32.gmra.mxu0 %v1523
      %v1593 = vpop.f32.mrf.mxu0
      %v1594 = vadd.f32 %v1569, %v1593
      %1595 = vmatmul.f32.gmra.mxu0 %v1524
      %v1596 = vpop.f32.mrf.mxu0
      %v1597 = vadd.f32 %v1569, %v1596
      %1598 = vmatmul.f32.gmra.mxu0 %v1525
      %v1599 = vpop.f32.mrf.mxu0
      %v1600 = vadd.f32 %v1569, %v1599
      %1601 = vmatmul.f32.gmra.mxu0 %v1526
      %v1602 = vpop.f32.mrf.mxu0
      %v1603 = vadd.f32 %v1569, %v1602
      %1604 = vmatmul.f32.gmra.mxu0 %v1527
      %v1605 = vpop.f32.mrf.mxu0
      %v1606 = vadd.f32 %v1569, %v1605
      %1607 = vmatmul.f32.gmra.mxu0 %v1528
      %v1608 = vpop.f32.mrf.mxu0
      %v1609 = vadd.f32 %v1569, %v1608
      %1610 = vmatmul.f32.gmra.mxu0 %v1529
      %v1611 = vpop.f32.mrf.mxu0
      %v1612 = vadd.f32 %v1569, %v1611
      %1613 = vmatmul.f32.gmra.mxu0 %v1530
      %v1614 = vpop.f32.mrf.mxu0
      %v1615 = vadd.f32 %v1569, %v1614
      %1616 = vmatmul.f32.gmra.mxu0 %v1531
      %v1617 = vpop.f32.mrf.mxu0
      %v1618 = vadd.f32 %v1569, %v1617
      %1619 = vmatmul.f32.gmra.mxu0 %v1532
      %v1620 = vpop.f32.mrf.mxu0
      %v1621 = vadd.f32 %v1569, %v1620
      %1622 = vmatmul.f32.gmra.mxu0 %v1533
      %v1623 = vpop.f32.mrf.mxu0
      %v1624 = vadd.f32 %v1569, %v1623
      %1625 = vmatmul.f32.gmra.mxu0 %v1534
      %v1626 = vpop.f32.mrf.mxu0
      %v1627 = vadd.f32 %v1569, %v1626
      %1628 = vmatmul.f32.gmra.mxu0 %v1535
      %v1629 = vpop.f32.mrf.mxu0
      %v1630 = vadd.f32 %v1569, %v1629
      %1631 = vmatmul.f32.gmra.mxu0 %v1536
      %v1632 = vpop.f32.mrf.mxu0
      %v1633 = vadd.f32 %v1569, %v1632
      %1634 = vmatmul.f32.gmra.mxu0 %v1537
      %v1635 = vpop.f32.mrf.mxu0
      %v1636 = vadd.f32 %v1569, %v1635
      %1637 = vmatmul.f32.gmra.mxu0 %v1538
      %v1638 = vpop.f32.mrf.mxu0
      %v1639 = vadd.f32 %v1569, %v1638
      %1640 = vmatmul.f32.gmra.mxu0 %v1539
      %v1641 = vpop.f32.mrf.mxu0
      %v1642 = vadd.f32 %v1569, %v1641
      %1643 = vmatmul.f32.gmra.mxu0 %v1540
      %v1644 = vpop.f32.mrf.mxu0
      %v1645 = vadd.f32 %v1569, %v1644
      %1646 = vmatmul.f32.gmra.mxu0 %v1541
      %v1647 = vpop.f32.mrf.mxu0
      %v1648 = vadd.f32 %v1569, %v1647
      %1649 = vmatmul.f32.gmra.mxu0 %v1542
      %v1650 = vpop.f32.mrf.mxu0
      %v1651 = vadd.f32 %v1569, %v1650
      %1652 = vmatmul.f32.gmra.mxu0 %v1543
      %v1653 = vpop.f32.mrf.mxu0
      %v1654 = vadd.f32 %v1569, %v1653
      %1655 = vmatmul.f32.gmra.mxu0 %v1544
      %v1656 = vpop.f32.mrf.mxu0
      %v1657 = vadd.f32 %v1569, %v1656
      %1658 = vmatmul.f32.gmra.mxu0 %v1545
      %v1659 = vpop.f32.mrf.mxu0
      %v1660 = vadd.f32 %v1569, %v1659
      %1661 = vmatmul.f32.gmra.mxu0 %v1546
      %v1662 = vpop.f32.mrf.mxu0
      %v1663 = vadd.f32 %v1569, %v1662
      %1664 = vmatmul.f32.gmra.mxu0 %v1547
      %v1665 = vpop.f32.mrf.mxu0
      %v1666 = vadd.f32 %v1569, %v1665
      %1667 = vmatmul.f32.gmra.mxu0 %v1548
      %v1668 = vpop.f32.mrf.mxu0
      %v1669 = vadd.f32 %v1569, %v1668
      %1670 = vmatmul.f32.gmra.mxu0 %v1549
      %v1671 = vpop.f32.mrf.mxu0
      %v1672 = vadd.f32 %v1569, %v1671
      %1673 = vmatmul.f32.gmra.mxu0 %v1550
      %v1674 = vpop.f32.mrf.mxu0
      %v1675 = vadd.f32 %v1569, %v1674
      %1676 = vmatmul.f32.gmra.mxu0 %v1551
      %v1677 = vpop.f32.mrf.mxu0
      %v1678 = vadd.f32 %v1569, %v1677
      %1679 = vmatmul.f32.gmra.mxu0 %v1552
      %v1680 = vpop.f32.mrf.mxu0
      %v1681 = vadd.f32 %v1569, %v1680
      %1682 = vdwg.mxu0
      %v1683 = vmul.f32 %v228, %v1588
      %v1684 = vmul.f32 %v229, %v1591
      %v1685 = vmul.f32 %v230, %v1594
      %v1686 = vmul.f32 %v231, %v1597
      %v1687 = vmul.f32 %v232, %v1600
      %v1688 = vmul.f32 %v233, %v1603
      %v1689 = vmul.f32 %v234, %v1606
      %v1690 = vmul.f32 %v235, %v1609
      %v1691 = vmul.f32 %v236, %v1612
      %v1692 = vmul.f32 %v237, %v1615
      %v1693 = vmul.f32 %v238, %v1618
      %v1694 = vmul.f32 %v239, %v1621
      %v1695 = vmul.f32 %v240, %v1624
      %v1696 = vmul.f32 %v241, %v1627
      %v1697 = vmul.f32 %v242, %v1630
      %v1698 = vmul.f32 %v243, %v1633
      %v1699 = vmul.f32 %v244, %v1636
      %v1700 = vmul.f32 %v245, %v1639
      %v1701 = vmul.f32 %v246, %v1642
      %v1702 = vmul.f32 %v247, %v1645
      %v1703 = vmul.f32 %v248, %v1648
      %v1704 = vmul.f32 %v249, %v1651
      %v1705 = vmul.f32 %v250, %v1654
      %v1706 = vmul.f32 %v251, %v1657
      %v1707 = vmul.f32 %v252, %v1660
      %v1708 = vmul.f32 %v253, %v1663
      %v1709 = vmul.f32 %v254, %v1666
      %v1710 = vmul.f32 %v255, %v1669
      %v1711 = vmul.f32 %v256, %v1672
      %v1712 = vmul.f32 %v257, %v1675
      %v1713 = vmul.f32 %v258, %v1678
      %v1714 = vmul.f32 %v259, %v1681
      %v1715 = vadd.f32 %v1683, %v228
      %v1716 = vadd.f32 %v1684, %v229
      %v1717 = vadd.f32 %v1685, %v230
      %v1718 = vadd.f32 %v1686, %v231
      %v1719 = vadd.f32 %v1687, %v232
      %v1720 = vadd.f32 %v1688, %v233
      %v1721 = vadd.f32 %v1689, %v234
      %v1722 = vadd.f32 %v1690, %v235
      %v1723 = vadd.f32 %v1691, %v236
      %v1724 = vadd.f32 %v1692, %v237
      %v1725 = vadd.f32 %v1693, %v238
      %v1726 = vadd.f32 %v1694, %v239
      %v1727 = vadd.f32 %v1695, %v240
      %v1728 = vadd.f32 %v1696, %v241
      %v1729 = vadd.f32 %v1697, %v242
      %v1730 = vadd.f32 %v1698, %v243
      %v1731 = vadd.f32 %v1699, %v244
      %v1732 = vadd.f32 %v1700, %v245
      %v1733 = vadd.f32 %v1701, %v246
      %v1734 = vadd.f32 %v1702, %v247
      %v1735 = vadd.f32 %v1703, %v248
      %v1736 = vadd.f32 %v1704, %v249
      %v1737 = vadd.f32 %v1705, %v250
      %v1738 = vadd.f32 %v1706, %v251
      %v1739 = vadd.f32 %v1707, %v252
      %v1740 = vadd.f32 %v1708, %v253
      %v1741 = vadd.f32 %v1709, %v254
      %v1742 = vadd.f32 %v1710, %v255
      %v1743 = vadd.f32 %v1711, %v256
      %v1744 = vadd.f32 %v1712, %v257
      %v1745 = vadd.f32 %v1713, %v258
      %v1746 = vadd.f32 %v1714, %v259
      %s1747 = scalar_lea.vmem %s1, 64
      %v1748 = vld [vmem:[%s1747] sm:$0xff]
      %v1749 = vld [vmem:[%s1747 + $0x8] sm:$0xff]
      %v1750 = vld [vmem:[%s1747 + $0x10] sm:$0xff]
      %v1751 = vld [vmem:[%s1747 + $0x18] sm:$0xff]
      %v1752 = vld [vmem:[%s1747 + $0x20] sm:$0xff]
      %v1753 = vld [vmem:[%s1747 + $0x28] sm:$0xff]
      %v1754 = vld [vmem:[%s1747 + $0x30] sm:$0xff]
      %v1755 = vld [vmem:[%s1747 + $0x38] sm:$0xff]
      %v1757 = vsel %vm269, %v1715, 0
      %v1760 = vsel %vm269, %v1716, 0
      %v1763 = vsel %vm269, %v1717, 0
      %v1766 = vsel %vm269, %v1718, 0
      %v1769 = vsel %vm269, %v1719, 0
      %v1772 = vsel %vm269, %v1720, 0
      %v1775 = vsel %vm269, %v1721, 0
      %v1778 = vsel %vm269, %v1722, 0
      %v1781 = vsel %vm269, %v1723, 0
      %v1784 = vsel %vm269, %v1724, 0
      %v1787 = vsel %vm269, %v1725, 0
      %v1790 = vsel %vm269, %v1726, 0
      %v1793 = vsel %vm269, %v1727, 0
      %v1796 = vsel %vm269, %v1728, 0
      %v1799 = vsel %vm269, %v1729, 0
      %v1802 = vsel %vm269, %v1730, 0
      %v1805 = vsel %vm269, %v1731, 0
      %v1808 = vsel %vm269, %v1732, 0
      %v1811 = vsel %vm269, %v1733, 0
      %v1814 = vsel %vm269, %v1734, 0
      %v1817 = vsel %vm269, %v1735, 0
      %v1820 = vsel %vm269, %v1736, 0
      %v1823 = vsel %vm269, %v1737, 0
      %v1826 = vsel %vm269, %v1738, 0
      %v1829 = vsel %vm269, %v1739, 0
      %v1832 = vsel %vm269, %v1740, 0
      %v1835 = vsel %vm269, %v1741, 0
      %v1838 = vsel %vm269, %v1742, 0
      %v1841 = vsel %vm269, %v1743, 0
      %v1844 = vsel %vm269, %v1744, 0
      %v1847 = vsel %vm269, %v1745, 0
      %v1850 = vsel %vm269, %v1746, 0
      %1852 = vmatpush.msra.mxu0 0.0
      %1853 = vmatpush.msra.mxu0 0.0
      %1854 = vmatpush.msra.mxu0 0.0
      %1855 = vmatpush.msra.mxu0 0.0
      %1856 = vmatpush.msra.mxu0 0.0
      %1857 = vmatpush.msra.mxu0 0.0
      %1858 = vmatpush.msra.mxu0 0.0
      %1859 = vmatpush.msra.mxu0 0.0
      %1860 = vmatpush.msra.mxu0 0.0
      %1861 = vmatpush.msra.mxu0 0.0
      %1862 = vmatpush.msra.mxu0 0.0
      %1863 = vmatpush.msra.mxu0 0.0
      %1864 = vmatpush.msra.mxu0 %v1754
      %1865 = vmatpush.msra.mxu0 %v1752
      %1866 = vmatpush.msra.mxu0 %v1750
      %1867 = vmatpush.msra.mxu0 %v1748
      %1868 = vmatmul.f32.gmra.mxu0 %v1757
      %v1869 = vpop.f32.mrf.mxu0
      %v1870 = vadd.f32 0.0, %v1869
      %1871 = vmatmul.f32.gmra.mxu0 %v1760
      %v1872 = vpop.f32.mrf.mxu0
      %v1873 = vadd.f32 0.0, %v1872
      %1874 = vmatmul.f32.gmra.mxu0 %v1763
      %v1875 = vpop.f32.mrf.mxu0
      %v1876 = vadd.f32 0.0, %v1875
      %1877 = vmatmul.f32.gmra.mxu0 %v1766
      %v1878 = vpop.f32.mrf.mxu0
      %v1879 = vadd.f32 0.0, %v1878
      %1880 = vmatmul.f32.gmra.mxu0 %v1769
      %v1881 = vpop.f32.mrf.mxu0
      %v1882 = vadd.f32 0.0, %v1881
      %1883 = vmatmul.f32.gmra.mxu0 %v1772
      %v1884 = vpop.f32.mrf.mxu0
      %v1885 = vadd.f32 0.0, %v1884
      %1886 = vmatmul.f32.gmra.mxu0 %v1775
      %v1887 = vpop.f32.mrf.mxu0
      %v1888 = vadd.f32 0.0, %v1887
      %1889 = vmatmul.f32.gmra.mxu0 %v1778
      %v1890 = vpop.f32.mrf.mxu0
      %v1891 = vadd.f32 0.0, %v1890
      %1892 = vmatmul.f32.gmra.mxu0 %v1781
      %v1893 = vpop.f32.mrf.mxu0
      %v1894 = vadd.f32 0.0, %v1893
      %1895 = vmatmul.f32.gmra.mxu0 %v1784
      %v1896 = vpop.f32.mrf.mxu0
      %v1897 = vadd.f32 0.0, %v1896
      %1898 = vmatmul.f32.gmra.mxu0 %v1787
      %v1899 = vpop.f32.mrf.mxu0
      %v1900 = vadd.f32 0.0, %v1899
      %1901 = vmatmul.f32.gmra.mxu0 %v1790
      %v1902 = vpop.f32.mrf.mxu0
      %v1903 = vadd.f32 0.0, %v1902
      %1904 = vmatmul.f32.gmra.mxu0 %v1793
      %v1905 = vpop.f32.mrf.mxu0
      %v1906 = vadd.f32 0.0, %v1905
      %1907 = vmatmul.f32.gmra.mxu0 %v1796
      %v1908 = vpop.f32.mrf.mxu0
      %v1909 = vadd.f32 0.0, %v1908
      %1910 = vmatmul.f32.gmra.mxu0 %v1799
      %v1911 = vpop.f32.mrf.mxu0
      %v1912 = vadd.f32 0.0, %v1911
      %1913 = vmatmul.f32.gmra.mxu0 %v1802
      %v1914 = vpop.f32.mrf.mxu0
      %v1915 = vadd.f32 0.0, %v1914
      %1916 = vmatmul.f32.gmra.mxu0 %v1805
      %v1917 = vpop.f32.mrf.mxu0
      %v1918 = vadd.f32 0.0, %v1917
      %1919 = vmatmul.f32.gmra.mxu0 %v1808
      %v1920 = vpop.f32.mrf.mxu0
      %v1921 = vadd.f32 0.0, %v1920
      %1922 = vmatmul.f32.gmra.mxu0 %v1811
      %v1923 = vpop.f32.mrf.mxu0
      %v1924 = vadd.f32 0.0, %v1923
      %1925 = vmatmul.f32.gmra.mxu0 %v1814
      %v1926 = vpop.f32.mrf.mxu0
      %v1927 = vadd.f32 0.0, %v1926
      %1928 = vmatmul.f32.gmra.mxu0 %v1817
      %v1929 = vpop.f32.mrf.mxu0
      %v1930 = vadd.f32 0.0, %v1929
      %1931 = vmatmul.f32.gmra.mxu0 %v1820
      %v1932 = vpop.f32.mrf.mxu0
      %v1933 = vadd.f32 0.0, %v1932
      %1934 = vmatmul.f32.gmra.mxu0 %v1823
      %v1935 = vpop.f32.mrf.mxu0
      %v1936 = vadd.f32 0.0, %v1935
      %1937 = vmatmul.f32.gmra.mxu0 %v1826
      %v1938 = vpop.f32.mrf.mxu0
      %v1939 = vadd.f32 0.0, %v1938
      %1940 = vmatmul.f32.gmra.mxu0 %v1829
      %v1941 = vpop.f32.mrf.mxu0
      %v1942 = vadd.f32 0.0, %v1941
      %1943 = vmatmul.f32.gmra.mxu0 %v1832
      %v1944 = vpop.f32.mrf.mxu0
      %v1945 = vadd.f32 0.0, %v1944
      %1946 = vmatmul.f32.gmra.mxu0 %v1835
      %v1947 = vpop.f32.mrf.mxu0
      %v1948 = vadd.f32 0.0, %v1947
      %1949 = vmatmul.f32.gmra.mxu0 %v1838
      %v1950 = vpop.f32.mrf.mxu0
      %v1951 = vadd.f32 0.0, %v1950
      %1952 = vmatmul.f32.gmra.mxu0 %v1841
      %v1953 = vpop.f32.mrf.mxu0
      %v1954 = vadd.f32 0.0, %v1953
      %1955 = vmatmul.f32.gmra.mxu0 %v1844
      %v1956 = vpop.f32.mrf.mxu0
      %v1957 = vadd.f32 0.0, %v1956
      %1958 = vmatmul.f32.gmra.mxu0 %v1847
      %v1959 = vpop.f32.mrf.mxu0
      %v1960 = vadd.f32 0.0, %v1959
      %1961 = vmatmul.f32.gmra.mxu0 %v1850
      %v1962 = vpop.f32.mrf.mxu0
      %v1963 = vadd.f32 0.0, %v1962
      %1964 = vdwg.mxu0
      %1965 = vmatpush.msra.mxu0 0.0
      %1966 = vmatpush.msra.mxu0 0.0
      %1967 = vmatpush.msra.mxu0 0.0
      %1968 = vmatpush.msra.mxu0 0.0
      %1969 = vmatpush.msra.mxu0 0.0
      %1970 = vmatpush.msra.mxu0 0.0
      %1971 = vmatpush.msra.mxu0 0.0
      %1972 = vmatpush.msra.mxu0 0.0
      %1973 = vmatpush.msra.mxu0 0.0
      %1974 = vmatpush.msra.mxu0 0.0
      %1975 = vmatpush.msra.mxu0 0.0
      %1976 = vmatpush.msra.mxu0 0.0
      %1977 = vmatpush.msra.mxu0 %v1755
      %1978 = vmatpush.msra.mxu0 %v1753
      %1979 = vmatpush.msra.mxu0 %v1751
      %1980 = vmatpush.msra.mxu0 %v1749
      %1981 = vmatmul.f32.gmra.mxu0 %v1757
      %v1982 = vpop.f32.mrf.mxu0
      %v1983 = vadd.f32 0.0, %v1982
      %1984 = vmatmul.f32.gmra.mxu0 %v1760
      %v1985 = vpop.f32.mrf.mxu0
      %v1986 = vadd.f32 0.0, %v1985
      %1987 = vmatmul.f32.gmra.mxu0 %v1763
      %v1988 = vpop.f32.mrf.mxu0
      %v1989 = vadd.f32 0.0, %v1988
      %1990 = vmatmul.f32.gmra.mxu0 %v1766
      %v1991 = vpop.f32.mrf.mxu0
      %v1992 = vadd.f32 0.0, %v1991
      %1993 = vmatmul.f32.gmra.mxu0 %v1769
      %v1994 = vpop.f32.mrf.mxu0
      %v1995 = vadd.f32 0.0, %v1994
      %1996 = vmatmul.f32.gmra.mxu0 %v1772
      %v1997 = vpop.f32.mrf.mxu0
      %v1998 = vadd.f32 0.0, %v1997
      %1999 = vmatmul.f32.gmra.mxu0 %v1775
      %v2000 = vpop.f32.mrf.mxu0
      %v2001 = vadd.f32 0.0, %v2000
      %2002 = vmatmul.f32.gmra.mxu0 %v1778
      %v2003 = vpop.f32.mrf.mxu0
      %v2004 = vadd.f32 0.0, %v2003
      %2005 = vmatmul.f32.gmra.mxu0 %v1781
      %v2006 = vpop.f32.mrf.mxu0
      %v2007 = vadd.f32 0.0, %v2006
      %2008 = vmatmul.f32.gmra.mxu0 %v1784
      %v2009 = vpop.f32.mrf.mxu0
      %v2010 = vadd.f32 0.0, %v2009
      %2011 = vmatmul.f32.gmra.mxu0 %v1787
      %v2012 = vpop.f32.mrf.mxu0
      %v2013 = vadd.f32 0.0, %v2012
      %2014 = vmatmul.f32.gmra.mxu0 %v1790
      %v2015 = vpop.f32.mrf.mxu0
      %v2016 = vadd.f32 0.0, %v2015
      %2017 = vmatmul.f32.gmra.mxu0 %v1793
      %v2018 = vpop.f32.mrf.mxu0
      %v2019 = vadd.f32 0.0, %v2018
      %2020 = vmatmul.f32.gmra.mxu0 %v1796
      %v2021 = vpop.f32.mrf.mxu0
      %v2022 = vadd.f32 0.0, %v2021
      %2023 = vmatmul.f32.gmra.mxu0 %v1799
      %v2024 = vpop.f32.mrf.mxu0
      %v2025 = vadd.f32 0.0, %v2024
      %2026 = vmatmul.f32.gmra.mxu0 %v1802
      %v2027 = vpop.f32.mrf.mxu0
      %v2028 = vadd.f32 0.0, %v2027
      %2029 = vmatmul.f32.gmra.mxu0 %v1805
      %v2030 = vpop.f32.mrf.mxu0
      %v2031 = vadd.f32 0.0, %v2030
      %2032 = vmatmul.f32.gmra.mxu0 %v1808
      %v2033 = vpop.f32.mrf.mxu0
      %v2034 = vadd.f32 0.0, %v2033
      %2035 = vmatmul.f32.gmra.mxu0 %v1811
      %v2036 = vpop.f32.mrf.mxu0
      %v2037 = vadd.f32 0.0, %v2036
      %2038 = vmatmul.f32.gmra.mxu0 %v1814
      %v2039 = vpop.f32.mrf.mxu0
      %v2040 = vadd.f32 0.0, %v2039
      %2041 = vmatmul.f32.gmra.mxu0 %v1817
      %v2042 = vpop.f32.mrf.mxu0
      %v2043 = vadd.f32 0.0, %v2042
      %2044 = vmatmul.f32.gmra.mxu0 %v1820
      %v2045 = vpop.f32.mrf.mxu0
      %v2046 = vadd.f32 0.0, %v2045
      %2047 = vmatmul.f32.gmra.mxu0 %v1823
      %v2048 = vpop.f32.mrf.mxu0
      %v2049 = vadd.f32 0.0, %v2048
      %2050 = vmatmul.f32.gmra.mxu0 %v1826
      %v2051 = vpop.f32.mrf.mxu0
      %v2052 = vadd.f32 0.0, %v2051
      %2053 = vmatmul.f32.gmra.mxu0 %v1829
      %v2054 = vpop.f32.mrf.mxu0
      %v2055 = vadd.f32 0.0, %v2054
      %2056 = vmatmul.f32.gmra.mxu0 %v1832
      %v2057 = vpop.f32.mrf.mxu0
      %v2058 = vadd.f32 0.0, %v2057
      %2059 = vmatmul.f32.gmra.mxu0 %v1835
      %v2060 = vpop.f32.mrf.mxu0
      %v2061 = vadd.f32 0.0, %v2060
      %2062 = vmatmul.f32.gmra.mxu0 %v1838
      %v2063 = vpop.f32.mrf.mxu0
      %v2064 = vadd.f32 0.0, %v2063
      %2065 = vmatmul.f32.gmra.mxu0 %v1841
      %v2066 = vpop.f32.mrf.mxu0
      %v2067 = vadd.f32 0.0, %v2066
      %2068 = vmatmul.f32.gmra.mxu0 %v1844
      %v2069 = vpop.f32.mrf.mxu0
      %v2070 = vadd.f32 0.0, %v2069
      %2071 = vmatmul.f32.gmra.mxu0 %v1847
      %v2072 = vpop.f32.mrf.mxu0
      %v2073 = vadd.f32 0.0, %v2072
      %2074 = vmatmul.f32.gmra.mxu0 %v1850
      %v2075 = vpop.f32.mrf.mxu0
      %v2076 = vadd.f32 0.0, %v2075
      %2077 = vdwg.mxu0
      %v2078 = vtanh.pop %v1870
      %v2079 = vtanh.pop %v1873
      %v2080 = vtanh.pop %v1876
      %v2081 = vtanh.pop %v1879
      %v2082 = vtanh.pop %v1882
      %v2083 = vtanh.pop %v1885
      %v2084 = vtanh.pop %v1888
      %v2085 = vtanh.pop %v1891
      %v2086 = vtanh.pop %v1894
      %v2087 = vtanh.pop %v1897
      %v2088 = vtanh.pop %v1900
      %v2089 = vtanh.pop %v1903
      %v2090 = vtanh.pop %v1906
      %v2091 = vtanh.pop %v1909
      %v2092 = vtanh.pop %v1912
      %v2093 = vtanh.pop %v1915
      %v2094 = vtanh.pop %v1918
      %v2095 = vtanh.pop %v1921
      %v2096 = vtanh.pop %v1924
      %v2097 = vtanh.pop %v1927
      %v2098 = vtanh.pop %v1930
      %v2099 = vtanh.pop %v1933
      %v2100 = vtanh.pop %v1936
      %v2101 = vtanh.pop %v1939
      %v2102 = vtanh.pop %v1942
      %v2103 = vtanh.pop %v1945
      %v2104 = vtanh.pop %v1948
      %v2105 = vtanh.pop %v1951
      %v2106 = vtanh.pop %v1954
      %v2107 = vtanh.pop %v1957
      %v2108 = vtanh.pop %v1960
      %v2109 = vtanh.pop %v1963
      %2110 = vmax.xlane.f32.xlu0 %v1983
      %v2111 = vpop.xlane.xlu0 %2110
      %2112 = vmax.xlane.f32.xlu0 %v1986
      %v2113 = vpop.xlane.xlu0 %2112
      %2114 = vmax.xlane.f32.xlu0 %v1989
      %v2115 = vpop.xlane.xlu0 %2114
      %2116 = vmax.xlane.f32.xlu0 %v1992
      %v2117 = vpop.xlane.xlu0 %2116
      %2118 = vmax.xlane.f32.xlu0 %v1995
      %v2119 = vpop.xlane.xlu0 %2118
      %2120 = vmax.xlane.f32.xlu0 %v1998
      %v2121 = vpop.xlane.xlu0 %2120
      %2122 = vmax.xlane.f32.xlu0 %v2001
      %v2123 = vpop.xlane.xlu0 %2122
      %2124 = vmax.xlane.f32.xlu0 %v2004
      %v2125 = vpop.xlane.xlu0 %2124
      %2126 = vmax.xlane.f32.xlu0 %v2007
      %v2127 = vpop.xlane.xlu0 %2126
      %2128 = vmax.xlane.f32.xlu0 %v2010
      %v2129 = vpop.xlane.xlu0 %2128
      %2130 = vmax.xlane.f32.xlu0 %v2013
      %v2131 = vpop.xlane.xlu0 %2130
      %2132 = vmax.xlane.f32.xlu0 %v2016
      %v2133 = vpop.xlane.xlu0 %2132
      %2134 = vmax.xlane.f32.xlu0 %v2019
      %v2135 = vpop.xlane.xlu0 %2134
      %2136 = vmax.xlane.f32.xlu0 %v2022
      %v2137 = vpop.xlane.xlu0 %2136
      %2138 = vmax.xlane.f32.xlu0 %v2025
      %v2139 = vpop.xlane.xlu0 %2138
      %2140 = vmax.xlane.f32.xlu0 %v2028
      %v2141 = vpop.xlane.xlu0 %2140
      %2142 = vmax.xlane.f32.xlu0 %v2031
      %v2143 = vpop.xlane.xlu0 %2142
      %2144 = vmax.xlane.f32.xlu0 %v2034
      %v2145 = vpop.xlane.xlu0 %2144
      %2146 = vmax.xlane.f32.xlu0 %v2037
      %v2147 = vpop.xlane.xlu0 %2146
      %2148 = vmax.xlane.f32.xlu0 %v2040
      %v2149 = vpop.xlane.xlu0 %2148
      %2150 = vmax.xlane.f32.xlu0 %v2043
      %v2151 = vpop.xlane.xlu0 %2150
      %2152 = vmax.xlane.f32.xlu0 %v2046
      %v2153 = vpop.xlane.xlu0 %2152
      %2154 = vmax.xlane.f32.xlu0 %v2049
      %v2155 = vpop.xlane.xlu0 %2154
      %2156 = vmax.xlane.f32.xlu0 %v2052
      %v2157 = vpop.xlane.xlu0 %2156
      %2158 = vmax.xlane.f32.xlu0 %v2055
      %v2159 = vpop.xlane.xlu0 %2158
      %2160 = vmax.xlane.f32.xlu0 %v2058
      %v2161 = vpop.xlane.xlu0 %2160
      %2162 = vmax.xlane.f32.xlu0 %v2061
      %v2163 = vpop.xlane.xlu0 %2162
      %2164 = vmax.xlane.f32.xlu0 %v2064
      %v2165 = vpop.xlane.xlu0 %2164
      %2166 = vmax.xlane.f32.xlu0 %v2067
      %v2167 = vpop.xlane.xlu0 %2166
      %2168 = vmax.xlane.f32.xlu0 %v2070
      %v2169 = vpop.xlane.xlu0 %2168
      %2170 = vmax.xlane.f32.xlu0 %v2073
      %v2171 = vpop.xlane.xlu0 %2170
      %2172 = vmax.xlane.f32.xlu0 %v2076
      %v2173 = vpop.xlane.xlu0 %2172
      %v2174 = vsub.f32 %v1983, %v2111
      %v2175 = vsub.f32 %v1986, %v2113
      %v2176 = vsub.f32 %v1989, %v2115
      %v2177 = vsub.f32 %v1992, %v2117
      %v2178 = vsub.f32 %v1995, %v2119
      %v2179 = vsub.f32 %v1998, %v2121
      %v2180 = vsub.f32 %v2001, %v2123
      %v2181 = vsub.f32 %v2004, %v2125
      %v2182 = vsub.f32 %v2007, %v2127
      %v2183 = vsub.f32 %v2010, %v2129
      %v2184 = vsub.f32 %v2013, %v2131
      %v2185 = vsub.f32 %v2016, %v2133
      %v2186 = vsub.f32 %v2019, %v2135
      %v2187 = vsub.f32 %v2022, %v2137
      %v2188 = vsub.f32 %v2025, %v2139
      %v2189 = vsub.f32 %v2028, %v2141
      %v2190 = vsub.f32 %v2031, %v2143
      %v2191 = vsub.f32 %v2034, %v2145
      %v2192 = vsub.f32 %v2037, %v2147
      %v2193 = vsub.f32 %v2040, %v2149
      %v2194 = vsub.f32 %v2043, %v2151
      %v2195 = vsub.f32 %v2046, %v2153
      %v2196 = vsub.f32 %v2049, %v2155
      %v2197 = vsub.f32 %v2052, %v2157
      %v2198 = vsub.f32 %v2055, %v2159
      %v2199 = vsub.f32 %v2058, %v2161
      %v2200 = vsub.f32 %v2061, %v2163
      %v2201 = vsub.f32 %v2064, %v2165
      %v2202 = vsub.f32 %v2067, %v2167
      %v2203 = vsub.f32 %v2070, %v2169
      %v2204 = vsub.f32 %v2073, %v2171
      %v2205 = vsub.f32 %v2076, %v2173
      %v2206 = vmul.f32 %v2174, 1.442695
      %v2207 = vpow.pop %v2206
      %v2208 = vmul.f32 %v2175, 1.442695
      %v2209 = vpow.pop %v2208
      %v2210 = vmul.f32 %v2176, 1.442695
      %v2211 = vpow.pop %v2210
      %v2212 = vmul.f32 %v2177, 1.442695
      %v2213 = vpow.pop %v2212
      %v2214 = vmul.f32 %v2178, 1.442695
      %v2215 = vpow.pop %v2214
      %v2216 = vmul.f32 %v2179, 1.442695
      %v2217 = vpow.pop %v2216
      %v2218 = vmul.f32 %v2180, 1.442695
      %v2219 = vpow.pop %v2218
      %v2220 = vmul.f32 %v2181, 1.442695
      %v2221 = vpow.pop %v2220
      %v2222 = vmul.f32 %v2182, 1.442695
      %v2223 = vpow.pop %v2222
      %v2224 = vmul.f32 %v2183, 1.442695
      %v2225 = vpow.pop %v2224
      %v2226 = vmul.f32 %v2184, 1.442695
      %v2227 = vpow.pop %v2226
      %v2228 = vmul.f32 %v2185, 1.442695
      %v2229 = vpow.pop %v2228
      %v2230 = vmul.f32 %v2186, 1.442695
      %v2231 = vpow.pop %v2230
      %v2232 = vmul.f32 %v2187, 1.442695
      %v2233 = vpow.pop %v2232
      %v2234 = vmul.f32 %v2188, 1.442695
      %v2235 = vpow.pop %v2234
      %v2236 = vmul.f32 %v2189, 1.442695
      %v2237 = vpow.pop %v2236
      %v2238 = vmul.f32 %v2190, 1.442695
      %v2239 = vpow.pop %v2238
      %v2240 = vmul.f32 %v2191, 1.442695
      %v2241 = vpow.pop %v2240
      %v2242 = vmul.f32 %v2192, 1.442695
      %v2243 = vpow.pop %v2242
      %v2244 = vmul.f32 %v2193, 1.442695
      %v2245 = vpow.pop %v2244
      %v2246 = vmul.f32 %v2194, 1.442695
      %v2247 = vpow.pop %v2246
      %v2248 = vmul.f32 %v2195, 1.442695
      %v2249 = vpow.pop %v2248
      %v2250 = vmul.f32 %v2196, 1.442695
      %v2251 = vpow.pop %v2250
      %v2252 = vmul.f32 %v2197, 1.442695
      %v2253 = vpow.pop %v2252
      %v2254 = vmul.f32 %v2198, 1.442695
      %v2255 = vpow.pop %v2254
      %v2256 = vmul.f32 %v2199, 1.442695
      %v2257 = vpow.pop %v2256
      %v2258 = vmul.f32 %v2200, 1.442695
      %v2259 = vpow.pop %v2258
      %v2260 = vmul.f32 %v2201, 1.442695
      %v2261 = vpow.pop %v2260
      %v2262 = vmul.f32 %v2202, 1.442695
      %v2263 = vpow.pop %v2262
      %v2264 = vmul.f32 %v2203, 1.442695
      %v2265 = vpow.pop %v2264
      %v2266 = vmul.f32 %v2204, 1.442695
      %v2267 = vpow.pop %v2266
      %v2268 = vmul.f32 %v2205, 1.442695
      %v2269 = vpow.pop %v2268
      %2270 = vadd.xlane.f32.xlu0 %v2207
      %v2271 = vpop.xlane.xlu0 %2270
      %2272 = vadd.xlane.f32.xlu0 %v2209
      %v2273 = vpop.xlane.xlu0 %2272
      %2274 = vadd.xlane.f32.xlu0 %v2211
      %v2275 = vpop.xlane.xlu0 %2274
      %2276 = vadd.xlane.f32.xlu0 %v2213
      %v2277 = vpop.xlane.xlu0 %2276
      %2278 = vadd.xlane.f32.xlu0 %v2215
      %v2279 = vpop.xlane.xlu0 %2278
      %2280 = vadd.xlane.f32.xlu0 %v2217
      %v2281 = vpop.xlane.xlu0 %2280
      %2282 = vadd.xlane.f32.xlu0 %v2219
      %v2283 = vpop.xlane.xlu0 %2282
      %2284 = vadd.xlane.f32.xlu0 %v2221
      %v2285 = vpop.xlane.xlu0 %2284
      %2286 = vadd.xlane.f32.xlu0 %v2223
      %v2287 = vpop.xlane.xlu0 %2286
      %2288 = vadd.xlane.f32.xlu0 %v2225
      %v2289 = vpop.xlane.xlu0 %2288
      %2290 = vadd.xlane.f32.xlu0 %v2227
      %v2291 = vpop.xlane.xlu0 %2290
      %2292 = vadd.xlane.f32.xlu0 %v2229
      %v2293 = vpop.xlane.xlu0 %2292
      %2294 = vadd.xlane.f32.xlu0 %v2231
      %v2295 = vpop.xlane.xlu0 %2294
      %2296 = vadd.xlane.f32.xlu0 %v2233
      %v2297 = vpop.xlane.xlu0 %2296
      %2298 = vadd.xlane.f32.xlu0 %v2235
      %v2299 = vpop.xlane.xlu0 %2298
      %2300 = vadd.xlane.f32.xlu0 %v2237
      %v2301 = vpop.xlane.xlu0 %2300
      %2302 = vadd.xlane.f32.xlu0 %v2239
      %v2303 = vpop.xlane.xlu0 %2302
      %2304 = vadd.xlane.f32.xlu0 %v2241
      %v2305 = vpop.xlane.xlu0 %2304
      %2306 = vadd.xlane.f32.xlu0 %v2243
      %v2307 = vpop.xlane.xlu0 %2306
      %2308 = vadd.xlane.f32.xlu0 %v2245
      %v2309 = vpop.xlane.xlu0 %2308
      %2310 = vadd.xlane.f32.xlu0 %v2247
      %v2311 = vpop.xlane.xlu0 %2310
      %2312 = vadd.xlane.f32.xlu0 %v2249
      %v2313 = vpop.xlane.xlu0 %2312
      %2314 = vadd.xlane.f32.xlu0 %v2251
      %v2315 = vpop.xlane.xlu0 %2314
      %2316 = vadd.xlane.f32.xlu0 %v2253
      %v2317 = vpop.xlane.xlu0 %2316
      %2318 = vadd.xlane.f32.xlu0 %v2255
      %v2319 = vpop.xlane.xlu0 %2318
      %2320 = vadd.xlane.f32.xlu0 %v2257
      %v2321 = vpop.xlane.xlu0 %2320
      %2322 = vadd.xlane.f32.xlu0 %v2259
      %v2323 = vpop.xlane.xlu0 %2322
      %2324 = vadd.xlane.f32.xlu0 %v2261
      %v2325 = vpop.xlane.xlu0 %2324
      %2326 = vadd.xlane.f32.xlu0 %v2263
      %v2327 = vpop.xlane.xlu0 %2326
      %2328 = vadd.xlane.f32.xlu0 %v2265
      %v2329 = vpop.xlane.xlu0 %2328
      %2330 = vadd.xlane.f32.xlu0 %v2267
      %v2331 = vpop.xlane.xlu0 %2330
      %2332 = vadd.xlane.f32.xlu0 %v2269
      %v2333 = vpop.xlane.xlu0 %2332
      %v2334 = vrcp.pop %v2271
      %v2335 = vmul.f32 %v2271, %v2334
      %v2336 = vsub.f32 1.0, %v2335
      %v2337 = vmul.f32 %v2334, %v2336
      %v2338 = vadd.f32 %v2334, %v2337
      %vm2339 = vweird.f32 %v2271
      %vm2340 = vweird.f32 %v2334
      %vm2341 = vmor %vm2339, %vm2340
      %v2342 = vsel %vm2341, %v2334, %v2338
      %v2343 = vand.u32 2147483647, %v2271
      %vm2344 = vcmp.eq.f32.partialorder %v2343, 8.507059e+37
      %v2345 = vand.u32 %v2271, 2147483648
      %v2346 = vor.u32 1.1754944e-38, %v2345
      %v2347 = vsel %vm2344, %v2346, %v2342
      %v2348 = vrcp.pop %v2273
      %v2349 = vmul.f32 %v2273, %v2348
      %v2350 = vsub.f32 1.0, %v2349
      %v2351 = vmul.f32 %v2348, %v2350
      %v2352 = vadd.f32 %v2348, %v2351
      %vm2353 = vweird.f32 %v2273
      %vm2354 = vweird.f32 %v2348
      %vm2355 = vmor %vm2353, %vm2354
      %v2356 = vsel %vm2355, %v2348, %v2352
      %v2357 = vand.u32 2147483647, %v2273
      %vm2358 = vcmp.eq.f32.partialorder %v2357, 8.507059e+37
      %v2359 = vand.u32 %v2273, 2147483648
      %v2360 = vor.u32 1.1754944e-38, %v2359
      %v2361 = vsel %vm2358, %v2360, %v2356
      %v2362 = vrcp.pop %v2275
      %v2363 = vmul.f32 %v2275, %v2362
      %v2364 = vsub.f32 1.0, %v2363
      %v2365 = vmul.f32 %v2362, %v2364
      %v2366 = vadd.f32 %v2362, %v2365
      %vm2367 = vweird.f32 %v2275
      %vm2368 = vweird.f32 %v2362
      %vm2369 = vmor %vm2367, %vm2368
      %v2370 = vsel %vm2369, %v2362, %v2366
      %v2371 = vand.u32 2147483647, %v2275
      %vm2372 = vcmp.eq.f32.partialorder %v2371, 8.507059e+37
      %v2373 = vand.u32 %v2275, 2147483648
      %v2374 = vor.u32 1.1754944e-38, %v2373
      %v2375 = vsel %vm2372, %v2374, %v2370
      %v2376 = vrcp.pop %v2277
      %v2377 = vmul.f32 %v2277, %v2376
      %v2378 = vsub.f32 1.0, %v2377
      %v2379 = vmul.f32 %v2376, %v2378
      %v2380 = vadd.f32 %v2376, %v2379
      %vm2381 = vweird.f32 %v2277
      %vm2382 = vweird.f32 %v2376
      %vm2383 = vmor %vm2381, %vm2382
      %v2384 = vsel %vm2383, %v2376, %v2380
      %v2385 = vand.u32 2147483647, %v2277
      %vm2386 = vcmp.eq.f32.partialorder %v2385, 8.507059e+37
      %v2387 = vand.u32 %v2277, 2147483648
      %v2388 = vor.u32 1.1754944e-38, %v2387
      %v2389 = vsel %vm2386, %v2388, %v2384
      %v2390 = vrcp.pop %v2279
      %v2391 = vmul.f32 %v2279, %v2390
      %v2392 = vsub.f32 1.0, %v2391
      %v2393 = vmul.f32 %v2390, %v2392
      %v2394 = vadd.f32 %v2390, %v2393
      %vm2395 = vweird.f32 %v2279
      %vm2396 = vweird.f32 %v2390
      %vm2397 = vmor %vm2395, %vm2396
      %v2398 = vsel %vm2397, %v2390, %v2394
      %v2399 = vand.u32 2147483647, %v2279
      %vm2400 = vcmp.eq.f32.partialorder %v2399, 8.507059e+37
      %v2401 = vand.u32 %v2279, 2147483648
      %v2402 = vor.u32 1.1754944e-38, %v2401
      %v2403 = vsel %vm2400, %v2402, %v2398
      %v2404 = vrcp.pop %v2281
      %v2405 = vmul.f32 %v2281, %v2404
      %v2406 = vsub.f32 1.0, %v2405
      %v2407 = vmul.f32 %v2404, %v2406
      %v2408 = vadd.f32 %v2404, %v2407
      %vm2409 = vweird.f32 %v2281
      %vm2410 = vweird.f32 %v2404
      %vm2411 = vmor %vm2409, %vm2410
      %v2412 = vsel %vm2411, %v2404, %v2408
      %v2413 = vand.u32 2147483647, %v2281
      %vm2414 = vcmp.eq.f32.partialorder %v2413, 8.507059e+37
      %v2415 = vand.u32 %v2281, 2147483648
      %v2416 = vor.u32 1.1754944e-38, %v2415
      %v2417 = vsel %vm2414, %v2416, %v2412
      %v2418 = vrcp.pop %v2283
      %v2419 = vmul.f32 %v2283, %v2418
      %v2420 = vsub.f32 1.0, %v2419
      %v2421 = vmul.f32 %v2418, %v2420
      %v2422 = vadd.f32 %v2418, %v2421
      %vm2423 = vweird.f32 %v2283
      %vm2424 = vweird.f32 %v2418
      %vm2425 = vmor %vm2423, %vm2424
      %v2426 = vsel %vm2425, %v2418, %v2422
      %v2427 = vand.u32 2147483647, %v2283
      %vm2428 = vcmp.eq.f32.partialorder %v2427, 8.507059e+37
      %v2429 = vand.u32 %v2283, 2147483648
      %v2430 = vor.u32 1.1754944e-38, %v2429
      %v2431 = vsel %vm2428, %v2430, %v2426
      %v2432 = vrcp.pop %v2285
      %v2433 = vmul.f32 %v2285, %v2432
      %v2434 = vsub.f32 1.0, %v2433
      %v2435 = vmul.f32 %v2432, %v2434
      %v2436 = vadd.f32 %v2432, %v2435
      %vm2437 = vweird.f32 %v2285
      %vm2438 = vweird.f32 %v2432
      %vm2439 = vmor %vm2437, %vm2438
      %v2440 = vsel %vm2439, %v2432, %v2436
      %v2441 = vand.u32 2147483647, %v2285
      %vm2442 = vcmp.eq.f32.partialorder %v2441, 8.507059e+37
      %v2443 = vand.u32 %v2285, 2147483648
      %v2444 = vor.u32 1.1754944e-38, %v2443
      %v2445 = vsel %vm2442, %v2444, %v2440
      %v2446 = vrcp.pop %v2287
      %v2447 = vmul.f32 %v2287, %v2446
      %v2448 = vsub.f32 1.0, %v2447
      %v2449 = vmul.f32 %v2446, %v2448
      %v2450 = vadd.f32 %v2446, %v2449
      %vm2451 = vweird.f32 %v2287
      %vm2452 = vweird.f32 %v2446
      %vm2453 = vmor %vm2451, %vm2452
      %v2454 = vsel %vm2453, %v2446, %v2450
      %v2455 = vand.u32 2147483647, %v2287
      %vm2456 = vcmp.eq.f32.partialorder %v2455, 8.507059e+37
      %v2457 = vand.u32 %v2287, 2147483648
      %v2458 = vor.u32 1.1754944e-38, %v2457
      %v2459 = vsel %vm2456, %v2458, %v2454
      %v2460 = vrcp.pop %v2289
      %v2461 = vmul.f32 %v2289, %v2460
      %v2462 = vsub.f32 1.0, %v2461
      %v2463 = vmul.f32 %v2460, %v2462
      %v2464 = vadd.f32 %v2460, %v2463
      %vm2465 = vweird.f32 %v2289
      %vm2466 = vweird.f32 %v2460
      %vm2467 = vmor %vm2465, %vm2466
      %v2468 = vsel %vm2467, %v2460, %v2464
      %v2469 = vand.u32 2147483647, %v2289
      %vm2470 = vcmp.eq.f32.partialorder %v2469, 8.507059e+37
      %v2471 = vand.u32 %v2289, 2147483648
      %v2472 = vor.u32 1.1754944e-38, %v2471
      %v2473 = vsel %vm2470, %v2472, %v2468
      %v2474 = vrcp.pop %v2291
      %v2475 = vmul.f32 %v2291, %v2474
      %v2476 = vsub.f32 1.0, %v2475
      %v2477 = vmul.f32 %v2474, %v2476
      %v2478 = vadd.f32 %v2474, %v2477
      %vm2479 = vweird.f32 %v2291
      %vm2480 = vweird.f32 %v2474
      %vm2481 = vmor %vm2479, %vm2480
      %v2482 = vsel %vm2481, %v2474, %v2478
      %v2483 = vand.u32 2147483647, %v2291
      %vm2484 = vcmp.eq.f32.partialorder %v2483, 8.507059e+37
      %v2485 = vand.u32 %v2291, 2147483648
      %v2486 = vor.u32 1.1754944e-38, %v2485
      %v2487 = vsel %vm2484, %v2486, %v2482
      %v2488 = vrcp.pop %v2293
      %v2489 = vmul.f32 %v2293, %v2488
      %v2490 = vsub.f32 1.0, %v2489
      %v2491 = vmul.f32 %v2488, %v2490
      %v2492 = vadd.f32 %v2488, %v2491
      %vm2493 = vweird.f32 %v2293
      %vm2494 = vweird.f32 %v2488
      %vm2495 = vmor %vm2493, %vm2494
      %v2496 = vsel %vm2495, %v2488, %v2492
      %v2497 = vand.u32 2147483647, %v2293
      %vm2498 = vcmp.eq.f32.partialorder %v2497, 8.507059e+37
      %v2499 = vand.u32 %v2293, 2147483648
      %v2500 = vor.u32 1.1754944e-38, %v2499
      %v2501 = vsel %vm2498, %v2500, %v2496
      %v2502 = vrcp.pop %v2295
      %v2503 = vmul.f32 %v2295, %v2502
      %v2504 = vsub.f32 1.0, %v2503
      %v2505 = vmul.f32 %v2502, %v2504
      %v2506 = vadd.f32 %v2502, %v2505
      %vm2507 = vweird.f32 %v2295
      %vm2508 = vweird.f32 %v2502
      %vm2509 = vmor %vm2507, %vm2508
      %v2510 = vsel %vm2509, %v2502, %v2506
      %v2511 = vand.u32 2147483647, %v2295
      %vm2512 = vcmp.eq.f32.partialorder %v2511, 8.507059e+37
      %v2513 = vand.u32 %v2295, 2147483648
      %v2514 = vor.u32 1.1754944e-38, %v2513
      %v2515 = vsel %vm2512, %v2514, %v2510
      %v2516 = vrcp.pop %v2297
      %v2517 = vmul.f32 %v2297, %v2516
      %v2518 = vsub.f32 1.0, %v2517
      %v2519 = vmul.f32 %v2516, %v2518
      %v2520 = vadd.f32 %v2516, %v2519
      %vm2521 = vweird.f32 %v2297
      %vm2522 = vweird.f32 %v2516
      %vm2523 = vmor %vm2521, %vm2522
      %v2524 = vsel %vm2523, %v2516, %v2520
      %v2525 = vand.u32 2147483647, %v2297
      %vm2526 = vcmp.eq.f32.partialorder %v2525, 8.507059e+37
      %v2527 = vand.u32 %v2297, 2147483648
      %v2528 = vor.u32 1.1754944e-38, %v2527
      %v2529 = vsel %vm2526, %v2528, %v2524
      %v2530 = vrcp.pop %v2299
      %v2531 = vmul.f32 %v2299, %v2530
      %v2532 = vsub.f32 1.0, %v2531
      %v2533 = vmul.f32 %v2530, %v2532
      %v2534 = vadd.f32 %v2530, %v2533
      %vm2535 = vweird.f32 %v2299
      %vm2536 = vweird.f32 %v2530
      %vm2537 = vmor %vm2535, %vm2536
      %v2538 = vsel %vm2537, %v2530, %v2534
      %v2539 = vand.u32 2147483647, %v2299
      %vm2540 = vcmp.eq.f32.partialorder %v2539, 8.507059e+37
      %v2541 = vand.u32 %v2299, 2147483648
      %v2542 = vor.u32 1.1754944e-38, %v2541
      %v2543 = vsel %vm2540, %v2542, %v2538
      %v2544 = vrcp.pop %v2301
      %v2545 = vmul.f32 %v2301, %v2544
      %v2546 = vsub.f32 1.0, %v2545
      %v2547 = vmul.f32 %v2544, %v2546
      %v2548 = vadd.f32 %v2544, %v2547
      %vm2549 = vweird.f32 %v2301
      %vm2550 = vweird.f32 %v2544
      %vm2551 = vmor %vm2549, %vm2550
      %v2552 = vsel %vm2551, %v2544, %v2548
      %v2553 = vand.u32 2147483647, %v2301
      %vm2554 = vcmp.eq.f32.partialorder %v2553, 8.507059e+37
      %v2555 = vand.u32 %v2301, 2147483648
      %v2556 = vor.u32 1.1754944e-38, %v2555
      %v2557 = vsel %vm2554, %v2556, %v2552
      %v2558 = vrcp.pop %v2303
      %v2559 = vmul.f32 %v2303, %v2558
      %v2560 = vsub.f32 1.0, %v2559
      %v2561 = vmul.f32 %v2558, %v2560
      %v2562 = vadd.f32 %v2558, %v2561
      %vm2563 = vweird.f32 %v2303
      %vm2564 = vweird.f32 %v2558
      %vm2565 = vmor %vm2563, %vm2564
      %v2566 = vsel %vm2565, %v2558, %v2562
      %v2567 = vand.u32 2147483647, %v2303
      %vm2568 = vcmp.eq.f32.partialorder %v2567, 8.507059e+37
      %v2569 = vand.u32 %v2303, 2147483648
      %v2570 = vor.u32 1.1754944e-38, %v2569
      %v2571 = vsel %vm2568, %v2570, %v2566
      %v2572 = vrcp.pop %v2305
      %v2573 = vmul.f32 %v2305, %v2572
      %v2574 = vsub.f32 1.0, %v2573
      %v2575 = vmul.f32 %v2572, %v2574
      %v2576 = vadd.f32 %v2572, %v2575
      %vm2577 = vweird.f32 %v2305
      %vm2578 = vweird.f32 %v2572
      %vm2579 = vmor %vm2577, %vm2578
      %v2580 = vsel %vm2579, %v2572, %v2576
      %v2581 = vand.u32 2147483647, %v2305
      %vm2582 = vcmp.eq.f32.partialorder %v2581, 8.507059e+37
      %v2583 = vand.u32 %v2305, 2147483648
      %v2584 = vor.u32 1.1754944e-38, %v2583
      %v2585 = vsel %vm2582, %v2584, %v2580
      %v2586 = vrcp.pop %v2307
      %v2587 = vmul.f32 %v2307, %v2586
      %v2588 = vsub.f32 1.0, %v2587
      %v2589 = vmul.f32 %v2586, %v2588
      %v2590 = vadd.f32 %v2586, %v2589
      %vm2591 = vweird.f32 %v2307
      %vm2592 = vweird.f32 %v2586
      %vm2593 = vmor %vm2591, %vm2592
      %v2594 = vsel %vm2593, %v2586, %v2590
      %v2595 = vand.u32 2147483647, %v2307
      %vm2596 = vcmp.eq.f32.partialorder %v2595, 8.507059e+37
      %v2597 = vand.u32 %v2307, 2147483648
      %v2598 = vor.u32 1.1754944e-38, %v2597
      %v2599 = vsel %vm2596, %v2598, %v2594
      %v2600 = vrcp.pop %v2309
      %v2601 = vmul.f32 %v2309, %v2600
      %v2602 = vsub.f32 1.0, %v2601
      %v2603 = vmul.f32 %v2600, %v2602
      %v2604 = vadd.f32 %v2600, %v2603
      %vm2605 = vweird.f32 %v2309
      %vm2606 = vweird.f32 %v2600
      %vm2607 = vmor %vm2605, %vm2606
      %v2608 = vsel %vm2607, %v2600, %v2604
      %v2609 = vand.u32 2147483647, %v2309
      %vm2610 = vcmp.eq.f32.partialorder %v2609, 8.507059e+37
      %v2611 = vand.u32 %v2309, 2147483648
      %v2612 = vor.u32 1.1754944e-38, %v2611
      %v2613 = vsel %vm2610, %v2612, %v2608
      %v2614 = vrcp.pop %v2311
      %v2615 = vmul.f32 %v2311, %v2614
      %v2616 = vsub.f32 1.0, %v2615
      %v2617 = vmul.f32 %v2614, %v2616
      %v2618 = vadd.f32 %v2614, %v2617
      %vm2619 = vweird.f32 %v2311
      %vm2620 = vweird.f32 %v2614
      %vm2621 = vmor %vm2619, %vm2620
      %v2622 = vsel %vm2621, %v2614, %v2618
      %v2623 = vand.u32 2147483647, %v2311
      %vm2624 = vcmp.eq.f32.partialorder %v2623, 8.507059e+37
      %v2625 = vand.u32 %v2311, 2147483648
      %v2626 = vor.u32 1.1754944e-38, %v2625
      %v2627 = vsel %vm2624, %v2626, %v2622
      %v2628 = vrcp.pop %v2313
      %v2629 = vmul.f32 %v2313, %v2628
      %v2630 = vsub.f32 1.0, %v2629
      %v2631 = vmul.f32 %v2628, %v2630
      %v2632 = vadd.f32 %v2628, %v2631
      %vm2633 = vweird.f32 %v2313
      %vm2634 = vweird.f32 %v2628
      %vm2635 = vmor %vm2633, %vm2634
      %v2636 = vsel %vm2635, %v2628, %v2632
      %v2637 = vand.u32 2147483647, %v2313
      %vm2638 = vcmp.eq.f32.partialorder %v2637, 8.507059e+37
      %v2639 = vand.u32 %v2313, 2147483648
      %v2640 = vor.u32 1.1754944e-38, %v2639
      %v2641 = vsel %vm2638, %v2640, %v2636
      %v2642 = vrcp.pop %v2315
      %v2643 = vmul.f32 %v2315, %v2642
      %v2644 = vsub.f32 1.0, %v2643
      %v2645 = vmul.f32 %v2642, %v2644
      %v2646 = vadd.f32 %v2642, %v2645
      %vm2647 = vweird.f32 %v2315
      %vm2648 = vweird.f32 %v2642
      %vm2649 = vmor %vm2647, %vm2648
      %v2650 = vsel %vm2649, %v2642, %v2646
      %v2651 = vand.u32 2147483647, %v2315
      %vm2652 = vcmp.eq.f32.partialorder %v2651, 8.507059e+37
      %v2653 = vand.u32 %v2315, 2147483648
      %v2654 = vor.u32 1.1754944e-38, %v2653
      %v2655 = vsel %vm2652, %v2654, %v2650
      %v2656 = vrcp.pop %v2317
      %v2657 = vmul.f32 %v2317, %v2656
      %v2658 = vsub.f32 1.0, %v2657
      %v2659 = vmul.f32 %v2656, %v2658
      %v2660 = vadd.f32 %v2656, %v2659
      %vm2661 = vweird.f32 %v2317
      %vm2662 = vweird.f32 %v2656
      %vm2663 = vmor %vm2661, %vm2662
      %v2664 = vsel %vm2663, %v2656, %v2660
      %v2665 = vand.u32 2147483647, %v2317
      %vm2666 = vcmp.eq.f32.partialorder %v2665, 8.507059e+37
      %v2667 = vand.u32 %v2317, 2147483648
      %v2668 = vor.u32 1.1754944e-38, %v2667
      %v2669 = vsel %vm2666, %v2668, %v2664
      %v2670 = vrcp.pop %v2319
      %v2671 = vmul.f32 %v2319, %v2670
      %v2672 = vsub.f32 1.0, %v2671
      %v2673 = vmul.f32 %v2670, %v2672
      %v2674 = vadd.f32 %v2670, %v2673
      %vm2675 = vweird.f32 %v2319
      %vm2676 = vweird.f32 %v2670
      %vm2677 = vmor %vm2675, %vm2676
      %v2678 = vsel %vm2677, %v2670, %v2674
      %v2679 = vand.u32 2147483647, %v2319
      %vm2680 = vcmp.eq.f32.partialorder %v2679, 8.507059e+37
      %v2681 = vand.u32 %v2319, 2147483648
      %v2682 = vor.u32 1.1754944e-38, %v2681
      %v2683 = vsel %vm2680, %v2682, %v2678
      %v2684 = vrcp.pop %v2321
      %v2685 = vmul.f32 %v2321, %v2684
      %v2686 = vsub.f32 1.0, %v2685
      %v2687 = vmul.f32 %v2684, %v2686
      %v2688 = vadd.f32 %v2684, %v2687
      %vm2689 = vweird.f32 %v2321
      %vm2690 = vweird.f32 %v2684
      %vm2691 = vmor %vm2689, %vm2690
      %v2692 = vsel %vm2691, %v2684, %v2688
      %v2693 = vand.u32 2147483647, %v2321
      %vm2694 = vcmp.eq.f32.partialorder %v2693, 8.507059e+37
      %v2695 = vand.u32 %v2321, 2147483648
      %v2696 = vor.u32 1.1754944e-38, %v2695
      %v2697 = vsel %vm2694, %v2696, %v2692
      %v2698 = vrcp.pop %v2323
      %v2699 = vmul.f32 %v2323, %v2698
      %v2700 = vsub.f32 1.0, %v2699
      %v2701 = vmul.f32 %v2698, %v2700
      %v2702 = vadd.f32 %v2698, %v2701
      %vm2703 = vweird.f32 %v2323
      %vm2704 = vweird.f32 %v2698
      %vm2705 = vmor %vm2703, %vm2704
      %v2706 = vsel %vm2705, %v2698, %v2702
      %v2707 = vand.u32 2147483647, %v2323
      %vm2708 = vcmp.eq.f32.partialorder %v2707, 8.507059e+37
      %v2709 = vand.u32 %v2323, 2147483648
      %v2710 = vor.u32 1.1754944e-38, %v2709
      %v2711 = vsel %vm2708, %v2710, %v2706
      %v2712 = vrcp.pop %v2325
      %v2713 = vmul.f32 %v2325, %v2712
      %v2714 = vsub.f32 1.0, %v2713
      %v2715 = vmul.f32 %v2712, %v2714
      %v2716 = vadd.f32 %v2712, %v2715
      %vm2717 = vweird.f32 %v2325
      %vm2718 = vweird.f32 %v2712
      %vm2719 = vmor %vm2717, %vm2718
      %v2720 = vsel %vm2719, %v2712, %v2716
      %v2721 = vand.u32 2147483647, %v2325
      %vm2722 = vcmp.eq.f32.partialorder %v2721, 8.507059e+37
      %v2723 = vand.u32 %v2325, 2147483648
      %v2724 = vor.u32 1.1754944e-38, %v2723
      %v2725 = vsel %vm2722, %v2724, %v2720
      %v2726 = vrcp.pop %v2327
      %v2727 = vmul.f32 %v2327, %v2726
      %v2728 = vsub.f32 1.0, %v2727
      %v2729 = vmul.f32 %v2726, %v2728
      %v2730 = vadd.f32 %v2726, %v2729
      %vm2731 = vweird.f32 %v2327
      %vm2732 = vweird.f32 %v2726
      %vm2733 = vmor %vm2731, %vm2732
      %v2734 = vsel %vm2733, %v2726, %v2730
      %v2735 = vand.u32 2147483647, %v2327
      %vm2736 = vcmp.eq.f32.partialorder %v2735, 8.507059e+37
      %v2737 = vand.u32 %v2327, 2147483648
      %v2738 = vor.u32 1.1754944e-38, %v2737
      %v2739 = vsel %vm2736, %v2738, %v2734
      %v2740 = vrcp.pop %v2329
      %v2741 = vmul.f32 %v2329, %v2740
      %v2742 = vsub.f32 1.0, %v2741
      %v2743 = vmul.f32 %v2740, %v2742
      %v2744 = vadd.f32 %v2740, %v2743
      %vm2745 = vweird.f32 %v2329
      %vm2746 = vweird.f32 %v2740
      %vm2747 = vmor %vm2745, %vm2746
      %v2748 = vsel %vm2747, %v2740, %v2744
      %v2749 = vand.u32 2147483647, %v2329
      %vm2750 = vcmp.eq.f32.partialorder %v2749, 8.507059e+37
      %v2751 = vand.u32 %v2329, 2147483648
      %v2752 = vor.u32 1.1754944e-38, %v2751
      %v2753 = vsel %vm2750, %v2752, %v2748
      %v2754 = vrcp.pop %v2331
      %v2755 = vmul.f32 %v2331, %v2754
      %v2756 = vsub.f32 1.0, %v2755
      %v2757 = vmul.f32 %v2754, %v2756
      %v2758 = vadd.f32 %v2754, %v2757
      %vm2759 = vweird.f32 %v2331
      %vm2760 = vweird.f32 %v2754
      %vm2761 = vmor %vm2759, %vm2760
      %v2762 = vsel %vm2761, %v2754, %v2758
      %v2763 = vand.u32 2147483647, %v2331
      %vm2764 = vcmp.eq.f32.partialorder %v2763, 8.507059e+37
      %v2765 = vand.u32 %v2331, 2147483648
      %v2766 = vor.u32 1.1754944e-38, %v2765
      %v2767 = vsel %vm2764, %v2766, %v2762
      %v2768 = vrcp.pop %v2333
      %v2769 = vmul.f32 %v2333, %v2768
      %v2770 = vsub.f32 1.0, %v2769
      %v2771 = vmul.f32 %v2768, %v2770
      %v2772 = vadd.f32 %v2768, %v2771
      %vm2773 = vweird.f32 %v2333
      %vm2774 = vweird.f32 %v2768
      %vm2775 = vmor %vm2773, %vm2774
      %v2776 = vsel %vm2775, %v2768, %v2772
      %v2777 = vand.u32 2147483647, %v2333
      %vm2778 = vcmp.eq.f32.partialorder %v2777, 8.507059e+37
      %v2779 = vand.u32 %v2333, 2147483648
      %v2780 = vor.u32 1.1754944e-38, %v2779
      %v2781 = vsel %vm2778, %v2780, %v2776
      %v2782 = vmul.f32 %v2347, 32.0
      %v2783 = vmul.f32 %v2361, 32.0
      %v2784 = vmul.f32 %v2375, 32.0
      %v2785 = vmul.f32 %v2389, 32.0
      %v2786 = vmul.f32 %v2403, 32.0
      %v2787 = vmul.f32 %v2417, 32.0
      %v2788 = vmul.f32 %v2431, 32.0
      %v2789 = vmul.f32 %v2445, 32.0
      %v2790 = vmul.f32 %v2459, 32.0
      %v2791 = vmul.f32 %v2473, 32.0
      %v2792 = vmul.f32 %v2487, 32.0
      %v2793 = vmul.f32 %v2501, 32.0
      %v2794 = vmul.f32 %v2515, 32.0
      %v2795 = vmul.f32 %v2529, 32.0
      %v2796 = vmul.f32 %v2543, 32.0
      %v2797 = vmul.f32 %v2557, 32.0
      %v2798 = vmul.f32 %v2571, 32.0
      %v2799 = vmul.f32 %v2585, 32.0
      %v2800 = vmul.f32 %v2599, 32.0
      %v2801 = vmul.f32 %v2613, 32.0
      %v2802 = vmul.f32 %v2627, 32.0
      %v2803 = vmul.f32 %v2641, 32.0
      %v2804 = vmul.f32 %v2655, 32.0
      %v2805 = vmul.f32 %v2669, 32.0
      %v2806 = vmul.f32 %v2683, 32.0
      %v2807 = vmul.f32 %v2697, 32.0
      %v2808 = vmul.f32 %v2711, 32.0
      %v2809 = vmul.f32 %v2725, 32.0
      %v2810 = vmul.f32 %v2739, 32.0
      %v2811 = vmul.f32 %v2753, 32.0
      %v2812 = vmul.f32 %v2767, 32.0
      %v2813 = vmul.f32 %v2781, 32.0
      %v2814 = vmul.f32 %v2207, %v2782
      %v2815 = vmul.f32 %v2209, %v2783
      %v2816 = vmul.f32 %v2211, %v2784
      %v2817 = vmul.f32 %v2213, %v2785
      %v2818 = vmul.f32 %v2215, %v2786
      %v2819 = vmul.f32 %v2217, %v2787
      %v2820 = vmul.f32 %v2219, %v2788
      %v2821 = vmul.f32 %v2221, %v2789
      %v2822 = vmul.f32 %v2223, %v2790
      %v2823 = vmul.f32 %v2225, %v2791
      %v2824 = vmul.f32 %v2227, %v2792
      %v2825 = vmul.f32 %v2229, %v2793
      %v2826 = vmul.f32 %v2231, %v2794
      %v2827 = vmul.f32 %v2233, %v2795
      %v2828 = vmul.f32 %v2235, %v2796
      %v2829 = vmul.f32 %v2237, %v2797
      %v2830 = vmul.f32 %v2239, %v2798
      %v2831 = vmul.f32 %v2241, %v2799
      %v2832 = vmul.f32 %v2243, %v2800
      %v2833 = vmul.f32 %v2245, %v2801
      %v2834 = vmul.f32 %v2247, %v2802
      %v2835 = vmul.f32 %v2249, %v2803
      %v2836 = vmul.f32 %v2251, %v2804
      %v2837 = vmul.f32 %v2253, %v2805
      %v2838 = vmul.f32 %v2255, %v2806
      %v2839 = vmul.f32 %v2257, %v2807
      %v2840 = vmul.f32 %v2259, %v2808
      %v2841 = vmul.f32 %v2261, %v2809
      %v2842 = vmul.f32 %v2263, %v2810
      %v2843 = vmul.f32 %v2265, %v2811
      %v2844 = vmul.f32 %v2267, %v2812
      %v2845 = vmul.f32 %v2269, %v2813
      %s2846 = scalar_lea.vmem %s2, 128
      %v2847 = vld [vmem:[%s2846] sm:$0xff]
      %v2848 = vld [vmem:[%s2846 + $0x8] sm:$0xff]
      %v2849 = vld [vmem:[%s2846 + $0x10] sm:$0xff]
      %v2850 = vld [vmem:[%s2846 + $0x18] sm:$0xff]
      %v2851 = vld [vmem:[%s2846 + $0x20] sm:$0xff]
      %v2852 = vld [vmem:[%s2846 + $0x28] sm:$0xff]
      %v2853 = vld [vmem:[%s2846 + $0x30] sm:$0xff]
      %v2854 = vld [vmem:[%s2846 + $0x38] sm:$0xff]
      %v2855 = vld [vmem:[%s2846 + $0x40] sm:$0xff]
      %v2856 = vld [vmem:[%s2846 + $0x48] sm:$0xff]
      %v2857 = vld [vmem:[%s2846 + $0x50] sm:$0xff]
      %v2858 = vld [vmem:[%s2846 + $0x58] sm:$0xff]
      %v2859 = vld [vmem:[%s2846 + $0x60] sm:$0xff]
      %v2860 = vld [vmem:[%s2846 + $0x68] sm:$0xff]
      %v2861 = vld [vmem:[%s2846 + $0x70] sm:$0xff]
      %v2862 = vld [vmem:[%s2846 + $0x78] sm:$0xff]
      %2863 = vmatpush.msra.mxu0 %v2862
      %2864 = vmatpush.msra.mxu0 %v2861
      %2865 = vmatpush.msra.mxu0 %v2860
      %2866 = vmatpush.msra.mxu0 %v2859
      %2867 = vmatpush.msra.mxu0 %v2858
      %2868 = vmatpush.msra.mxu0 %v2857
      %2869 = vmatpush.msra.mxu0 %v2856
      %2870 = vmatpush.msra.mxu0 %v2855
      %2871 = vmatpush.msra.mxu0 %v2854
      %2872 = vmatpush.msra.mxu0 %v2853
      %2873 = vmatpush.msra.mxu0 %v2852
      %2874 = vmatpush.msra.mxu0 %v2851
      %2875 = vmatpush.msra.mxu0 %v2850
      %2876 = vmatpush.msra.mxu0 %v2849
      %2877 = vmatpush.msra.mxu0 %v2848
      %2878 = vmatpush.msra.mxu0 %v2847
      %2879 = vmatmul.f32.gmra.mxu0 %v2078
      %v2880 = vpop.f32.mrf.mxu0
      %v2881 = vadd.f32 0.0, %v2880
      %2882 = vmatmul.f32.gmra.mxu0 %v2079
      %v2883 = vpop.f32.mrf.mxu0
      %v2884 = vadd.f32 0.0, %v2883
      %2885 = vmatmul.f32.gmra.mxu0 %v2080
      %v2886 = vpop.f32.mrf.mxu0
      %v2887 = vadd.f32 0.0, %v2886
      %2888 = vmatmul.f32.gmra.mxu0 %v2081
      %v2889 = vpop.f32.mrf.mxu0
      %v2890 = vadd.f32 0.0, %v2889
      %2891 = vmatmul.f32.gmra.mxu0 %v2082
      %v2892 = vpop.f32.mrf.mxu0
      %v2893 = vadd.f32 0.0, %v2892
      %2894 = vmatmul.f32.gmra.mxu0 %v2083
      %v2895 = vpop.f32.mrf.mxu0
      %v2896 = vadd.f32 0.0, %v2895
      %2897 = vmatmul.f32.gmra.mxu0 %v2084
      %v2898 = vpop.f32.mrf.mxu0
      %v2899 = vadd.f32 0.0, %v2898
      %2900 = vmatmul.f32.gmra.mxu0 %v2085
      %v2901 = vpop.f32.mrf.mxu0
      %v2902 = vadd.f32 0.0, %v2901
      %2903 = vmatmul.f32.gmra.mxu0 %v2086
      %v2904 = vpop.f32.mrf.mxu0
      %v2905 = vadd.f32 0.0, %v2904
      %2906 = vmatmul.f32.gmra.mxu0 %v2087
      %v2907 = vpop.f32.mrf.mxu0
      %v2908 = vadd.f32 0.0, %v2907
      %2909 = vmatmul.f32.gmra.mxu0 %v2088
      %v2910 = vpop.f32.mrf.mxu0
      %v2911 = vadd.f32 0.0, %v2910
      %2912 = vmatmul.f32.gmra.mxu0 %v2089
      %v2913 = vpop.f32.mrf.mxu0
      %v2914 = vadd.f32 0.0, %v2913
      %2915 = vmatmul.f32.gmra.mxu0 %v2090
      %v2916 = vpop.f32.mrf.mxu0
      %v2917 = vadd.f32 0.0, %v2916
      %2918 = vmatmul.f32.gmra.mxu0 %v2091
      %v2919 = vpop.f32.mrf.mxu0
      %v2920 = vadd.f32 0.0, %v2919
      %2921 = vmatmul.f32.gmra.mxu0 %v2092
      %v2922 = vpop.f32.mrf.mxu0
      %v2923 = vadd.f32 0.0, %v2922
      %2924 = vmatmul.f32.gmra.mxu0 %v2093
      %v2925 = vpop.f32.mrf.mxu0
      %v2926 = vadd.f32 0.0, %v2925
      %2927 = vmatmul.f32.gmra.mxu0 %v2094
      %v2928 = vpop.f32.mrf.mxu0
      %v2929 = vadd.f32 0.0, %v2928
      %2930 = vmatmul.f32.gmra.mxu0 %v2095
      %v2931 = vpop.f32.mrf.mxu0
      %v2932 = vadd.f32 0.0, %v2931
      %2933 = vmatmul.f32.gmra.mxu0 %v2096
      %v2934 = vpop.f32.mrf.mxu0
      %v2935 = vadd.f32 0.0, %v2934
      %2936 = vmatmul.f32.gmra.mxu0 %v2097
      %v2937 = vpop.f32.mrf.mxu0
      %v2938 = vadd.f32 0.0, %v2937
      %2939 = vmatmul.f32.gmra.mxu0 %v2098
      %v2940 = vpop.f32.mrf.mxu0
      %v2941 = vadd.f32 0.0, %v2940
      %2942 = vmatmul.f32.gmra.mxu0 %v2099
      %v2943 = vpop.f32.mrf.mxu0
      %v2944 = vadd.f32 0.0, %v2943
      %2945 = vmatmul.f32.gmra.mxu0 %v2100
      %v2946 = vpop.f32.mrf.mxu0
      %v2947 = vadd.f32 0.0, %v2946
      %2948 = vmatmul.f32.gmra.mxu0 %v2101
      %v2949 = vpop.f32.mrf.mxu0
      %v2950 = vadd.f32 0.0, %v2949
      %2951 = vmatmul.f32.gmra.mxu0 %v2102
      %v2952 = vpop.f32.mrf.mxu0
      %v2953 = vadd.f32 0.0, %v2952
      %2954 = vmatmul.f32.gmra.mxu0 %v2103
      %v2955 = vpop.f32.mrf.mxu0
      %v2956 = vadd.f32 0.0, %v2955
      %2957 = vmatmul.f32.gmra.mxu0 %v2104
      %v2958 = vpop.f32.mrf.mxu0
      %v2959 = vadd.f32 0.0, %v2958
      %2960 = vmatmul.f32.gmra.mxu0 %v2105
      %v2961 = vpop.f32.mrf.mxu0
      %v2962 = vadd.f32 0.0, %v2961
      %2963 = vmatmul.f32.gmra.mxu0 %v2106
      %v2964 = vpop.f32.mrf.mxu0
      %v2965 = vadd.f32 0.0, %v2964
      %2966 = vmatmul.f32.gmra.mxu0 %v2107
      %v2967 = vpop.f32.mrf.mxu0
      %v2968 = vadd.f32 0.0, %v2967
      %2969 = vmatmul.f32.gmra.mxu0 %v2108
      %v2970 = vpop.f32.mrf.mxu0
      %v2971 = vadd.f32 0.0, %v2970
      %2972 = vmatmul.f32.gmra.mxu0 %v2109
      %v2973 = vpop.f32.mrf.mxu0
      %v2974 = vadd.f32 0.0, %v2973
      %2975 = vdwg.mxu0
      %v2976 = vtanh.pop %v2881
      %v2977 = vtanh.pop %v2884
      %v2978 = vtanh.pop %v2887
      %v2979 = vtanh.pop %v2890
      %v2980 = vtanh.pop %v2893
      %v2981 = vtanh.pop %v2896
      %v2982 = vtanh.pop %v2899
      %v2983 = vtanh.pop %v2902
      %v2984 = vtanh.pop %v2905
      %v2985 = vtanh.pop %v2908
      %v2986 = vtanh.pop %v2911
      %v2987 = vtanh.pop %v2914
      %v2988 = vtanh.pop %v2917
      %v2989 = vtanh.pop %v2920
      %v2990 = vtanh.pop %v2923
      %v2991 = vtanh.pop %v2926
      %v2992 = vtanh.pop %v2929
      %v2993 = vtanh.pop %v2932
      %v2994 = vtanh.pop %v2935
      %v2995 = vtanh.pop %v2938
      %v2996 = vtanh.pop %v2941
      %v2997 = vtanh.pop %v2944
      %v2998 = vtanh.pop %v2947
      %v2999 = vtanh.pop %v2950
      %v3000 = vtanh.pop %v2953
      %v3001 = vtanh.pop %v2956
      %v3002 = vtanh.pop %v2959
      %v3003 = vtanh.pop %v2962
      %v3004 = vtanh.pop %v2965
      %v3005 = vtanh.pop %v2968
      %v3006 = vtanh.pop %v2971
      %v3007 = vtanh.pop %v2974
      %v3008 = vmul.f32 %v2976, %v2814
      %v3009 = vmul.f32 %v2977, %v2815
      %v3010 = vmul.f32 %v2978, %v2816
      %v3011 = vmul.f32 %v2979, %v2817
      %v3012 = vmul.f32 %v2980, %v2818
      %v3013 = vmul.f32 %v2981, %v2819
      %v3014 = vmul.f32 %v2982, %v2820
      %v3015 = vmul.f32 %v2983, %v2821
      %v3016 = vmul.f32 %v2984, %v2822
      %v3017 = vmul.f32 %v2985, %v2823
      %v3018 = vmul.f32 %v2986, %v2824
      %v3019 = vmul.f32 %v2987, %v2825
      %v3020 = vmul.f32 %v2988, %v2826
      %v3021 = vmul.f32 %v2989, %v2827
      %v3022 = vmul.f32 %v2990, %v2828
      %v3023 = vmul.f32 %v2991, %v2829
      %v3024 = vmul.f32 %v2992, %v2830
      %v3025 = vmul.f32 %v2993, %v2831
      %v3026 = vmul.f32 %v2994, %v2832
      %v3027 = vmul.f32 %v2995, %v2833
      %v3028 = vmul.f32 %v2996, %v2834
      %v3029 = vmul.f32 %v2997, %v2835
      %v3030 = vmul.f32 %v2998, %v2836
      %v3031 = vmul.f32 %v2999, %v2837
      %v3032 = vmul.f32 %v3000, %v2838
      %v3033 = vmul.f32 %v3001, %v2839
      %v3034 = vmul.f32 %v3002, %v2840
      %v3035 = vmul.f32 %v3003, %v2841
      %v3036 = vmul.f32 %v3004, %v2842
      %v3037 = vmul.f32 %v3005, %v2843
      %v3038 = vmul.f32 %v3006, %v2844
      %v3039 = vmul.f32 %v3007, %v2845
      %s3040 = scalar_lea.vmem %s3, 128
      %v3041 = vld [vmem:[%s3040] sm:$0xff]
      %v3042 = vld [vmem:[%s3040 + $0x8] sm:$0xff]
      %v3043 = vld [vmem:[%s3040 + $0x10] sm:$0xff]
      %v3044 = vld [vmem:[%s3040 + $0x18] sm:$0xff]
      %v3045 = vld [vmem:[%s3040 + $0x20] sm:$0xff]
      %v3046 = vld [vmem:[%s3040 + $0x28] sm:$0xff]
      %v3047 = vld [vmem:[%s3040 + $0x30] sm:$0xff]
      %v3048 = vld [vmem:[%s3040 + $0x38] sm:$0xff]
      %v3049 = vld [vmem:[%s3040 + $0x40] sm:$0xff]
      %v3050 = vld [vmem:[%s3040 + $0x48] sm:$0xff]
      %v3051 = vld [vmem:[%s3040 + $0x50] sm:$0xff]
      %v3052 = vld [vmem:[%s3040 + $0x58] sm:$0xff]
      %v3053 = vld [vmem:[%s3040 + $0x60] sm:$0xff]
      %v3054 = vld [vmem:[%s3040 + $0x68] sm:$0xff]
      %v3055 = vld [vmem:[%s3040 + $0x70] sm:$0xff]
      %v3056 = vld [vmem:[%s3040 + $0x78] sm:$0xff]
      %v3057 = vperm.slane %v260, 1
      %3058 = vmatpush.msra.mxu0 %v3056
      %3059 = vmatpush.msra.mxu0 %v3055
      %3060 = vmatpush.msra.mxu0 %v3054
      %3061 = vmatpush.msra.mxu0 %v3053
      %3062 = vmatpush.msra.mxu0 %v3052
      %3063 = vmatpush.msra.mxu0 %v3051
      %3064 = vmatpush.msra.mxu0 %v3050
      %3065 = vmatpush.msra.mxu0 %v3049
      %3066 = vmatpush.msra.mxu0 %v3048
      %3067 = vmatpush.msra.mxu0 %v3047
      %3068 = vmatpush.msra.mxu0 %v3046
      %3069 = vmatpush.msra.mxu0 %v3045
      %3070 = vmatpush.msra.mxu0 %v3044
      %3071 = vmatpush.msra.mxu0 %v3043
      %3072 = vmatpush.msra.mxu0 %v3042
      %3073 = vmatpush.msra.mxu0 %v3041
      %3074 = vmatmul.f32.gmra.mxu0 %v3008
      %v3075 = vpop.f32.mrf.mxu0
      %v3076 = vadd.f32 %v3057, %v3075
      %3077 = vmatmul.f32.gmra.mxu0 %v3009
      %v3078 = vpop.f32.mrf.mxu0
      %v3079 = vadd.f32 %v3057, %v3078
      %3080 = vmatmul.f32.gmra.mxu0 %v3010
      %v3081 = vpop.f32.mrf.mxu0
      %v3082 = vadd.f32 %v3057, %v3081
      %3083 = vmatmul.f32.gmra.mxu0 %v3011
      %v3084 = vpop.f32.mrf.mxu0
      %v3085 = vadd.f32 %v3057, %v3084
      %3086 = vmatmul.f32.gmra.mxu0 %v3012
      %v3087 = vpop.f32.mrf.mxu0
      %v3088 = vadd.f32 %v3057, %v3087
      %3089 = vmatmul.f32.gmra.mxu0 %v3013
      %v3090 = vpop.f32.mrf.mxu0
      %v3091 = vadd.f32 %v3057, %v3090
      %3092 = vmatmul.f32.gmra.mxu0 %v3014
      %v3093 = vpop.f32.mrf.mxu0
      %v3094 = vadd.f32 %v3057, %v3093
      %3095 = vmatmul.f32.gmra.mxu0 %v3015
      %v3096 = vpop.f32.mrf.mxu0
      %v3097 = vadd.f32 %v3057, %v3096
      %3098 = vmatmul.f32.gmra.mxu0 %v3016
      %v3099 = vpop.f32.mrf.mxu0
      %v3100 = vadd.f32 %v3057, %v3099
      %3101 = vmatmul.f32.gmra.mxu0 %v3017
      %v3102 = vpop.f32.mrf.mxu0
      %v3103 = vadd.f32 %v3057, %v3102
      %3104 = vmatmul.f32.gmra.mxu0 %v3018
      %v3105 = vpop.f32.mrf.mxu0
      %v3106 = vadd.f32 %v3057, %v3105
      %3107 = vmatmul.f32.gmra.mxu0 %v3019
      %v3108 = vpop.f32.mrf.mxu0
      %v3109 = vadd.f32 %v3057, %v3108
      %3110 = vmatmul.f32.gmra.mxu0 %v3020
      %v3111 = vpop.f32.mrf.mxu0
      %v3112 = vadd.f32 %v3057, %v3111
      %3113 = vmatmul.f32.gmra.mxu0 %v3021
      %v3114 = vpop.f32.mrf.mxu0
      %v3115 = vadd.f32 %v3057, %v3114
      %3116 = vmatmul.f32.gmra.mxu0 %v3022
      %v3117 = vpop.f32.mrf.mxu0
      %v3118 = vadd.f32 %v3057, %v3117
      %3119 = vmatmul.f32.gmra.mxu0 %v3023
      %v3120 = vpop.f32.mrf.mxu0
      %v3121 = vadd.f32 %v3057, %v3120
      %3122 = vmatmul.f32.gmra.mxu0 %v3024
      %v3123 = vpop.f32.mrf.mxu0
      %v3124 = vadd.f32 %v3057, %v3123
      %3125 = vmatmul.f32.gmra.mxu0 %v3025
      %v3126 = vpop.f32.mrf.mxu0
      %v3127 = vadd.f32 %v3057, %v3126
      %3128 = vmatmul.f32.gmra.mxu0 %v3026
      %v3129 = vpop.f32.mrf.mxu0
      %v3130 = vadd.f32 %v3057, %v3129
      %3131 = vmatmul.f32.gmra.mxu0 %v3027
      %v3132 = vpop.f32.mrf.mxu0
      %v3133 = vadd.f32 %v3057, %v3132
      %3134 = vmatmul.f32.gmra.mxu0 %v3028
      %v3135 = vpop.f32.mrf.mxu0
      %v3136 = vadd.f32 %v3057, %v3135
      %3137 = vmatmul.f32.gmra.mxu0 %v3029
      %v3138 = vpop.f32.mrf.mxu0
      %v3139 = vadd.f32 %v3057, %v3138
      %3140 = vmatmul.f32.gmra.mxu0 %v3030
      %v3141 = vpop.f32.mrf.mxu0
      %v3142 = vadd.f32 %v3057, %v3141
      %3143 = vmatmul.f32.gmra.mxu0 %v3031
      %v3144 = vpop.f32.mrf.mxu0
      %v3145 = vadd.f32 %v3057, %v3144
      %3146 = vmatmul.f32.gmra.mxu0 %v3032
      %v3147 = vpop.f32.mrf.mxu0
      %v3148 = vadd.f32 %v3057, %v3147
      %3149 = vmatmul.f32.gmra.mxu0 %v3033
      %v3150 = vpop.f32.mrf.mxu0
      %v3151 = vadd.f32 %v3057, %v3150
      %3152 = vmatmul.f32.gmra.mxu0 %v3034
      %v3153 = vpop.f32.mrf.mxu0
      %v3154 = vadd.f32 %v3057, %v3153
      %3155 = vmatmul.f32.gmra.mxu0 %v3035
      %v3156 = vpop.f32.mrf.mxu0
      %v3157 = vadd.f32 %v3057, %v3156
      %3158 = vmatmul.f32.gmra.mxu0 %v3036
      %v3159 = vpop.f32.mrf.mxu0
      %v3160 = vadd.f32 %v3057, %v3159
      %3161 = vmatmul.f32.gmra.mxu0 %v3037
      %v3162 = vpop.f32.mrf.mxu0
      %v3163 = vadd.f32 %v3057, %v3162
      %3164 = vmatmul.f32.gmra.mxu0 %v3038
      %v3165 = vpop.f32.mrf.mxu0
      %v3166 = vadd.f32 %v3057, %v3165
      %3167 = vmatmul.f32.gmra.mxu0 %v3039
      %v3168 = vpop.f32.mrf.mxu0
      %v3169 = vadd.f32 %v3057, %v3168
      %3170 = vdwg.mxu0
      %v3171 = vmul.f32 %v228, %v3076
      %v3172 = vmul.f32 %v229, %v3079
      %v3173 = vmul.f32 %v230, %v3082
      %v3174 = vmul.f32 %v231, %v3085
      %v3175 = vmul.f32 %v232, %v3088
      %v3176 = vmul.f32 %v233, %v3091
      %v3177 = vmul.f32 %v234, %v3094
      %v3178 = vmul.f32 %v235, %v3097
      %v3179 = vmul.f32 %v236, %v3100
      %v3180 = vmul.f32 %v237, %v3103
      %v3181 = vmul.f32 %v238, %v3106
      %v3182 = vmul.f32 %v239, %v3109
      %v3183 = vmul.f32 %v240, %v3112
      %v3184 = vmul.f32 %v241, %v3115
      %v3185 = vmul.f32 %v242, %v3118
      %v3186 = vmul.f32 %v243, %v3121
      %v3187 = vmul.f32 %v244, %v3124
      %v3188 = vmul.f32 %v245, %v3127
      %v3189 = vmul.f32 %v246, %v3130
      %v3190 = vmul.f32 %v247, %v3133
      %v3191 = vmul.f32 %v248, %v3136
      %v3192 = vmul.f32 %v249, %v3139
      %v3193 = vmul.f32 %v250, %v3142
      %v3194 = vmul.f32 %v251, %v3145
      %v3195 = vmul.f32 %v252, %v3148
      %v3196 = vmul.f32 %v253, %v3151
      %v3197 = vmul.f32 %v254, %v3154
      %v3198 = vmul.f32 %v255, %v3157
      %v3199 = vmul.f32 %v256, %v3160
      %v3200 = vmul.f32 %v257, %v3163
      %v3201 = vmul.f32 %v258, %v3166
      %v3202 = vmul.f32 %v259, %v3169
      %v3203 = vadd.f32 %v3171, %v1715
      %v3204 = vadd.f32 %v3172, %v1716
      %v3205 = vadd.f32 %v3173, %v1717
      %v3206 = vadd.f32 %v3174, %v1718
      %v3207 = vadd.f32 %v3175, %v1719
      %v3208 = vadd.f32 %v3176, %v1720
      %v3209 = vadd.f32 %v3177, %v1721
      %v3210 = vadd.f32 %v3178, %v1722
      %v3211 = vadd.f32 %v3179, %v1723
      %v3212 = vadd.f32 %v3180, %v1724
      %v3213 = vadd.f32 %v3181, %v1725
      %v3214 = vadd.f32 %v3182, %v1726
      %v3215 = vadd.f32 %v3183, %v1727
      %v3216 = vadd.f32 %v3184, %v1728
      %v3217 = vadd.f32 %v3185, %v1729
      %v3218 = vadd.f32 %v3186, %v1730
      %v3219 = vadd.f32 %v3187, %v1731
      %v3220 = vadd.f32 %v3188, %v1732
      %v3221 = vadd.f32 %v3189, %v1733
      %v3222 = vadd.f32 %v3190, %v1734
      %v3223 = vadd.f32 %v3191, %v1735
      %v3224 = vadd.f32 %v3192, %v1736
      %v3225 = vadd.f32 %v3193, %v1737
      %v3226 = vadd.f32 %v3194, %v1738
      %v3227 = vadd.f32 %v3195, %v1739
      %v3228 = vadd.f32 %v3196, %v1740
      %v3229 = vadd.f32 %v3197, %v1741
      %v3230 = vadd.f32 %v3198, %v1742
      %v3231 = vadd.f32 %v3199, %v1743
      %v3232 = vadd.f32 %v3200, %v1744
      %v3233 = vadd.f32 %v3201, %v1745
      %v3234 = vadd.f32 %v3202, %v1746
      %3235 = vst.msk [vmem:[%s226] sm:$0xff] %vm269, %v3203
      %3236 = vst.msk [vmem:[%s226 + $0x8] sm:$0xff] %vm269, %v3204
      %3237 = vst.msk [vmem:[%s226 + $0x10] sm:$0xff] %vm269, %v3205
      %3238 = vst.msk [vmem:[%s226 + $0x18] sm:$0xff] %vm269, %v3206
      %3239 = vst.msk [vmem:[%s226 + $0x20] sm:$0xff] %vm269, %v3207
      %3240 = vst.msk [vmem:[%s226 + $0x28] sm:$0xff] %vm269, %v3208
      %3241 = vst.msk [vmem:[%s226 + $0x30] sm:$0xff] %vm269, %v3209
      %3242 = vst.msk [vmem:[%s226 + $0x38] sm:$0xff] %vm269, %v3210
      %3243 = vst.msk [vmem:[%s226 + $0x40] sm:$0xff] %vm269, %v3211
      %3244 = vst.msk [vmem:[%s226 + $0x48] sm:$0xff] %vm269, %v3212
      %3245 = vst.msk [vmem:[%s226 + $0x50] sm:$0xff] %vm269, %v3213
      %3246 = vst.msk [vmem:[%s226 + $0x58] sm:$0xff] %vm269, %v3214
      %3247 = vst.msk [vmem:[%s226 + $0x60] sm:$0xff] %vm269, %v3215
      %3248 = vst.msk [vmem:[%s226 + $0x68] sm:$0xff] %vm269, %v3216
      %3249 = vst.msk [vmem:[%s226 + $0x70] sm:$0xff] %vm269, %v3217
      %3250 = vst.msk [vmem:[%s226 + $0x78] sm:$0xff] %vm269, %v3218
      %3251 = vst.msk [vmem:[%s226 + $0x80] sm:$0xff] %vm269, %v3219
      %3252 = vst.msk [vmem:[%s226 + $0x88] sm:$0xff] %vm269, %v3220
      %3253 = vst.msk [vmem:[%s226 + $0x90] sm:$0xff] %vm269, %v3221
      %3254 = vst.msk [vmem:[%s226 + $0x98] sm:$0xff] %vm269, %v3222
      %3255 = vst.msk [vmem:[%s226 + $0xa0] sm:$0xff] %vm269, %v3223
      %3256 = vst.msk [vmem:[%s226 + $0xa8] sm:$0xff] %vm269, %v3224
      %3257 = vst.msk [vmem:[%s226 + $0xb0] sm:$0xff] %vm269, %v3225
      %3258 = vst.msk [vmem:[%s226 + $0xb8] sm:$0xff] %vm269, %v3226
      %3259 = vst.msk [vmem:[%s226 + $0xc0] sm:$0xff] %vm269, %v3227
      %3260 = vst.msk [vmem:[%s226 + $0xc8] sm:$0xff] %vm269, %v3228
      %3261 = vst.msk [vmem:[%s226 + $0xd0] sm:$0xff] %vm269, %v3229
      %3262 = vst.msk [vmem:[%s226 + $0xd8] sm:$0xff] %vm269, %v3230
      %3263 = vst.msk [vmem:[%s226 + $0xe0] sm:$0xff] %vm269, %v3231
      %3264 = vst.msk [vmem:[%s226 + $0xe8] sm:$0xff] %vm269, %v3232
      %3265 = vst.msk [vmem:[%s226 + $0xf0] sm:$0xff] %vm269, %v3233
      %3266 = vst.msk [vmem:[%s226 + $0xf8] sm:$0xff] %vm269, %v3234
      %s3267 = smul.u32 32, %s16
      %p3268 = scmp.lt.s32.totalorder %s3267, 63
      %s3269 = scalar_select %p3268, %s3267, 63
      %s3270 = smul.addr %s3269, 8
      %s3271 = scalar_lea.vmem %s5, %s3270
      // Predicated region
      $region41: #{tpu_custom_call.1} parent=39 // pred_check
        %p3272 = pneg %p144
      $region42: #{tpu_custom_call.1} parent=39 // pred_check_branch
        %3274 = sbr.rel (%p3272) target = $region44
      $region43: #{tpu_custom_call.1} parent=39 // pred_region
        %s3275 = smul.u32 32, %s16
      $region44: #{tpu_custom_call.1} parent=39 // pred_fallthru
        _
    $region40: #{tpu_custom_call.1} parent=5 // pred_fallthru
      _
    %p3276 = scmp.le.s32.totalorder 2, %s11
    // Predicated region
    $region45: #{tpu_custom_call.1} parent=5 // pred_check
      %p3277 = pneg %p3276
    $region46: #{tpu_custom_call.1} parent=5 // pred_check_branch
      %3279 = sbr.rel (%p3277) target = $region48
    $region47: #{tpu_custom_call.1} parent=5 // pred_region
      %s3280 = ssub.s32 %s11, 2
      // Predicated region
      $region49: #{tpu_custom_call.1} parent=47 // pred_check
        %p3281 = pneg %p150
      $region50: #{tpu_custom_call.1} parent=47 // pred_check_branch
        %3283 = sbr.rel (%p3281) target = $region52
      $region51: #{tpu_custom_call.1} parent=47 // pred_region
        %s3284 = smul.u32 32, %s17
        %p3285 = scmp.lt.s32.totalorder %s3284, 63
        %s3286 = scalar_select %p3285, %s3284, 63
        %s3287 = smul.addr %s3286, 8
        %s3288 = scalar_lea.vmem %s5, %s3287
      $region52: #{tpu_custom_call.1} parent=47 // pred_fallthru
        _
    $region48: #{tpu_custom_call.1} parent=5 // pred_fallthru
      _
  $region6: #{tpu_custom_call.1} parent=0 // loop_footer
    %s15 = sadd.s32 1, %s11
  $region7: #{tpu_custom_call.1} parent=0 // loop_footer_branch
    %10 = sbr.rel target = $region3
  $region8: #{tpu_custom_call.1} parent=0 // loop_exit
    _

</llo_original>
